<compile_context>
chip_gen: v5e
topology: v5e:2x2
jax: 0.10.0
libtpu: 0.0.40
codegen_flags: <defaults>
</compile_context>

<pallas_src>
import functools

import jax
import jax.numpy as jnp
from jax import lax
from jax.experimental import pallas as pl
from jax.experimental.pallas import tpu as pltpu


def _conv_bn_kernel(*refs, D, H, apply_relu, add_residual, pad_output):
    # refs (no residual):   x_ref, w_ref, bias_ref, out_ref
    # refs (with residual): x_ref, w_ref, bias_ref, res_ref, out_ref
    #
    # x_ref   : (1, (D+2)*(H+2), W*Cin)  one sample's padded row-slab (bf16)
    # w_ref   : (9, W*Cin, W*Cout)       banded tap weights, BN scale folded (bf16), resident
    # bias_ref: (1, W*Cout)              folded BN bias tiled over W (f32)
    # res_ref : (1, (D+2)*(H+2), W*Cout) residual slab (bf16), only if add_residual
    # out_ref : (1, (D+2)*(H+2), W*Cout) if pad_output else (1, D, H, W*Cout)
    if add_residual:
        x_ref, w_ref, bias_ref, res_ref, out_ref = refs
    else:
        x_ref, w_ref, bias_ref, out_ref = refs
        res_ref = None

    P = H + 2                      # padded rows per depth plane
    Lspan = D * P - 2              # rows of the accumulator (covers all valid outputs)

    # 9 accumulated MXU dots, one per (kd, kh) tap; the kw taps live inside the banded
    # weight matrix, so the W-axis halo needs no input padding or masking.
    acc = None
    for kd in range(3):
        for kh in range(3):
            t = kd * 3 + kh
            start = kd * P + kh                                 # constant row offset per tap
            xs = x_ref[0, start:start + Lspan, :]               # (Lspan, W*Cin) bf16
            c = jnp.dot(xs, w_ref[t], preferred_element_type=jnp.float32)
            acc = c if acc is None else acc + c                 # (Lspan, W*Cout) f32

    bias = bias_ref[...]                                        # (1, W*Cout) f32

    if pad_output:
        # Write the zero D/H halo for the next layer (replaces an XLA jnp.pad round trip).
        out_ref[...] = jnp.zeros_like(out_ref)

    for d in range(D):
        y = acc[d * P:d * P + H, :] + bias                      # (H, W*Cout) f32
        if add_residual:
            y = y + res_ref[0, (d + 1) * P + 1:(d + 1) * P + 1 + H, :].astype(jnp.float32)
        if apply_relu:
            y = jnp.maximum(y, 0.0)
        y = y.astype(out_ref.dtype)
        if pad_output:
            out_ref[0, (d + 1) * P + 1:(d + 1) * P + 1 + H, :] = y
        else:
            out_ref[0, d] = y


def _banded_weights(w, W):
    # w: (3, 3, 3, Cin, Cout) f32 -> (9, W*Cin, W*Cout); the kw taps are folded into a
    # banded block matrix so the conv's W-axis halo is handled for free by the weights.
    _, _, _, cin, cout = w.shape
    band = jnp.zeros((3, 3, W, cin, W, cout), w.dtype)
    for kw in range(3):
        sel = jnp.eye(W, W, k=1 - kw, dtype=w.dtype)            # [w_in, w_out] placement
        band = band + sel[:, None, :, None] * w[:, :, kw][:, :, None, :, None, :]
    return band.reshape(9, W * cin, W * cout)


def conv3x3x3_bn(x_rows, w, scale, bias, *, D, H, W, residual_rows=None,
                 apply_relu=True, pad_output=True, out_dtype=jnp.bfloat16):
    # x_rows: (N, (D+2)*(H+2), W*Cin) bf16 row-slab with zero D/H halo.
    # w: (3, 3, 3, Cin, Cout)  scale/bias: (Cout,)
    N, R, WCin = x_rows.shape
    P = H + 2
    assert R == (D + 2) * P
    cin = WCin // W
    cout = w.shape[-1]
    WCout = W * cout
    add_residual = residual_rows is not None

    # Fold the BN scale into the weights; only the bias add stays in the kernel epilogue.
    w_scaled = w.astype(jnp.float32) * scale.astype(jnp.float32)
    wband = _banded_weights(w_scaled, W).astype(jnp.bfloat16)        # (9, W*Cin, W*Cout)
    bias_lane = jnp.tile(bias.astype(jnp.float32), W).reshape(1, WCout)

    kernel = functools.partial(_conv_bn_kernel, D=D, H=H,
                               apply_relu=apply_relu,
                               add_residual=add_residual,
                               pad_output=pad_output)

    in_specs = [
        pl.BlockSpec((1, R, WCin), lambda n: (n, 0, 0)),             # one sample slab
        pl.BlockSpec((9, W * cin, WCout), lambda n: (0, 0, 0)),      # resident weights
        pl.BlockSpec((1, WCout), lambda n: (0, 0)),                  # resident bias
    ]
    operands = [x_rows, wband, bias_lane]
    if add_residual:
        in_specs.append(pl.BlockSpec((1, R, WCout), lambda n: (n, 0, 0)))
        operands.append(residual_rows)

    if pad_output:
        out_shape = jax.ShapeDtypeStruct((N, R, WCout), out_dtype)
        out_spec = pl.BlockSpec((1, R, WCout), lambda n: (n, 0, 0))
        out_bytes = N * R * WCout * 2
    else:
        out_shape = jax.ShapeDtypeStruct((N, D, H, WCout), out_dtype)
        out_spec = pl.BlockSpec((1, D, H, WCout), lambda n: (n, 0, 0, 0))
        out_bytes = N * D * H * WCout * 2

    Lspan = D * P - 2
    cost = pl.CostEstimate(
        flops=2 * N * 9 * Lspan * WCin * WCout,
        transcendentals=0,
        bytes_accessed=(N * R * WCin * 2                 # x slab (read once)
                        + 9 * W * cin * WCout * 2        # banded weights (fetched once)
                        + WCout * 4                      # bias
                        + out_bytes
                        + (N * R * WCout * 2 if add_residual else 0)))

    return pl.pallas_call(
        kernel,
        out_shape=out_shape,
        grid_spec=pltpu.PrefetchScalarGridSpec(
            num_scalar_prefetch=0,
            grid=(N,),
            in_specs=in_specs,
            out_specs=out_spec,
        ),
        compiler_params=pltpu.CompilerParams(
            dimension_semantics=("parallel",),
            vmem_limit_bytes=32 * 1024 * 1024),
        cost_estimate=cost,
    )(*operands)


def residual_block_forward(x_ncdhw, params):
    # Matches torch: x1 = relu(bn1(conv1(x))); x2 = relu(bn2(conv2(x1)));
    #                x3 = bn3(conv3(x2));      out = relu(x1 + x3)
    N, Cin, D, H, W = x_ncdhw.shape
    x = jnp.transpose(x_ncdhw, (0, 2, 3, 4, 1))                      # NCDHW -> NDHWC
    # One-time D/H halo pad + layout-free reshape to the row-slab layout; subsequent
    # layers receive/produce the halo'd slab directly (no inter-layer pads).
    xp = jnp.pad(x.astype(jnp.bfloat16), ((0, 0), (1, 1), (1, 1), (0, 0), (0, 0)))
    x_rows = xp.reshape(N, (D + 2) * (H + 2), W * Cin)

    (w1, s1, b1), (w2, s2, b2), (w3, s3, b3) = params
    x1 = conv3x3x3_bn(x_rows, w1, s1, b1, D=D, H=H, W=W,
                      apply_relu=True, pad_output=True)               # padded slab, bf16
    x2 = conv3x3x3_bn(x1, w2, s2, b2, D=D, H=H, W=W,
                      apply_relu=True, pad_output=True)               # padded slab, bf16
    out = conv3x3x3_bn(x2, w3, s3, b3, D=D, H=H, W=W,
                       residual_rows=x1, apply_relu=True,
                       pad_output=False)                              # (N, D, H, W*Cout)

    Cout = out.shape[-1] // W
    out = out.reshape(N, D, H, W, Cout)
    return jnp.transpose(out, (0, 4, 1, 2, 3)).astype(x_ncdhw.dtype)  # NDHWC -> NCDHW


# ---------------- pure-JAX reference (mirrors the bf16 / scale-folded numerics) ----------------

def _ref_conv_bn(x, w, scale, bias):
    wf = (w.astype(jnp.float32) * scale.astype(jnp.float32)).astype(jnp.bfloat16)
    y = lax.conv_general_dilated(
        x.astype(jnp.bfloat16), wf,
        window_strides=(1, 1, 1), padding="SAME",
        dimension_numbers=("NDHWC", "DHWIO", "NDHWC"),
        preferred_element_type=jnp.float32)
    return y + bias


def residual_block_ref(x_ncdhw, params):
    x = jnp.transpose(x_ncdhw, (0, 2, 3, 4, 1))
    (w1, s1, b1), (w2, s2, b2), (w3, s3, b3) = params
    x1 = jnp.maximum(_ref_conv_bn(x, w1, s1, b1), 0.0).astype(jnp.bfloat16)
    x2 = jnp.maximum(_ref_conv_bn(x1, w2, s2, b2), 0.0).astype(jnp.bfloat16)
    x3 = _ref_conv_bn(x2, w3, s3, b3)
    out = jnp.maximum(x1.astype(jnp.float32) + x3, 0.0).astype(jnp.bfloat16)
    return jnp.transpose(out, (0, 4, 1, 2, 3)).astype(x_ncdhw.dtype)


# ---------------- deterministic parameter init ----------------

def _init_layer(key, cin, cout, eps=1e-5):
    kw, kg, kb, km, kv = jax.random.split(key, 5)
    fan_in = cin * 27
    w = jax.random.normal(kw, (3, 3, 3, cin, cout), jnp.float32) / jnp.sqrt(fan_in)
    gamma = 1.0 + 0.1 * jax.random.normal(kg, (cout,), jnp.float32)
    beta = 0.1 * jax.random.normal(kb, (cout,), jnp.float32)
    mean = 0.1 * jax.random.normal(km, (cout,), jnp.float32)
    var = jax.random.uniform(kv, (cout,), jnp.float32, 0.5, 1.5)
    scale = gamma * lax.rsqrt(var + eps)
    bias = beta - mean * scale
    return w, scale, bias


if __name__ == "__main__":
    key = jax.random.PRNGKey(0)
    N, Cin, Cout, D, H, W = 2, 4, 8, 8, 8, 8
    kx, k1, k2, k3 = jax.random.split(key, 4)

    x_ncdhw = jax.random.normal(kx, (N, Cin, D, H, W), jnp.float32)
    params = (
        _init_layer(k1, Cin, Cout),
        _init_layer(k2, Cout, Cout),
        _init_layer(k3, Cout, Cout),
    )

    fwd = jax.jit(residual_block_forward)
    out = jax.block_until_ready(fwd(x_ncdhw, params))

    ref = jax.block_until_ready(residual_block_ref(x_ncdhw, params))
    assert out.shape == (N, Cout, D, H, W)
    if not jnp.allclose(out, ref, atol=3e-2, rtol=3e-2):
        raise AssertionError("Pallas residual_block mismatch vs JAX reference")

    print("KERNEL_OK")
</pallas_src>

<mosaic_0001>
module attributes {stable_mosaic.version = 11 : i64} {
  func.func @_conv_bn_kernel(%arg0: i32, %arg1: memref<1x100x64xbf16, #tpu.memory_space<vmem>>, %arg2: memref<9x64x64xbf16, #tpu.memory_space<vmem>>, %arg3: memref<1x64xf32, #tpu.memory_space<vmem>>, %arg4: memref<1x100x64xbf16, #tpu.memory_space<vmem>>) attributes {dimension_semantics = [#tpu.dimension_semantics<parallel>], iteration_bounds = array<i64: 2>, scalar_prefetch = 0 : i64, scratch_operands = 0 : i64, tpu.core_type = #tpu.core_type<tc>, window_params = [{transform_indices = @transform_0, window_bounds = array<i64: 1, 100, 64>}, {pipeline_mode = #tpu.pipeline_mode<synchronous>, transform_indices = @transform_1, window_bounds = array<i64: 9, 64, 64>}, {pipeline_mode = #tpu.pipeline_mode<synchronous>, transform_indices = @transform_2, window_bounds = array<i64: 1, 64>}, {transform_indices = @transform_3, window_bounds = array<i64: 1, 100, 64>}]} {
    %c0 = arith.constant 0 : index
    %c0_0 = arith.constant 0 : index
    %c0_1 = arith.constant 0 : index
    %0 = vector.load %arg1[%c0, %c0_0, %c0_1] : memref<1x100x64xbf16, #tpu.memory_space<vmem>>, vector<1x78x64xbf16>
    %1 = vector.shape_cast %0 : vector<1x78x64xbf16> to vector<78x64xbf16>
    %c0_2 = arith.constant 0 : index
    %c0_3 = arith.constant 0 : index
    %c0_4 = arith.constant 0 : index
    %2 = vector.load %arg2[%c0_2, %c0_3, %c0_4] : memref<9x64x64xbf16, #tpu.memory_space<vmem>>, vector<1x64x64xbf16>
    %3 = vector.shape_cast %2 : vector<1x64x64xbf16> to vector<64x64xbf16>
    %cst = arith.constant dense<0.000000e+00> : vector<78x64xf32>
    %4 = tpu.matmul %1, %3, %cst {dimension_numbers = #tpu.dot_dimension_numbers<[1], [0], [0], [1], [0, 0, 1, 1], [], []>} : vector<78x64xbf16>, vector<64x64xbf16>, vector<78x64xf32> -> vector<78x64xf32>
    %c0_5 = arith.constant 0 : index
    %c1 = arith.constant 1 : index
    %c0_6 = arith.constant 0 : index
    %5 = vector.load %arg1[%c0_5, %c1, %c0_6] : memref<1x100x64xbf16, #tpu.memory_space<vmem>>, vector<1x78x64xbf16>
    %6 = vector.shape_cast %5 : vector<1x78x64xbf16> to vector<78x64xbf16>
    %c1_7 = arith.constant 1 : index
    %c0_8 = arith.constant 0 : index
    %c0_9 = arith.constant 0 : index
    %7 = vector.load %arg2[%c1_7, %c0_8, %c0_9] : memref<9x64x64xbf16, #tpu.memory_space<vmem>>, vector<1x64x64xbf16>
    %8 = vector.shape_cast %7 : vector<1x64x64xbf16> to vector<64x64xbf16>
    %cst_10 = arith.constant dense<0.000000e+00> : vector<78x64xf32>
    %9 = tpu.matmul %6, %8, %cst_10 {dimension_numbers = #tpu.dot_dimension_numbers<[1], [0], [0], [1], [0, 0, 1, 1], [], []>} : vector<78x64xbf16>, vector<64x64xbf16>, vector<78x64xf32> -> vector<78x64xf32>
    %10 = arith.addf %4, %9 : vector<78x64xf32>
    %c0_11 = arith.constant 0 : index
    %c2 = arith.constant 2 : index
    %c0_12 = arith.constant 0 : index
    %11 = vector.load %arg1[%c0_11, %c2, %c0_12] : memref<1x100x64xbf16, #tpu.memory_space<vmem>>, vector<1x78x64xbf16>
    %12 = vector.shape_cast %11 : vector<1x78x64xbf16> to vector<78x64xbf16>
    %c2_13 = arith.constant 2 : index
    %c0_14 = arith.constant 0 : index
    %c0_15 = arith.constant 0 : index
    %13 = vector.load %arg2[%c2_13, %c0_14, %c0_15] : memref<9x64x64xbf16, #tpu.memory_space<vmem>>, vector<1x64x64xbf16>
    %14 = vector.shape_cast %13 : vector<1x64x64xbf16> to vector<64x64xbf16>
    %cst_16 = arith.constant dense<0.000000e+00> : vector<78x64xf32>
    %15 = tpu.matmul %12, %14, %cst_16 {dimension_numbers = #tpu.dot_dimension_numbers<[1], [0], [0], [1], [0, 0, 1, 1], [], []>} : vector<78x64xbf16>, vector<64x64xbf16>, vector<78x64xf32> -> vector<78x64xf32>
    %16 = arith.addf %10, %15 : vector<78x64xf32>
    %c0_17 = arith.constant 0 : index
    %c10 = arith.constant 10 : index
    %c0_18 = arith.constant 0 : index
    %17 = vector.load %arg1[%c0_17, %c10, %c0_18] : memref<1x100x64xbf16, #tpu.memory_space<vmem>>, vector<1x78x64xbf16>
    %18 = vector.shape_cast %17 : vector<1x78x64xbf16> to vector<78x64xbf16>
    %c3 = arith.constant 3 : index
    %c0_19 = arith.constant 0 : index
    %c0_20 = arith.constant 0 : index
    %19 = vector.load %arg2[%c3, %c0_19, %c0_20] : memref<9x64x64xbf16, #tpu.memory_space<vmem>>, vector<1x64x64xbf16>
    %20 = vector.shape_cast %19 : vector<1x64x64xbf16> to vector<64x64xbf16>
    %cst_21 = arith.constant dense<0.000000e+00> : vector<78x64xf32>
    %21 = tpu.matmul %18, %20, %cst_21 {dimension_numbers = #tpu.dot_dimension_numbers<[1], [0], [0], [1], [0, 0, 1, 1], [], []>} : vector<78x64xbf16>, vector<64x64xbf16>, vector<78x64xf32> -> vector<78x64xf32>
    %22 = arith.addf %16, %21 : vector<78x64xf32>
    %c0_22 = arith.constant 0 : index
    %c11 = arith.constant 11 : index
    %c0_23 = arith.constant 0 : index
    %23 = vector.load %arg1[%c0_22, %c11, %c0_23] : memref<1x100x64xbf16, #tpu.memory_space<vmem>>, vector<1x78x64xbf16>
    %24 = vector.shape_cast %23 : vector<1x78x64xbf16> to vector<78x64xbf16>
    %c4 = arith.constant 4 : index
    %c0_24 = arith.constant 0 : index
    %c0_25 = arith.constant 0 : index
    %25 = vector.load %arg2[%c4, %c0_24, %c0_25] : memref<9x64x64xbf16, #tpu.memory_space<vmem>>, vector<1x64x64xbf16>
    %26 = vector.shape_cast %25 : vector<1x64x64xbf16> to vector<64x64xbf16>
    %cst_26 = arith.constant dense<0.000000e+00> : vector<78x64xf32>
    %27 = tpu.matmul %24, %26, %cst_26 {dimension_numbers = #tpu.dot_dimension_numbers<[1], [0], [0], [1], [0, 0, 1, 1], [], []>} : vector<78x64xbf16>, vector<64x64xbf16>, vector<78x64xf32> -> vector<78x64xf32>
    %28 = arith.addf %22, %27 : vector<78x64xf32>
    %c0_27 = arith.constant 0 : index
    %c12 = arith.constant 12 : index
    %c0_28 = arith.constant 0 : index
    %29 = vector.load %arg1[%c0_27, %c12, %c0_28] : memref<1x100x64xbf16, #tpu.memory_space<vmem>>, vector<1x78x64xbf16>
    %30 = vector.shape_cast %29 : vector<1x78x64xbf16> to vector<78x64xbf16>
    %c5 = arith.constant 5 : index
    %c0_29 = arith.constant 0 : index
    %c0_30 = arith.constant 0 : index
    %31 = vector.load %arg2[%c5, %c0_29, %c0_30] : memref<9x64x64xbf16, #tpu.memory_space<vmem>>, vector<1x64x64xbf16>
    %32 = vector.shape_cast %31 : vector<1x64x64xbf16> to vector<64x64xbf16>
    %cst_31 = arith.constant dense<0.000000e+00> : vector<78x64xf32>
    %33 = tpu.matmul %30, %32, %cst_31 {dimension_numbers = #tpu.dot_dimension_numbers<[1], [0], [0], [1], [0, 0, 1, 1], [], []>} : vector<78x64xbf16>, vector<64x64xbf16>, vector<78x64xf32> -> vector<78x64xf32>
    %34 = arith.addf %28, %33 : vector<78x64xf32>
    %c0_32 = arith.constant 0 : index
    %c20 = arith.constant 20 : index
    %c0_33 = arith.constant 0 : index
    %35 = vector.load %arg1[%c0_32, %c20, %c0_33] : memref<1x100x64xbf16, #tpu.memory_space<vmem>>, vector<1x78x64xbf16>
    %36 = vector.shape_cast %35 : vector<1x78x64xbf16> to vector<78x64xbf16>
    %c6 = arith.constant 6 : index
    %c0_34 = arith.constant 0 : index
    %c0_35 = arith.constant 0 : index
    %37 = vector.load %arg2[%c6, %c0_34, %c0_35] : memref<9x64x64xbf16, #tpu.memory_space<vmem>>, vector<1x64x64xbf16>
    %38 = vector.shape_cast %37 : vector<1x64x64xbf16> to vector<64x64xbf16>
    %cst_36 = arith.constant dense<0.000000e+00> : vector<78x64xf32>
    %39 = tpu.matmul %36, %38, %cst_36 {dimension_numbers = #tpu.dot_dimension_numbers<[1], [0], [0], [1], [0, 0, 1, 1], [], []>} : vector<78x64xbf16>, vector<64x64xbf16>, vector<78x64xf32> -> vector<78x64xf32>
    %40 = arith.addf %34, %39 : vector<78x64xf32>
    %c0_37 = arith.constant 0 : index
    %c21 = arith.constant 21 : index
    %c0_38 = arith.constant 0 : index
    %41 = vector.load %arg1[%c0_37, %c21, %c0_38] : memref<1x100x64xbf16, #tpu.memory_space<vmem>>, vector<1x78x64xbf16>
    %42 = vector.shape_cast %41 : vector<1x78x64xbf16> to vector<78x64xbf16>
    %c7 = arith.constant 7 : index
    %c0_39 = arith.constant 0 : index
    %c0_40 = arith.constant 0 : index
    %43 = vector.load %arg2[%c7, %c0_39, %c0_40] : memref<9x64x64xbf16, #tpu.memory_space<vmem>>, vector<1x64x64xbf16>
    %44 = vector.shape_cast %43 : vector<1x64x64xbf16> to vector<64x64xbf16>
    %cst_41 = arith.constant dense<0.000000e+00> : vector<78x64xf32>
    %45 = tpu.matmul %42, %44, %cst_41 {dimension_numbers = #tpu.dot_dimension_numbers<[1], [0], [0], [1], [0, 0, 1, 1], [], []>} : vector<78x64xbf16>, vector<64x64xbf16>, vector<78x64xf32> -> vector<78x64xf32>
    %46 = arith.addf %40, %45 : vector<78x64xf32>
    %c0_42 = arith.constant 0 : index
    %c22 = arith.constant 22 : index
    %c0_43 = arith.constant 0 : index
    %47 = vector.load %arg1[%c0_42, %c22, %c0_43] : memref<1x100x64xbf16, #tpu.memory_space<vmem>>, vector<1x78x64xbf16>
    %48 = vector.shape_cast %47 : vector<1x78x64xbf16> to vector<78x64xbf16>
    %c8 = arith.constant 8 : index
    %c0_44 = arith.constant 0 : index
    %c0_45 = arith.constant 0 : index
    %49 = vector.load %arg2[%c8, %c0_44, %c0_45] : memref<9x64x64xbf16, #tpu.memory_space<vmem>>, vector<1x64x64xbf16>
    %50 = vector.shape_cast %49 : vector<1x64x64xbf16> to vector<64x64xbf16>
    %cst_46 = arith.constant dense<0.000000e+00> : vector<78x64xf32>
    %51 = tpu.matmul %48, %50, %cst_46 {dimension_numbers = #tpu.dot_dimension_numbers<[1], [0], [0], [1], [0, 0, 1, 1], [], []>} : vector<78x64xbf16>, vector<64x64xbf16>, vector<78x64xf32> -> vector<78x64xf32>
    %52 = arith.addf %46, %51 : vector<78x64xf32>
    %c0_47 = arith.constant 0 : index
    %c0_48 = arith.constant 0 : index
    %53 = vector.load %arg3[%c0_47, %c0_48] : memref<1x64xf32, #tpu.memory_space<vmem>>, vector<1x64xf32>
    %cst_49 = arith.constant 0.000000e+00 : bf16
    %54 = vector.broadcast %cst_49 : bf16 to vector<1x100x64xbf16>
    %c0_50 = arith.constant 0 : index
    %c0_51 = arith.constant 0 : index
    %c0_52 = arith.constant 0 : index
    %55 = vector.load %arg4[%c0_50, %c0_51, %c0_52] : memref<1x100x64xbf16, #tpu.memory_space<vmem>>, vector<1x100x64xbf16>
    tpu.vector_store %arg4[%c0_50, %c0_51, %c0_52], %54 {strides = array<i32>} : memref<1x100x64xbf16, #tpu.memory_space<vmem>>, vector<1x100x64xbf16>,
    %56 = vector.extract_strided_slice %52 {offsets = [0, 0], sizes = [8, 64], strides = [1, 1]} : vector<78x64xf32> to vector<8x64xf32>
    %57 = vector.broadcast %53 : vector<1x64xf32> to vector<8x64xf32>
    %58 = arith.addf %56, %57 : vector<8x64xf32>
    %cst_53 = arith.constant 0.000000e+00 : f32
    %59 = vector.broadcast %cst_53 : f32 to vector<8x64xf32>
    %60 = arith.maximumf %58, %59 : vector<8x64xf32>
    %61 = arith.truncf %60 : vector<8x64xf32> to vector<8x64xbf16>
    %c0_54 = arith.constant 0 : index
    %c11_55 = arith.constant 11 : index
    %c0_56 = arith.constant 0 : index
    %62 = vector.load %arg4[%c0_54, %c11_55, %c0_56] : memref<1x100x64xbf16, #tpu.memory_space<vmem>>, vector<1x8x64xbf16>
    %63 = vector.shape_cast %62 : vector<1x8x64xbf16> to vector<8x64xbf16>
    %64 = vector.shape_cast %61 : vector<8x64xbf16> to vector<1x8x64xbf16>
    tpu.vector_store %arg4[%c0_54, %c11_55, %c0_56], %64 {strides = array<i32>} : memref<1x100x64xbf16, #tpu.memory_space<vmem>>, vector<1x8x64xbf16>,
    %65 = vector.extract_strided_slice %52 {offsets = [10, 0], sizes = [8, 64], strides = [1, 1]} : vector<78x64xf32> to vector<8x64xf32>
    %66 = vector.broadcast %53 : vector<1x64xf32> to vector<8x64xf32>
    %67 = arith.addf %65, %66 : vector<8x64xf32>
    %cst_57 = arith.constant 0.000000e+00 : f32
    %68 = vector.broadcast %cst_57 : f32 to vector<8x64xf32>
    %69 = arith.maximumf %67, %68 : vector<8x64xf32>
    %70 = arith.truncf %69 : vector<8x64xf32> to vector<8x64xbf16>
    %c0_58 = arith.constant 0 : index
    %c21_59 = arith.constant 21 : index
    %c0_60 = arith.constant 0 : index
    %71 = vector.load %arg4[%c0_58, %c21_59, %c0_60] : memref<1x100x64xbf16, #tpu.memory_space<vmem>>, vector<1x8x64xbf16>
    %72 = vector.shape_cast %71 : vector<1x8x64xbf16> to vector<8x64xbf16>
    %73 = vector.shape_cast %70 : vector<8x64xbf16> to vector<1x8x64xbf16>
    tpu.vector_store %arg4[%c0_58, %c21_59, %c0_60], %73 {strides = array<i32>} : memref<1x100x64xbf16, #tpu.memory_space<vmem>>, vector<1x8x64xbf16>,
    %74 = vector.extract_strided_slice %52 {offsets = [20, 0], sizes = [8, 64], strides = [1, 1]} : vector<78x64xf32> to vector<8x64xf32>
    %75 = vector.broadcast %53 : vector<1x64xf32> to vector<8x64xf32>
    %76 = arith.addf %74, %75 : vector<8x64xf32>
    %cst_61 = arith.constant 0.000000e+00 : f32
    %77 = vector.broadcast %cst_61 : f32 to vector<8x64xf32>
    %78 = arith.maximumf %76, %77 : vector<8x64xf32>
    %79 = arith.truncf %78 : vector<8x64xf32> to vector<8x64xbf16>
    %c0_62 = arith.constant 0 : index
    %c31 = arith.constant 31 : index
    %c0_63 = arith.constant 0 : index
    %80 = vector.load %arg4[%c0_62, %c31, %c0_63] : memref<1x100x64xbf16, #tpu.memory_space<vmem>>, vector<1x8x64xbf16>
    %81 = vector.shape_cast %80 : vector<1x8x64xbf16> to vector<8x64xbf16>
    %82 = vector.shape_cast %79 : vector<8x64xbf16> to vector<1x8x64xbf16>
    tpu.vector_store %arg4[%c0_62, %c31, %c0_63], %82 {strides = array<i32>} : memref<1x100x64xbf16, #tpu.memory_space<vmem>>, vector<1x8x64xbf16>,
    %83 = vector.extract_strided_slice %52 {offsets = [30, 0], sizes = [8, 64], strides = [1, 1]} : vector<78x64xf32> to vector<8x64xf32>
    %84 = vector.broadcast %53 : vector<1x64xf32> to vector<8x64xf32>
    %85 = arith.addf %83, %84 : vector<8x64xf32>
    %cst_64 = arith.constant 0.000000e+00 : f32
    %86 = vector.broadcast %cst_64 : f32 to vector<8x64xf32>
    %87 = arith.maximumf %85, %86 : vector<8x64xf32>
    %88 = arith.truncf %87 : vector<8x64xf32> to vector<8x64xbf16>
    %c0_65 = arith.constant 0 : index
    %c41 = arith.constant 41 : index
    %c0_66 = arith.constant 0 : index
    %89 = vector.load %arg4[%c0_65, %c41, %c0_66] : memref<1x100x64xbf16, #tpu.memory_space<vmem>>, vector<1x8x64xbf16>
    %90 = vector.shape_cast %89 : vector<1x8x64xbf16> to vector<8x64xbf16>
    %91 = vector.shape_cast %88 : vector<8x64xbf16> to vector<1x8x64xbf16>
    tpu.vector_store %arg4[%c0_65, %c41, %c0_66], %91 {strides = array<i32>} : memref<1x100x64xbf16, #tpu.memory_space<vmem>>, vector<1x8x64xbf16>,
    %92 = vector.extract_strided_slice %52 {offsets = [40, 0], sizes = [8, 64], strides = [1, 1]} : vector<78x64xf32> to vector<8x64xf32>
    %93 = vector.broadcast %53 : vector<1x64xf32> to vector<8x64xf32>
    %94 = arith.addf %92, %93 : vector<8x64xf32>
    %cst_67 = arith.constant 0.000000e+00 : f32
    %95 = vector.broadcast %cst_67 : f32 to vector<8x64xf32>
    %96 = arith.maximumf %94, %95 : vector<8x64xf32>
    %97 = arith.truncf %96 : vector<8x64xf32> to vector<8x64xbf16>
    %c0_68 = arith.constant 0 : index
    %c51 = arith.constant 51 : index
    %c0_69 = arith.constant 0 : index
    %98 = vector.load %arg4[%c0_68, %c51, %c0_69] : memref<1x100x64xbf16, #tpu.memory_space<vmem>>, vector<1x8x64xbf16>
    %99 = vector.shape_cast %98 : vector<1x8x64xbf16> to vector<8x64xbf16>
    %100 = vector.shape_cast %97 : vector<8x64xbf16> to vector<1x8x64xbf16>
    tpu.vector_store %arg4[%c0_68, %c51, %c0_69], %100 {strides = array<i32>} : memref<1x100x64xbf16, #tpu.memory_space<vmem>>, vector<1x8x64xbf16>,
    %101 = vector.extract_strided_slice %52 {offsets = [50, 0], sizes = [8, 64], strides = [1, 1]} : vector<78x64xf32> to vector<8x64xf32>
    %102 = vector.broadcast %53 : vector<1x64xf32> to vector<8x64xf32>
    %103 = arith.addf %101, %102 : vector<8x64xf32>
    %cst_70 = arith.constant 0.000000e+00 : f32
    %104 = vector.broadcast %cst_70 : f32 to vector<8x64xf32>
    %105 = arith.maximumf %103, %104 : vector<8x64xf32>
    %106 = arith.truncf %105 : vector<8x64xf32> to vector<8x64xbf16>
    %c0_71 = arith.constant 0 : index
    %c61 = arith.constant 61 : index
    %c0_72 = arith.constant 0 : index
    %107 = vector.load %arg4[%c0_71, %c61, %c0_72] : memref<1x100x64xbf16, #tpu.memory_space<vmem>>, vector<1x8x64xbf16>
    %108 = vector.shape_cast %107 : vector<1x8x64xbf16> to vector<8x64xbf16>
    %109 = vector.shape_cast %106 : vector<8x64xbf16> to vector<1x8x64xbf16>
    tpu.vector_store %arg4[%c0_71, %c61, %c0_72], %109 {strides = array<i32>} : memref<1x100x64xbf16, #tpu.memory_space<vmem>>, vector<1x8x64xbf16>,
    %110 = vector.extract_strided_slice %52 {offsets = [60, 0], sizes = [8, 64], strides = [1, 1]} : vector<78x64xf32> to vector<8x64xf32>
    %111 = vector.broadcast %53 : vector<1x64xf32> to vector<8x64xf32>
    %112 = arith.addf %110, %111 : vector<8x64xf32>
    %cst_73 = arith.constant 0.000000e+00 : f32
    %113 = vector.broadcast %cst_73 : f32 to vector<8x64xf32>
    %114 = arith.maximumf %112, %113 : vector<8x64xf32>
    %115 = arith.truncf %114 : vector<8x64xf32> to vector<8x64xbf16>
    %c0_74 = arith.constant 0 : index
    %c71 = arith.constant 71 : index
    %c0_75 = arith.constant 0 : index
    %116 = vector.load %arg4[%c0_74, %c71, %c0_75] : memref<1x100x64xbf16, #tpu.memory_space<vmem>>, vector<1x8x64xbf16>
    %117 = vector.shape_cast %116 : vector<1x8x64xbf16> to vector<8x64xbf16>
    %118 = vector.shape_cast %115 : vector<8x64xbf16> to vector<1x8x64xbf16>
    tpu.vector_store %arg4[%c0_74, %c71, %c0_75], %118 {strides = array<i32>} : memref<1x100x64xbf16, #tpu.memory_space<vmem>>, vector<1x8x64xbf16>,
    %119 = vector.extract_strided_slice %52 {offsets = [70, 0], sizes = [8, 64], strides = [1, 1]} : vector<78x64xf32> to vector<8x64xf32>
    %120 = vector.broadcast %53 : vector<1x64xf32> to vector<8x64xf32>
    %121 = arith.addf %119, %120 : vector<8x64xf32>
    %cst_76 = arith.constant 0.000000e+00 : f32
    %122 = vector.broadcast %cst_76 : f32 to vector<8x64xf32>
    %123 = arith.maximumf %121, %122 : vector<8x64xf32>
    %124 = arith.truncf %123 : vector<8x64xf32> to vector<8x64xbf16>
    %c0_77 = arith.constant 0 : index
    %c81 = arith.constant 81 : index
    %c0_78 = arith.constant 0 : index
    %125 = vector.load %arg4[%c0_77, %c81, %c0_78] : memref<1x100x64xbf16, #tpu.memory_space<vmem>>, vector<1x8x64xbf16>
    %126 = vector.shape_cast %125 : vector<1x8x64xbf16> to vector<8x64xbf16>
    %127 = vector.shape_cast %124 : vector<8x64xbf16> to vector<1x8x64xbf16>
    tpu.vector_store %arg4[%c0_77, %c81, %c0_78], %127 {strides = array<i32>} : memref<1x100x64xbf16, #tpu.memory_space<vmem>>, vector<1x8x64xbf16>,
    return
  }
  func.func @transform_0(%arg0: i32) -> (i32, i32, i32) {
    %c0_i32 = arith.constant 0 : i32
    %c0_i32_0 = arith.constant 0 : i32
    %c0_i32_1 = arith.constant 0 : i32
    return %arg0, %c0_i32, %c0_i32_0 : i32, i32, i32
  }
  func.func @transform_1(%arg0: i32) -> (i32, i32, i32) {
    %c0_i32 = arith.constant 0 : i32
    %c0_i32_0 = arith.constant 0 : i32
    %c0_i32_1 = arith.constant 0 : i32
    %c0_i32_2 = arith.constant 0 : i32
    return %c0_i32, %c0_i32_0, %c0_i32_1 : i32, i32, i32
  }
  func.func @transform_2(%arg0: i32) -> (i32, i32) {
    %c0_i32 = arith.constant 0 : i32
    %c0_i32_0 = arith.constant 0 : i32
    %c0_i32_1 = arith.constant 0 : i32
    return %c0_i32, %c0_i32_0 : i32, i32
  }
  func.func @transform_3(%arg0: i32) -> (i32, i32, i32) {
    %c0_i32 = arith.constant 0 : i32
    %c0_i32_0 = arith.constant 0 : i32
    %c0_i32_1 = arith.constant 0 : i32
    return %arg0, %c0_i32, %c0_i32_0 : i32, i32, i32
  }
}

module attributes {stable_mosaic.version = 11 : i64} {
  func.func @_conv_bn_kernel(%arg0: i32, %arg1: memref<1x100x32xbf16, #tpu.memory_space<vmem>>, %arg2: memref<9x32x64xbf16, #tpu.memory_space<vmem>>, %arg3: memref<1x64xf32, #tpu.memory_space<vmem>>, %arg4: memref<1x100x64xbf16, #tpu.memory_space<vmem>>) attributes {dimension_semantics = [#tpu.dimension_semantics<parallel>], iteration_bounds = array<i64: 2>, scalar_prefetch = 0 : i64, scratch_operands = 0 : i64, tpu.core_type = #tpu.core_type<tc>, window_params = [{transform_indices = @transform_0, window_bounds = array<i64: 1, 100, 32>}, {pipeline_mode = #tpu.pipeline_mode<synchronous>, transform_indices = @transform_1, window_bounds = array<i64: 9, 32, 64>}, {pipeline_mode = #tpu.pipeline_mode<synchronous>, transform_indices = @transform_2, window_bounds = array<i64: 1, 64>}, {transform_indices = @transform_3, window_bounds = array<i64: 1, 100, 64>}]} {
    %c0 = arith.constant 0 : index
    %c0_0 = arith.constant 0 : index
    %c0_1 = arith.constant 0 : index
    %0 = vector.load %arg1[%c0, %c0_0, %c0_1] : memref<1x100x32xbf16, #tpu.memory_space<vmem>>, vector<1x78x32xbf16>
    %1 = vector.shape_cast %0 : vector<1x78x32xbf16> to vector<78x32xbf16>
    %c0_2 = arith.constant 0 : index
    %c0_3 = arith.constant 0 : index
    %c0_4 = arith.constant 0 : index
    %2 = vector.load %arg2[%c0_2, %c0_3, %c0_4] : memref<9x32x64xbf16, #tpu.memory_space<vmem>>, vector<1x32x64xbf16>
    %3 = vector.shape_cast %2 : vector<1x32x64xbf16> to vector<32x64xbf16>
    %cst = arith.constant dense<0.000000e+00> : vector<78x64xf32>
    %4 = tpu.matmul %1, %3, %cst {dimension_numbers = #tpu.dot_dimension_numbers<[1], [0], [0], [1], [0, 0, 1, 1], [], []>} : vector<78x32xbf16>, vector<32x64xbf16>, vector<78x64xf32> -> vector<78x64xf32>
    %c0_5 = arith.constant 0 : index
    %c1 = arith.constant 1 : index
    %c0_6 = arith.constant 0 : index
    %5 = vector.load %arg1[%c0_5, %c1, %c0_6] : memref<1x100x32xbf16, #tpu.memory_space<vmem>>, vector<1x78x32xbf16>
    %6 = vector.shape_cast %5 : vector<1x78x32xbf16> to vector<78x32xbf16>
    %c1_7 = arith.constant 1 : index
    %c0_8 = arith.constant 0 : index
    %c0_9 = arith.constant 0 : index
    %7 = vector.load %arg2[%c1_7, %c0_8, %c0_9] : memref<9x32x64xbf16, #tpu.memory_space<vmem>>, vector<1x32x64xbf16>
    %8 = vector.shape_cast %7 : vector<1x32x64xbf16> to vector<32x64xbf16>
    %cst_10 = arith.constant dense<0.000000e+00> : vector<78x64xf32>
    %9 = tpu.matmul %6, %8, %cst_10 {dimension_numbers = #tpu.dot_dimension_numbers<[1], [0], [0], [1], [0, 0, 1, 1], [], []>} : vector<78x32xbf16>, vector<32x64xbf16>, vector<78x64xf32> -> vector<78x64xf32>
    %10 = arith.addf %4, %9 : vector<78x64xf32>
    %c0_11 = arith.constant 0 : index
    %c2 = arith.constant 2 : index
    %c0_12 = arith.constant 0 : index
    %11 = vector.load %arg1[%c0_11, %c2, %c0_12] : memref<1x100x32xbf16, #tpu.memory_space<vmem>>, vector<1x78x32xbf16>
    %12 = vector.shape_cast %11 : vector<1x78x32xbf16> to vector<78x32xbf16>
    %c2_13 = arith.constant 2 : index
    %c0_14 = arith.constant 0 : index
    %c0_15 = arith.constant 0 : index
    %13 = vector.load %arg2[%c2_13, %c0_14, %c0_15] : memref<9x32x64xbf16, #tpu.memory_space<vmem>>, vector<1x32x64xbf16>
    %14 = vector.shape_cast %13 : vector<1x32x64xbf16> to vector<32x64xbf16>
    %cst_16 = arith.constant dense<0.000000e+00> : vector<78x64xf32>
    %15 = tpu.matmul %12, %14, %cst_16 {dimension_numbers = #tpu.dot_dimension_numbers<[1], [0], [0], [1], [0, 0, 1, 1], [], []>} : vector<78x32xbf16>, vector<32x64xbf16>, vector<78x64xf32> -> vector<78x64xf32>
    %16 = arith.addf %10, %15 : vector<78x64xf32>
    %c0_17 = arith.constant 0 : index
    %c10 = arith.constant 10 : index
    %c0_18 = arith.constant 0 : index
    %17 = vector.load %arg1[%c0_17, %c10, %c0_18] : memref<1x100x32xbf16, #tpu.memory_space<vmem>>, vector<1x78x32xbf16>
    %18 = vector.shape_cast %17 : vector<1x78x32xbf16> to vector<78x32xbf16>
    %c3 = arith.constant 3 : index
    %c0_19 = arith.constant 0 : index
    %c0_20 = arith.constant 0 : index
    %19 = vector.load %arg2[%c3, %c0_19, %c0_20] : memref<9x32x64xbf16, #tpu.memory_space<vmem>>, vector<1x32x64xbf16>
    %20 = vector.shape_cast %19 : vector<1x32x64xbf16> to vector<32x64xbf16>
    %cst_21 = arith.constant dense<0.000000e+00> : vector<78x64xf32>
    %21 = tpu.matmul %18, %20, %cst_21 {dimension_numbers = #tpu.dot_dimension_numbers<[1], [0], [0], [1], [0, 0, 1, 1], [], []>} : vector<78x32xbf16>, vector<32x64xbf16>, vector<78x64xf32> -> vector<78x64xf32>
    %22 = arith.addf %16, %21 : vector<78x64xf32>
    %c0_22 = arith.constant 0 : index
    %c11 = arith.constant 11 : index
    %c0_23 = arith.constant 0 : index
    %23 = vector.load %arg1[%c0_22, %c11, %c0_23] : memref<1x100x32xbf16, #tpu.memory_space<vmem>>, vector<1x78x32xbf16>
    %24 = vector.shape_cast %23 : vector<1x78x32xbf16> to vector<78x32xbf16>
    %c4 = arith.constant 4 : index
    %c0_24 = arith.constant 0 : index
    %c0_25 = arith.constant 0 : index
    %25 = vector.load %arg2[%c4, %c0_24, %c0_25] : memref<9x32x64xbf16, #tpu.memory_space<vmem>>, vector<1x32x64xbf16>
    %26 = vector.shape_cast %25 : vector<1x32x64xbf16> to vector<32x64xbf16>
    %cst_26 = arith.constant dense<0.000000e+00> : vector<78x64xf32>
    %27 = tpu.matmul %24, %26, %cst_26 {dimension_numbers = #tpu.dot_dimension_numbers<[1], [0], [0], [1], [0, 0, 1, 1], [], []>} : vector<78x32xbf16>, vector<32x64xbf16>, vector<78x64xf32> -> vector<78x64xf32>
    %28 = arith.addf %22, %27 : vector<78x64xf32>
    %c0_27 = arith.constant 0 : index
    %c12 = arith.constant 12 : index
    %c0_28 = arith.constant 0 : index
    %29 = vector.load %arg1[%c0_27, %c12, %c0_28] : memref<1x100x32xbf16, #tpu.memory_space<vmem>>, vector<1x78x32xbf16>
    %30 = vector.shape_cast %29 : vector<1x78x32xbf16> to vector<78x32xbf16>
    %c5 = arith.constant 5 : index
    %c0_29 = arith.constant 0 : index
    %c0_30 = arith.constant 0 : index
    %31 = vector.load %arg2[%c5, %c0_29, %c0_30] : memref<9x32x64xbf16, #tpu.memory_space<vmem>>, vector<1x32x64xbf16>
    %32 = vector.shape_cast %31 : vector<1x32x64xbf16> to vector<32x64xbf16>
    %cst_31 = arith.constant dense<0.000000e+00> : vector<78x64xf32>
    %33 = tpu.matmul %30, %32, %cst_31 {dimension_numbers = #tpu.dot_dimension_numbers<[1], [0], [0], [1], [0, 0, 1, 1], [], []>} : vector<78x32xbf16>, vector<32x64xbf16>, vector<78x64xf32> -> vector<78x64xf32>
    %34 = arith.addf %28, %33 : vector<78x64xf32>
    %c0_32 = arith.constant 0 : index
    %c20 = arith.constant 20 : index
    %c0_33 = arith.constant 0 : index
    %35 = vector.load %arg1[%c0_32, %c20, %c0_33] : memref<1x100x32xbf16, #tpu.memory_space<vmem>>, vector<1x78x32xbf16>
    %36 = vector.shape_cast %35 : vector<1x78x32xbf16> to vector<78x32xbf16>
    %c6 = arith.constant 6 : index
    %c0_34 = arith.constant 0 : index
    %c0_35 = arith.constant 0 : index
    %37 = vector.load %arg2[%c6, %c0_34, %c0_35] : memref<9x32x64xbf16, #tpu.memory_space<vmem>>, vector<1x32x64xbf16>
    %38 = vector.shape_cast %37 : vector<1x32x64xbf16> to vector<32x64xbf16>
    %cst_36 = arith.constant dense<0.000000e+00> : vector<78x64xf32>
    %39 = tpu.matmul %36, %38, %cst_36 {dimension_numbers = #tpu.dot_dimension_numbers<[1], [0], [0], [1], [0, 0, 1, 1], [], []>} : vector<78x32xbf16>, vector<32x64xbf16>, vector<78x64xf32> -> vector<78x64xf32>
    %40 = arith.addf %34, %39 : vector<78x64xf32>
    %c0_37 = arith.constant 0 : index
    %c21 = arith.constant 21 : index
    %c0_38 = arith.constant 0 : index
    %41 = vector.load %arg1[%c0_37, %c21, %c0_38] : memref<1x100x32xbf16, #tpu.memory_space<vmem>>, vector<1x78x32xbf16>
    %42 = vector.shape_cast %41 : vector<1x78x32xbf16> to vector<78x32xbf16>
    %c7 = arith.constant 7 : index
    %c0_39 = arith.constant 0 : index
    %c0_40 = arith.constant 0 : index
    %43 = vector.load %arg2[%c7, %c0_39, %c0_40] : memref<9x32x64xbf16, #tpu.memory_space<vmem>>, vector<1x32x64xbf16>
    %44 = vector.shape_cast %43 : vector<1x32x64xbf16> to vector<32x64xbf16>
    %cst_41 = arith.constant dense<0.000000e+00> : vector<78x64xf32>
    %45 = tpu.matmul %42, %44, %cst_41 {dimension_numbers = #tpu.dot_dimension_numbers<[1], [0], [0], [1], [0, 0, 1, 1], [], []>} : vector<78x32xbf16>, vector<32x64xbf16>, vector<78x64xf32> -> vector<78x64xf32>
    %46 = arith.addf %40, %45 : vector<78x64xf32>
    %c0_42 = arith.constant 0 : index
    %c22 = arith.constant 22 : index
    %c0_43 = arith.constant 0 : index
    %47 = vector.load %arg1[%c0_42, %c22, %c0_43] : memref<1x100x32xbf16, #tpu.memory_space<vmem>>, vector<1x78x32xbf16>
    %48 = vector.shape_cast %47 : vector<1x78x32xbf16> to vector<78x32xbf16>
    %c8 = arith.constant 8 : index
    %c0_44 = arith.constant 0 : index
    %c0_45 = arith.constant 0 : index
    %49 = vector.load %arg2[%c8, %c0_44, %c0_45] : memref<9x32x64xbf16, #tpu.memory_space<vmem>>, vector<1x32x64xbf16>
    %50 = vector.shape_cast %49 : vector<1x32x64xbf16> to vector<32x64xbf16>
    %cst_46 = arith.constant dense<0.000000e+00> : vector<78x64xf32>
    %51 = tpu.matmul %48, %50, %cst_46 {dimension_numbers = #tpu.dot_dimension_numbers<[1], [0], [0], [1], [0, 0, 1, 1], [], []>} : vector<78x32xbf16>, vector<32x64xbf16>, vector<78x64xf32> -> vector<78x64xf32>
    %52 = arith.addf %46, %51 : vector<78x64xf32>
    %c0_47 = arith.constant 0 : index
    %c0_48 = arith.constant 0 : index
    %53 = vector.load %arg3[%c0_47, %c0_48] : memref<1x64xf32, #tpu.memory_space<vmem>>, vector<1x64xf32>
    %cst_49 = arith.constant 0.000000e+00 : bf16
    %54 = vector.broadcast %cst_49 : bf16 to vector<1x100x64xbf16>
    %c0_50 = arith.constant 0 : index
    %c0_51 = arith.constant 0 : index
    %c0_52 = arith.constant 0 : index
    %55 = vector.load %arg4[%c0_50, %c0_51, %c0_52] : memref<1x100x64xbf16, #tpu.memory_space<vmem>>, vector<1x100x64xbf16>
    tpu.vector_store %arg4[%c0_50, %c0_51, %c0_52], %54 {strides = array<i32>} : memref<1x100x64xbf16, #tpu.memory_space<vmem>>, vector<1x100x64xbf16>,
    %56 = vector.extract_strided_slice %52 {offsets = [0, 0], sizes = [8, 64], strides = [1, 1]} : vector<78x64xf32> to vector<8x64xf32>
    %57 = vector.broadcast %53 : vector<1x64xf32> to vector<8x64xf32>
    %58 = arith.addf %56, %57 : vector<8x64xf32>
    %cst_53 = arith.constant 0.000000e+00 : f32
    %59 = vector.broadcast %cst_53 : f32 to vector<8x64xf32>
    %60 = arith.maximumf %58, %59 : vector<8x64xf32>
    %61 = arith.truncf %60 : vector<8x64xf32> to vector<8x64xbf16>
    %c0_54 = arith.constant 0 : index
    %c11_55 = arith.constant 11 : index
    %c0_56 = arith.constant 0 : index
    %62 = vector.load %arg4[%c0_54, %c11_55, %c0_56] : memref<1x100x64xbf16, #tpu.memory_space<vmem>>, vector<1x8x64xbf16>
    %63 = vector.shape_cast %62 : vector<1x8x64xbf16> to vector<8x64xbf16>
    %64 = vector.shape_cast %61 : vector<8x64xbf16> to vector<1x8x64xbf16>
    tpu.vector_store %arg4[%c0_54, %c11_55, %c0_56], %64 {strides = array<i32>} : memref<1x100x64xbf16, #tpu.memory_space<vmem>>, vector<1x8x64xbf16>,
    %65 = vector.extract_strided_slice %52 {offsets = [10, 0], sizes = [8, 64], strides = [1, 1]} : vector<78x64xf32> to vector<8x64xf32>
    %66 = vector.broadcast %53 : vector<1x64xf32> to vector<8x64xf32>
    %67 = arith.addf %65, %66 : vector<8x64xf32>
    %cst_57 = arith.constant 0.000000e+00 : f32
    %68 = vector.broadcast %cst_57 : f32 to vector<8x64xf32>
    %69 = arith.maximumf %67, %68 : vector<8x64xf32>
    %70 = arith.truncf %69 : vector<8x64xf32> to vector<8x64xbf16>
    %c0_58 = arith.constant 0 : index
    %c21_59 = arith.constant 21 : index
    %c0_60 = arith.constant 0 : index
    %71 = vector.load %arg4[%c0_58, %c21_59, %c0_60] : memref<1x100x64xbf16, #tpu.memory_space<vmem>>, vector<1x8x64xbf16>
    %72 = vector.shape_cast %71 : vector<1x8x64xbf16> to vector<8x64xbf16>
    %73 = vector.shape_cast %70 : vector<8x64xbf16> to vector<1x8x64xbf16>
    tpu.vector_store %arg4[%c0_58, %c21_59, %c0_60], %73 {strides = array<i32>} : memref<1x100x64xbf16, #tpu.memory_space<vmem>>, vector<1x8x64xbf16>,
    %74 = vector.extract_strided_slice %52 {offsets = [20, 0], sizes = [8, 64], strides = [1, 1]} : vector<78x64xf32> to vector<8x64xf32>
    %75 = vector.broadcast %53 : vector<1x64xf32> to vector<8x64xf32>
    %76 = arith.addf %74, %75 : vector<8x64xf32>
    %cst_61 = arith.constant 0.000000e+00 : f32
    %77 = vector.broadcast %cst_61 : f32 to vector<8x64xf32>
    %78 = arith.maximumf %76, %77 : vector<8x64xf32>
    %79 = arith.truncf %78 : vector<8x64xf32> to vector<8x64xbf16>
    %c0_62 = arith.constant 0 : index
    %c31 = arith.constant 31 : index
    %c0_63 = arith.constant 0 : index
    %80 = vector.load %arg4[%c0_62, %c31, %c0_63] : memref<1x100x64xbf16, #tpu.memory_space<vmem>>, vector<1x8x64xbf16>
    %81 = vector.shape_cast %80 : vector<1x8x64xbf16> to vector<8x64xbf16>
    %82 = vector.shape_cast %79 : vector<8x64xbf16> to vector<1x8x64xbf16>
    tpu.vector_store %arg4[%c0_62, %c31, %c0_63], %82 {strides = array<i32>} : memref<1x100x64xbf16, #tpu.memory_space<vmem>>, vector<1x8x64xbf16>,
    %83 = vector.extract_strided_slice %52 {offsets = [30, 0], sizes = [8, 64], strides = [1, 1]} : vector<78x64xf32> to vector<8x64xf32>
    %84 = vector.broadcast %53 : vector<1x64xf32> to vector<8x64xf32>
    %85 = arith.addf %83, %84 : vector<8x64xf32>
    %cst_64 = arith.constant 0.000000e+00 : f32
    %86 = vector.broadcast %cst_64 : f32 to vector<8x64xf32>
    %87 = arith.maximumf %85, %86 : vector<8x64xf32>
    %88 = arith.truncf %87 : vector<8x64xf32> to vector<8x64xbf16>
    %c0_65 = arith.constant 0 : index
    %c41 = arith.constant 41 : index
    %c0_66 = arith.constant 0 : index
    %89 = vector.load %arg4[%c0_65, %c41, %c0_66] : memref<1x100x64xbf16, #tpu.memory_space<vmem>>, vector<1x8x64xbf16>
    %90 = vector.shape_cast %89 : vector<1x8x64xbf16> to vector<8x64xbf16>
    %91 = vector.shape_cast %88 : vector<8x64xbf16> to vector<1x8x64xbf16>
    tpu.vector_store %arg4[%c0_65, %c41, %c0_66], %91 {strides = array<i32>} : memref<1x100x64xbf16, #tpu.memory_space<vmem>>, vector<1x8x64xbf16>,
    %92 = vector.extract_strided_slice %52 {offsets = [40, 0], sizes = [8, 64], strides = [1, 1]} : vector<78x64xf32> to vector<8x64xf32>
    %93 = vector.broadcast %53 : vector<1x64xf32> to vector<8x64xf32>
    %94 = arith.addf %92, %93 : vector<8x64xf32>
    %cst_67 = arith.constant 0.000000e+00 : f32
    %95 = vector.broadcast %cst_67 : f32 to vector<8x64xf32>
    %96 = arith.maximumf %94, %95 : vector<8x64xf32>
    %97 = arith.truncf %96 : vector<8x64xf32> to vector<8x64xbf16>
    %c0_68 = arith.constant 0 : index
    %c51 = arith.constant 51 : index
    %c0_69 = arith.constant 0 : index
    %98 = vector.load %arg4[%c0_68, %c51, %c0_69] : memref<1x100x64xbf16, #tpu.memory_space<vmem>>, vector<1x8x64xbf16>
    %99 = vector.shape_cast %98 : vector<1x8x64xbf16> to vector<8x64xbf16>
    %100 = vector.shape_cast %97 : vector<8x64xbf16> to vector<1x8x64xbf16>
    tpu.vector_store %arg4[%c0_68, %c51, %c0_69], %100 {strides = array<i32>} : memref<1x100x64xbf16, #tpu.memory_space<vmem>>, vector<1x8x64xbf16>,
    %101 = vector.extract_strided_slice %52 {offsets = [50, 0], sizes = [8, 64], strides = [1, 1]} : vector<78x64xf32> to vector<8x64xf32>
    %102 = vector.broadcast %53 : vector<1x64xf32> to vector<8x64xf32>
    %103 = arith.addf %101, %102 : vector<8x64xf32>
    %cst_70 = arith.constant 0.000000e+00 : f32
    %104 = vector.broadcast %cst_70 : f32 to vector<8x64xf32>
    %105 = arith.maximumf %103, %104 : vector<8x64xf32>
    %106 = arith.truncf %105 : vector<8x64xf32> to vector<8x64xbf16>
    %c0_71 = arith.constant 0 : index
    %c61 = arith.constant 61 : index
    %c0_72 = arith.constant 0 : index
    %107 = vector.load %arg4[%c0_71, %c61, %c0_72] : memref<1x100x64xbf16, #tpu.memory_space<vmem>>, vector<1x8x64xbf16>
    %108 = vector.shape_cast %107 : vector<1x8x64xbf16> to vector<8x64xbf16>
    %109 = vector.shape_cast %106 : vector<8x64xbf16> to vector<1x8x64xbf16>
    tpu.vector_store %arg4[%c0_71, %c61, %c0_72], %109 {strides = array<i32>} : memref<1x100x64xbf16, #tpu.memory_space<vmem>>, vector<1x8x64xbf16>,
    %110 = vector.extract_strided_slice %52 {offsets = [60, 0], sizes = [8, 64], strides = [1, 1]} : vector<78x64xf32> to vector<8x64xf32>
    %111 = vector.broadcast %53 : vector<1x64xf32> to vector<8x64xf32>
    %112 = arith.addf %110, %111 : vector<8x64xf32>
    %cst_73 = arith.constant 0.000000e+00 : f32
    %113 = vector.broadcast %cst_73 : f32 to vector<8x64xf32>
    %114 = arith.maximumf %112, %113 : vector<8x64xf32>
    %115 = arith.truncf %114 : vector<8x64xf32> to vector<8x64xbf16>
    %c0_74 = arith.constant 0 : index
    %c71 = arith.constant 71 : index
    %c0_75 = arith.constant 0 : index
    %116 = vector.load %arg4[%c0_74, %c71, %c0_75] : memref<1x100x64xbf16, #tpu.memory_space<vmem>>, vector<1x8x64xbf16>
    %117 = vector.shape_cast %116 : vector<1x8x64xbf16> to vector<8x64xbf16>
    %118 = vector.shape_cast %115 : vector<8x64xbf16> to vector<1x8x64xbf16>
    tpu.vector_store %arg4[%c0_74, %c71, %c0_75], %118 {strides = array<i32>} : memref<1x100x64xbf16, #tpu.memory_space<vmem>>, vector<1x8x64xbf16>,
    %119 = vector.extract_strided_slice %52 {offsets = [70, 0], sizes = [8, 64], strides = [1, 1]} : vector<78x64xf32> to vector<8x64xf32>
    %120 = vector.broadcast %53 : vector<1x64xf32> to vector<8x64xf32>
    %121 = arith.addf %119, %120 : vector<8x64xf32>
    %cst_76 = arith.constant 0.000000e+00 : f32
    %122 = vector.broadcast %cst_76 : f32 to vector<8x64xf32>
    %123 = arith.maximumf %121, %122 : vector<8x64xf32>
    %124 = arith.truncf %123 : vector<8x64xf32> to vector<8x64xbf16>
    %c0_77 = arith.constant 0 : index
    %c81 = arith.constant 81 : index
    %c0_78 = arith.constant 0 : index
    %125 = vector.load %arg4[%c0_77, %c81, %c0_78] : memref<1x100x64xbf16, #tpu.memory_space<vmem>>, vector<1x8x64xbf16>
    %126 = vector.shape_cast %125 : vector<1x8x64xbf16> to vector<8x64xbf16>
    %127 = vector.shape_cast %124 : vector<8x64xbf16> to vector<1x8x64xbf16>
    tpu.vector_store %arg4[%c0_77, %c81, %c0_78], %127 {strides = array<i32>} : memref<1x100x64xbf16, #tpu.memory_space<vmem>>, vector<1x8x64xbf16>,
    return
  }
  func.func @transform_0(%arg0: i32) -> (i32, i32, i32) {
    %c0_i32 = arith.constant 0 : i32
    %c0_i32_0 = arith.constant 0 : i32
    %c0_i32_1 = arith.constant 0 : i32
    return %arg0, %c0_i32, %c0_i32_0 : i32, i32, i32
  }
  func.func @transform_1(%arg0: i32) -> (i32, i32, i32) {
    %c0_i32 = arith.constant 0 : i32
    %c0_i32_0 = arith.constant 0 : i32
    %c0_i32_1 = arith.constant 0 : i32
    %c0_i32_2 = arith.constant 0 : i32
    return %c0_i32, %c0_i32_0, %c0_i32_1 : i32, i32, i32
  }
  func.func @transform_2(%arg0: i32) -> (i32, i32) {
    %c0_i32 = arith.constant 0 : i32
    %c0_i32_0 = arith.constant 0 : i32
    %c0_i32_1 = arith.constant 0 : i32
    return %c0_i32, %c0_i32_0 : i32, i32
  }
  func.func @transform_3(%arg0: i32) -> (i32, i32, i32) {
    %c0_i32 = arith.constant 0 : i32
    %c0_i32_0 = arith.constant 0 : i32
    %c0_i32_1 = arith.constant 0 : i32
    return %arg0, %c0_i32, %c0_i32_0 : i32, i32, i32
  }
}

module attributes {stable_mosaic.version = 11 : i64} {
  func.func @_conv_bn_kernel(%arg0: i32, %arg1: memref<1x100x64xbf16, #tpu.memory_space<vmem>>, %arg2: memref<9x64x64xbf16, #tpu.memory_space<vmem>>, %arg3: memref<1x64xf32, #tpu.memory_space<vmem>>, %arg4: memref<1x100x64xbf16, #tpu.memory_space<vmem>>, %arg5: memref<1x8x8x64xbf16, #tpu.memory_space<vmem>>) attributes {dimension_semantics = [#tpu.dimension_semantics<parallel>], iteration_bounds = array<i64: 2>, scalar_prefetch = 0 : i64, scratch_operands = 0 : i64, tpu.core_type = #tpu.core_type<tc>, window_params = [{transform_indices = @transform_0, window_bounds = array<i64: 1, 100, 64>}, {pipeline_mode = #tpu.pipeline_mode<synchronous>, transform_indices = @transform_1, window_bounds = array<i64: 9, 64, 64>}, {pipeline_mode = #tpu.pipeline_mode<synchronous>, transform_indices = @transform_2, window_bounds = array<i64: 1, 64>}, {transform_indices = @transform_3, window_bounds = array<i64: 1, 100, 64>}, {transform_indices = @transform_4, window_bounds = array<i64: 1, 8, 8, 64>}]} {
    %c0 = arith.constant 0 : index
    %c0_0 = arith.constant 0 : index
    %c0_1 = arith.constant 0 : index
    %0 = vector.load %arg1[%c0, %c0_0, %c0_1] : memref<1x100x64xbf16, #tpu.memory_space<vmem>>, vector<1x78x64xbf16>
    %1 = vector.shape_cast %0 : vector<1x78x64xbf16> to vector<78x64xbf16>
    %c0_2 = arith.constant 0 : index
    %c0_3 = arith.constant 0 : index
    %c0_4 = arith.constant 0 : index
    %2 = vector.load %arg2[%c0_2, %c0_3, %c0_4] : memref<9x64x64xbf16, #tpu.memory_space<vmem>>, vector<1x64x64xbf16>
    %3 = vector.shape_cast %2 : vector<1x64x64xbf16> to vector<64x64xbf16>
    %cst = arith.constant dense<0.000000e+00> : vector<78x64xf32>
    %4 = tpu.matmul %1, %3, %cst {dimension_numbers = #tpu.dot_dimension_numbers<[1], [0], [0], [1], [0, 0, 1, 1], [], []>} : vector<78x64xbf16>, vector<64x64xbf16>, vector<78x64xf32> -> vector<78x64xf32>
    %c0_5 = arith.constant 0 : index
    %c1 = arith.constant 1 : index
    %c0_6 = arith.constant 0 : index
    %5 = vector.load %arg1[%c0_5, %c1, %c0_6] : memref<1x100x64xbf16, #tpu.memory_space<vmem>>, vector<1x78x64xbf16>
    %6 = vector.shape_cast %5 : vector<1x78x64xbf16> to vector<78x64xbf16>
    %c1_7 = arith.constant 1 : index
    %c0_8 = arith.constant 0 : index
    %c0_9 = arith.constant 0 : index
    %7 = vector.load %arg2[%c1_7, %c0_8, %c0_9] : memref<9x64x64xbf16, #tpu.memory_space<vmem>>, vector<1x64x64xbf16>
    %8 = vector.shape_cast %7 : vector<1x64x64xbf16> to vector<64x64xbf16>
    %cst_10 = arith.constant dense<0.000000e+00> : vector<78x64xf32>
    %9 = tpu.matmul %6, %8, %cst_10 {dimension_numbers = #tpu.dot_dimension_numbers<[1], [0], [0], [1], [0, 0, 1, 1], [], []>} : vector<78x64xbf16>, vector<64x64xbf16>, vector<78x64xf32> -> vector<78x64xf32>
    %10 = arith.addf %4, %9 : vector<78x64xf32>
    %c0_11 = arith.constant 0 : index
    %c2 = arith.constant 2 : index
    %c0_12 = arith.constant 0 : index
    %11 = vector.load %arg1[%c0_11, %c2, %c0_12] : memref<1x100x64xbf16, #tpu.memory_space<vmem>>, vector<1x78x64xbf16>
    %12 = vector.shape_cast %11 : vector<1x78x64xbf16> to vector<78x64xbf16>
    %c2_13 = arith.constant 2 : index
    %c0_14 = arith.constant 0 : index
    %c0_15 = arith.constant 0 : index
    %13 = vector.load %arg2[%c2_13, %c0_14, %c0_15] : memref<9x64x64xbf16, #tpu.memory_space<vmem>>, vector<1x64x64xbf16>
    %14 = vector.shape_cast %13 : vector<1x64x64xbf16> to vector<64x64xbf16>
    %cst_16 = arith.constant dense<0.000000e+00> : vector<78x64xf32>
    %15 = tpu.matmul %12, %14, %cst_16 {dimension_numbers = #tpu.dot_dimension_numbers<[1], [0], [0], [1], [0, 0, 1, 1], [], []>} : vector<78x64xbf16>, vector<64x64xbf16>, vector<78x64xf32> -> vector<78x64xf32>
    %16 = arith.addf %10, %15 : vector<78x64xf32>
    %c0_17 = arith.constant 0 : index
    %c10 = arith.constant 10 : index
    %c0_18 = arith.constant 0 : index
    %17 = vector.load %arg1[%c0_17, %c10, %c0_18] : memref<1x100x64xbf16, #tpu.memory_space<vmem>>, vector<1x78x64xbf16>
    %18 = vector.shape_cast %17 : vector<1x78x64xbf16> to vector<78x64xbf16>
    %c3 = arith.constant 3 : index
    %c0_19 = arith.constant 0 : index
    %c0_20 = arith.constant 0 : index
    %19 = vector.load %arg2[%c3, %c0_19, %c0_20] : memref<9x64x64xbf16, #tpu.memory_space<vmem>>, vector<1x64x64xbf16>
    %20 = vector.shape_cast %19 : vector<1x64x64xbf16> to vector<64x64xbf16>
    %cst_21 = arith.constant dense<0.000000e+00> : vector<78x64xf32>
    %21 = tpu.matmul %18, %20, %cst_21 {dimension_numbers = #tpu.dot_dimension_numbers<[1], [0], [0], [1], [0, 0, 1, 1], [], []>} : vector<78x64xbf16>, vector<64x64xbf16>, vector<78x64xf32> -> vector<78x64xf32>
    %22 = arith.addf %16, %21 : vector<78x64xf32>
    %c0_22 = arith.constant 0 : index
    %c11 = arith.constant 11 : index
    %c0_23 = arith.constant 0 : index
    %23 = vector.load %arg1[%c0_22, %c11, %c0_23] : memref<1x100x64xbf16, #tpu.memory_space<vmem>>, vector<1x78x64xbf16>
    %24 = vector.shape_cast %23 : vector<1x78x64xbf16> to vector<78x64xbf16>
    %c4 = arith.constant 4 : index
    %c0_24 = arith.constant 0 : index
    %c0_25 = arith.constant 0 : index
    %25 = vector.load %arg2[%c4, %c0_24, %c0_25] : memref<9x64x64xbf16, #tpu.memory_space<vmem>>, vector<1x64x64xbf16>
    %26 = vector.shape_cast %25 : vector<1x64x64xbf16> to vector<64x64xbf16>
    %cst_26 = arith.constant dense<0.000000e+00> : vector<78x64xf32>
    %27 = tpu.matmul %24, %26, %cst_26 {dimension_numbers = #tpu.dot_dimension_numbers<[1], [0], [0], [1], [0, 0, 1, 1], [], []>} : vector<78x64xbf16>, vector<64x64xbf16>, vector<78x64xf32> -> vector<78x64xf32>
    %28 = arith.addf %22, %27 : vector<78x64xf32>
    %c0_27 = arith.constant 0 : index
    %c12 = arith.constant 12 : index
    %c0_28 = arith.constant 0 : index
    %29 = vector.load %arg1[%c0_27, %c12, %c0_28] : memref<1x100x64xbf16, #tpu.memory_space<vmem>>, vector<1x78x64xbf16>
    %30 = vector.shape_cast %29 : vector<1x78x64xbf16> to vector<78x64xbf16>
    %c5 = arith.constant 5 : index
    %c0_29 = arith.constant 0 : index
    %c0_30 = arith.constant 0 : index
    %31 = vector.load %arg2[%c5, %c0_29, %c0_30] : memref<9x64x64xbf16, #tpu.memory_space<vmem>>, vector<1x64x64xbf16>
    %32 = vector.shape_cast %31 : vector<1x64x64xbf16> to vector<64x64xbf16>
    %cst_31 = arith.constant dense<0.000000e+00> : vector<78x64xf32>
    %33 = tpu.matmul %30, %32, %cst_31 {dimension_numbers = #tpu.dot_dimension_numbers<[1], [0], [0], [1], [0, 0, 1, 1], [], []>} : vector<78x64xbf16>, vector<64x64xbf16>, vector<78x64xf32> -> vector<78x64xf32>
    %34 = arith.addf %28, %33 : vector<78x64xf32>
    %c0_32 = arith.constant 0 : index
    %c20 = arith.constant 20 : index
    %c0_33 = arith.constant 0 : index
    %35 = vector.load %arg1[%c0_32, %c20, %c0_33] : memref<1x100x64xbf16, #tpu.memory_space<vmem>>, vector<1x78x64xbf16>
    %36 = vector.shape_cast %35 : vector<1x78x64xbf16> to vector<78x64xbf16>
    %c6 = arith.constant 6 : index
    %c0_34 = arith.constant 0 : index
    %c0_35 = arith.constant 0 : index
    %37 = vector.load %arg2[%c6, %c0_34, %c0_35] : memref<9x64x64xbf16, #tpu.memory_space<vmem>>, vector<1x64x64xbf16>
    %38 = vector.shape_cast %37 : vector<1x64x64xbf16> to vector<64x64xbf16>
    %cst_36 = arith.constant dense<0.000000e+00> : vector<78x64xf32>
    %39 = tpu.matmul %36, %38, %cst_36 {dimension_numbers = #tpu.dot_dimension_numbers<[1], [0], [0], [1], [0, 0, 1, 1], [], []>} : vector<78x64xbf16>, vector<64x64xbf16>, vector<78x64xf32> -> vector<78x64xf32>
    %40 = arith.addf %34, %39 : vector<78x64xf32>
    %c0_37 = arith.constant 0 : index
    %c21 = arith.constant 21 : index
    %c0_38 = arith.constant 0 : index
    %41 = vector.load %arg1[%c0_37, %c21, %c0_38] : memref<1x100x64xbf16, #tpu.memory_space<vmem>>, vector<1x78x64xbf16>
    %42 = vector.shape_cast %41 : vector<1x78x64xbf16> to vector<78x64xbf16>
    %c7 = arith.constant 7 : index
    %c0_39 = arith.constant 0 : index
    %c0_40 = arith.constant 0 : index
    %43 = vector.load %arg2[%c7, %c0_39, %c0_40] : memref<9x64x64xbf16, #tpu.memory_space<vmem>>, vector<1x64x64xbf16>
    %44 = vector.shape_cast %43 : vector<1x64x64xbf16> to vector<64x64xbf16>
    %cst_41 = arith.constant dense<0.000000e+00> : vector<78x64xf32>
    %45 = tpu.matmul %42, %44, %cst_41 {dimension_numbers = #tpu.dot_dimension_numbers<[1], [0], [0], [1], [0, 0, 1, 1], [], []>} : vector<78x64xbf16>, vector<64x64xbf16>, vector<78x64xf32> -> vector<78x64xf32>
    %46 = arith.addf %40, %45 : vector<78x64xf32>
    %c0_42 = arith.constant 0 : index
    %c22 = arith.constant 22 : index
    %c0_43 = arith.constant 0 : index
    %47 = vector.load %arg1[%c0_42, %c22, %c0_43] : memref<1x100x64xbf16, #tpu.memory_space<vmem>>, vector<1x78x64xbf16>
    %48 = vector.shape_cast %47 : vector<1x78x64xbf16> to vector<78x64xbf16>
    %c8 = arith.constant 8 : index
    %c0_44 = arith.constant 0 : index
    %c0_45 = arith.constant 0 : index
    %49 = vector.load %arg2[%c8, %c0_44, %c0_45] : memref<9x64x64xbf16, #tpu.memory_space<vmem>>, vector<1x64x64xbf16>
    %50 = vector.shape_cast %49 : vector<1x64x64xbf16> to vector<64x64xbf16>
    %cst_46 = arith.constant dense<0.000000e+00> : vector<78x64xf32>
    %51 = tpu.matmul %48, %50, %cst_46 {dimension_numbers = #tpu.dot_dimension_numbers<[1], [0], [0], [1], [0, 0, 1, 1], [], []>} : vector<78x64xbf16>, vector<64x64xbf16>, vector<78x64xf32> -> vector<78x64xf32>
    %52 = arith.addf %46, %51 : vector<78x64xf32>
    %c0_47 = arith.constant 0 : index
    %c0_48 = arith.constant 0 : index
    %53 = vector.load %arg3[%c0_47, %c0_48] : memref<1x64xf32, #tpu.memory_space<vmem>>, vector<1x64xf32>
    %54 = vector.extract_strided_slice %52 {offsets = [0, 0], sizes = [8, 64], strides = [1, 1]} : vector<78x64xf32> to vector<8x64xf32>
    %55 = vector.broadcast %53 : vector<1x64xf32> to vector<8x64xf32>
    %56 = arith.addf %54, %55 : vector<8x64xf32>
    %c0_49 = arith.constant 0 : index
    %c11_50 = arith.constant 11 : index
    %c0_51 = arith.constant 0 : index
    %57 = vector.load %arg4[%c0_49, %c11_50, %c0_51] : memref<1x100x64xbf16, #tpu.memory_space<vmem>>, vector<1x8x64xbf16>
    %58 = vector.shape_cast %57 : vector<1x8x64xbf16> to vector<8x64xbf16>
    %59 = arith.extf %58 : vector<8x64xbf16> to vector<8x64xf32>
    %60 = arith.addf %56, %59 : vector<8x64xf32>
    %cst_52 = arith.constant 0.000000e+00 : f32
    %61 = vector.broadcast %cst_52 : f32 to vector<8x64xf32>
    %62 = arith.maximumf %60, %61 : vector<8x64xf32>
    %63 = arith.truncf %62 : vector<8x64xf32> to vector<8x64xbf16>
    %c0_53 = arith.constant 0 : index
    %c0_54 = arith.constant 0 : index
    %c0_55 = arith.constant 0 : index
    %c0_56 = arith.constant 0 : index
    %64 = vector.load %arg5[%c0_53, %c0_54, %c0_55, %c0_56] : memref<1x8x8x64xbf16, #tpu.memory_space<vmem>>, vector<1x1x8x64xbf16>
    %65 = vector.shape_cast %64 : vector<1x1x8x64xbf16> to vector<8x64xbf16>
    %66 = vector.shape_cast %63 : vector<8x64xbf16> to vector<1x1x8x64xbf16>
    tpu.vector_store %arg5[%c0_53, %c0_54, %c0_55, %c0_56], %66 {strides = array<i32>} : memref<1x8x8x64xbf16, #tpu.memory_space<vmem>>, vector<1x1x8x64xbf16>,
    %67 = vector.extract_strided_slice %52 {offsets = [10, 0], sizes = [8, 64], strides = [1, 1]} : vector<78x64xf32> to vector<8x64xf32>
    %68 = vector.broadcast %53 : vector<1x64xf32> to vector<8x64xf32>
    %69 = arith.addf %67, %68 : vector<8x64xf32>
    %c0_57 = arith.constant 0 : index
    %c21_58 = arith.constant 21 : index
    %c0_59 = arith.constant 0 : index
    %70 = vector.load %arg4[%c0_57, %c21_58, %c0_59] : memref<1x100x64xbf16, #tpu.memory_space<vmem>>, vector<1x8x64xbf16>
    %71 = vector.shape_cast %70 : vector<1x8x64xbf16> to vector<8x64xbf16>
    %72 = arith.extf %71 : vector<8x64xbf16> to vector<8x64xf32>
    %73 = arith.addf %69, %72 : vector<8x64xf32>
    %cst_60 = arith.constant 0.000000e+00 : f32
    %74 = vector.broadcast %cst_60 : f32 to vector<8x64xf32>
    %75 = arith.maximumf %73, %74 : vector<8x64xf32>
    %76 = arith.truncf %75 : vector<8x64xf32> to vector<8x64xbf16>
    %c0_61 = arith.constant 0 : index
    %c1_62 = arith.constant 1 : index
    %c0_63 = arith.constant 0 : index
    %c0_64 = arith.constant 0 : index
    %77 = vector.load %arg5[%c0_61, %c1_62, %c0_63, %c0_64] : memref<1x8x8x64xbf16, #tpu.memory_space<vmem>>, vector<1x1x8x64xbf16>
    %78 = vector.shape_cast %77 : vector<1x1x8x64xbf16> to vector<8x64xbf16>
    %79 = vector.shape_cast %76 : vector<8x64xbf16> to vector<1x1x8x64xbf16>
    tpu.vector_store %arg5[%c0_61, %c1_62, %c0_63, %c0_64], %79 {strides = array<i32>} : memref<1x8x8x64xbf16, #tpu.memory_space<vmem>>, vector<1x1x8x64xbf16>,
    %80 = vector.extract_strided_slice %52 {offsets = [20, 0], sizes = [8, 64], strides = [1, 1]} : vector<78x64xf32> to vector<8x64xf32>
    %81 = vector.broadcast %53 : vector<1x64xf32> to vector<8x64xf32>
    %82 = arith.addf %80, %81 : vector<8x64xf32>
    %c0_65 = arith.constant 0 : index
    %c31 = arith.constant 31 : index
    %c0_66 = arith.constant 0 : index
    %83 = vector.load %arg4[%c0_65, %c31, %c0_66] : memref<1x100x64xbf16, #tpu.memory_space<vmem>>, vector<1x8x64xbf16>
    %84 = vector.shape_cast %83 : vector<1x8x64xbf16> to vector<8x64xbf16>
    %85 = arith.extf %84 : vector<8x64xbf16> to vector<8x64xf32>
    %86 = arith.addf %82, %85 : vector<8x64xf32>
    %cst_67 = arith.constant 0.000000e+00 : f32
    %87 = vector.broadcast %cst_67 : f32 to vector<8x64xf32>
    %88 = arith.maximumf %86, %87 : vector<8x64xf32>
    %89 = arith.truncf %88 : vector<8x64xf32> to vector<8x64xbf16>
    %c0_68 = arith.constant 0 : index
    %c2_69 = arith.constant 2 : index
    %c0_70 = arith.constant 0 : index
    %c0_71 = arith.constant 0 : index
    %90 = vector.load %arg5[%c0_68, %c2_69, %c0_70, %c0_71] : memref<1x8x8x64xbf16, #tpu.memory_space<vmem>>, vector<1x1x8x64xbf16>
    %91 = vector.shape_cast %90 : vector<1x1x8x64xbf16> to vector<8x64xbf16>
    %92 = vector.shape_cast %89 : vector<8x64xbf16> to vector<1x1x8x64xbf16>
    tpu.vector_store %arg5[%c0_68, %c2_69, %c0_70, %c0_71], %92 {strides = array<i32>} : memref<1x8x8x64xbf16, #tpu.memory_space<vmem>>, vector<1x1x8x64xbf16>,
    %93 = vector.extract_strided_slice %52 {offsets = [30, 0], sizes = [8, 64], strides = [1, 1]} : vector<78x64xf32> to vector<8x64xf32>
    %94 = vector.broadcast %53 : vector<1x64xf32> to vector<8x64xf32>
    %95 = arith.addf %93, %94 : vector<8x64xf32>
    %c0_72 = arith.constant 0 : index
    %c41 = arith.constant 41 : index
    %c0_73 = arith.constant 0 : index
    %96 = vector.load %arg4[%c0_72, %c41, %c0_73] : memref<1x100x64xbf16, #tpu.memory_space<vmem>>, vector<1x8x64xbf16>
    %97 = vector.shape_cast %96 : vector<1x8x64xbf16> to vector<8x64xbf16>
    %98 = arith.extf %97 : vector<8x64xbf16> to vector<8x64xf32>
    %99 = arith.addf %95, %98 : vector<8x64xf32>
    %cst_74 = arith.constant 0.000000e+00 : f32
    %100 = vector.broadcast %cst_74 : f32 to vector<8x64xf32>
    %101 = arith.maximumf %99, %100 : vector<8x64xf32>
    %102 = arith.truncf %101 : vector<8x64xf32> to vector<8x64xbf16>
    %c0_75 = arith.constant 0 : index
    %c3_76 = arith.constant 3 : index
    %c0_77 = arith.constant 0 : index
    %c0_78 = arith.constant 0 : index
    %103 = vector.load %arg5[%c0_75, %c3_76, %c0_77, %c0_78] : memref<1x8x8x64xbf16, #tpu.memory_space<vmem>>, vector<1x1x8x64xbf16>
    %104 = vector.shape_cast %103 : vector<1x1x8x64xbf16> to vector<8x64xbf16>
    %105 = vector.shape_cast %102 : vector<8x64xbf16> to vector<1x1x8x64xbf16>
    tpu.vector_store %arg5[%c0_75, %c3_76, %c0_77, %c0_78], %105 {strides = array<i32>} : memref<1x8x8x64xbf16, #tpu.memory_space<vmem>>, vector<1x1x8x64xbf16>,
    %106 = vector.extract_strided_slice %52 {offsets = [40, 0], sizes = [8, 64], strides = [1, 1]} : vector<78x64xf32> to vector<8x64xf32>
    %107 = vector.broadcast %53 : vector<1x64xf32> to vector<8x64xf32>
    %108 = arith.addf %106, %107 : vector<8x64xf32>
    %c0_79 = arith.constant 0 : index
    %c51 = arith.constant 51 : index
    %c0_80 = arith.constant 0 : index
    %109 = vector.load %arg4[%c0_79, %c51, %c0_80] : memref<1x100x64xbf16, #tpu.memory_space<vmem>>, vector<1x8x64xbf16>
    %110 = vector.shape_cast %109 : vector<1x8x64xbf16> to vector<8x64xbf16>
    %111 = arith.extf %110 : vector<8x64xbf16> to vector<8x64xf32>
    %112 = arith.addf %108, %111 : vector<8x64xf32>
    %cst_81 = arith.constant 0.000000e+00 : f32
    %113 = vector.broadcast %cst_81 : f32 to vector<8x64xf32>
    %114 = arith.maximumf %112, %113 : vector<8x64xf32>
    %115 = arith.truncf %114 : vector<8x64xf32> to vector<8x64xbf16>
    %c0_82 = arith.constant 0 : index
    %c4_83 = arith.constant 4 : index
    %c0_84 = arith.constant 0 : index
    %c0_85 = arith.constant 0 : index
    %116 = vector.load %arg5[%c0_82, %c4_83, %c0_84, %c0_85] : memref<1x8x8x64xbf16, #tpu.memory_space<vmem>>, vector<1x1x8x64xbf16>
    %117 = vector.shape_cast %116 : vector<1x1x8x64xbf16> to vector<8x64xbf16>
    %118 = vector.shape_cast %115 : vector<8x64xbf16> to vector<1x1x8x64xbf16>
    tpu.vector_store %arg5[%c0_82, %c4_83, %c0_84, %c0_85], %118 {strides = array<i32>} : memref<1x8x8x64xbf16, #tpu.memory_space<vmem>>, vector<1x1x8x64xbf16>,
    %119 = vector.extract_strided_slice %52 {offsets = [50, 0], sizes = [8, 64], strides = [1, 1]} : vector<78x64xf32> to vector<8x64xf32>
    %120 = vector.broadcast %53 : vector<1x64xf32> to vector<8x64xf32>
    %121 = arith.addf %119, %120 : vector<8x64xf32>
    %c0_86 = arith.constant 0 : index
    %c61 = arith.constant 61 : index
    %c0_87 = arith.constant 0 : index
    %122 = vector.load %arg4[%c0_86, %c61, %c0_87] : memref<1x100x64xbf16, #tpu.memory_space<vmem>>, vector<1x8x64xbf16>
    %123 = vector.shape_cast %122 : vector<1x8x64xbf16> to vector<8x64xbf16>
    %124 = arith.extf %123 : vector<8x64xbf16> to vector<8x64xf32>
    %125 = arith.addf %121, %124 : vector<8x64xf32>
    %cst_88 = arith.constant 0.000000e+00 : f32
    %126 = vector.broadcast %cst_88 : f32 to vector<8x64xf32>
    %127 = arith.maximumf %125, %126 : vector<8x64xf32>
    %128 = arith.truncf %127 : vector<8x64xf32> to vector<8x64xbf16>
    %c0_89 = arith.constant 0 : index
    %c5_90 = arith.constant 5 : index
    %c0_91 = arith.constant 0 : index
    %c0_92 = arith.constant 0 : index
    %129 = vector.load %arg5[%c0_89, %c5_90, %c0_91, %c0_92] : memref<1x8x8x64xbf16, #tpu.memory_space<vmem>>, vector<1x1x8x64xbf16>
    %130 = vector.shape_cast %129 : vector<1x1x8x64xbf16> to vector<8x64xbf16>
    %131 = vector.shape_cast %128 : vector<8x64xbf16> to vector<1x1x8x64xbf16>
    tpu.vector_store %arg5[%c0_89, %c5_90, %c0_91, %c0_92], %131 {strides = array<i32>} : memref<1x8x8x64xbf16, #tpu.memory_space<vmem>>, vector<1x1x8x64xbf16>,
    %132 = vector.extract_strided_slice %52 {offsets = [60, 0], sizes = [8, 64], strides = [1, 1]} : vector<78x64xf32> to vector<8x64xf32>
    %133 = vector.broadcast %53 : vector<1x64xf32> to vector<8x64xf32>
    %134 = arith.addf %132, %133 : vector<8x64xf32>
    %c0_93 = arith.constant 0 : index
    %c71 = arith.constant 71 : index
    %c0_94 = arith.constant 0 : index
    %135 = vector.load %arg4[%c0_93, %c71, %c0_94] : memref<1x100x64xbf16, #tpu.memory_space<vmem>>, vector<1x8x64xbf16>
    %136 = vector.shape_cast %135 : vector<1x8x64xbf16> to vector<8x64xbf16>
    %137 = arith.extf %136 : vector<8x64xbf16> to vector<8x64xf32>
    %138 = arith.addf %134, %137 : vector<8x64xf32>
    %cst_95 = arith.constant 0.000000e+00 : f32
    %139 = vector.broadcast %cst_95 : f32 to vector<8x64xf32>
    %140 = arith.maximumf %138, %139 : vector<8x64xf32>
    %141 = arith.truncf %140 : vector<8x64xf32> to vector<8x64xbf16>
    %c0_96 = arith.constant 0 : index
    %c6_97 = arith.constant 6 : index
    %c0_98 = arith.constant 0 : index
    %c0_99 = arith.constant 0 : index
    %142 = vector.load %arg5[%c0_96, %c6_97, %c0_98, %c0_99] : memref<1x8x8x64xbf16, #tpu.memory_space<vmem>>, vector<1x1x8x64xbf16>
    %143 = vector.shape_cast %142 : vector<1x1x8x64xbf16> to vector<8x64xbf16>
    %144 = vector.shape_cast %141 : vector<8x64xbf16> to vector<1x1x8x64xbf16>
    tpu.vector_store %arg5[%c0_96, %c6_97, %c0_98, %c0_99], %144 {strides = array<i32>} : memref<1x8x8x64xbf16, #tpu.memory_space<vmem>>, vector<1x1x8x64xbf16>,
    %145 = vector.extract_strided_slice %52 {offsets = [70, 0], sizes = [8, 64], strides = [1, 1]} : vector<78x64xf32> to vector<8x64xf32>
    %146 = vector.broadcast %53 : vector<1x64xf32> to vector<8x64xf32>
    %147 = arith.addf %145, %146 : vector<8x64xf32>
    %c0_100 = arith.constant 0 : index
    %c81 = arith.constant 81 : index
    %c0_101 = arith.constant 0 : index
    %148 = vector.load %arg4[%c0_100, %c81, %c0_101] : memref<1x100x64xbf16, #tpu.memory_space<vmem>>, vector<1x8x64xbf16>
    %149 = vector.shape_cast %148 : vector<1x8x64xbf16> to vector<8x64xbf16>
    %150 = arith.extf %149 : vector<8x64xbf16> to vector<8x64xf32>
    %151 = arith.addf %147, %150 : vector<8x64xf32>
    %cst_102 = arith.constant 0.000000e+00 : f32
    %152 = vector.broadcast %cst_102 : f32 to vector<8x64xf32>
    %153 = arith.maximumf %151, %152 : vector<8x64xf32>
    %154 = arith.truncf %153 : vector<8x64xf32> to vector<8x64xbf16>
    %c0_103 = arith.constant 0 : index
    %c7_104 = arith.constant 7 : index
    %c0_105 = arith.constant 0 : index
    %c0_106 = arith.constant 0 : index
    %155 = vector.load %arg5[%c0_103, %c7_104, %c0_105, %c0_106] : memref<1x8x8x64xbf16, #tpu.memory_space<vmem>>, vector<1x1x8x64xbf16>
    %156 = vector.shape_cast %155 : vector<1x1x8x64xbf16> to vector<8x64xbf16>
    %157 = vector.shape_cast %154 : vector<8x64xbf16> to vector<1x1x8x64xbf16>
    tpu.vector_store %arg5[%c0_103, %c7_104, %c0_105, %c0_106], %157 {strides = array<i32>} : memref<1x8x8x64xbf16, #tpu.memory_space<vmem>>, vector<1x1x8x64xbf16>,
    return
  }
  func.func @transform_0(%arg0: i32) -> (i32, i32, i32) {
    %c0_i32 = arith.constant 0 : i32
    %c0_i32_0 = arith.constant 0 : i32
    %c0_i32_1 = arith.constant 0 : i32
    return %arg0, %c0_i32, %c0_i32_0 : i32, i32, i32
  }
  func.func @transform_1(%arg0: i32) -> (i32, i32, i32) {
    %c0_i32 = arith.constant 0 : i32
    %c0_i32_0 = arith.constant 0 : i32
    %c0_i32_1 = arith.constant 0 : i32
    %c0_i32_2 = arith.constant 0 : i32
    return %c0_i32, %c0_i32_0, %c0_i32_1 : i32, i32, i32
  }
  func.func @transform_2(%arg0: i32) -> (i32, i32) {
    %c0_i32 = arith.constant 0 : i32
    %c0_i32_0 = arith.constant 0 : i32
    %c0_i32_1 = arith.constant 0 : i32
    return %c0_i32, %c0_i32_0 : i32, i32
  }
  func.func @transform_3(%arg0: i32) -> (i32, i32, i32) {
    %c0_i32 = arith.constant 0 : i32
    %c0_i32_0 = arith.constant 0 : i32
    %c0_i32_1 = arith.constant 0 : i32
    return %arg0, %c0_i32, %c0_i32_0 : i32, i32, i32
  }
  func.func @transform_4(%arg0: i32) -> (i32, i32, i32, i32) {
    %c0_i32 = arith.constant 0 : i32
    %c0_i32_0 = arith.constant 0 : i32
    %c0_i32_1 = arith.constant 0 : i32
    %c0_i32_2 = arith.constant 0 : i32
    return %arg0, %c0_i32, %c0_i32_0, %c0_i32_1 : i32, i32, i32, i32
  }
}

</mosaic_0001>

<llo_original>
// kernel: tile.18
$region0: #{tile.18}
  #allocation0 [shape = 's32[1]{0}', space=sflag, size = 0x4, scoped, tag = 'scoped memory for tile.18']
  %s0 = inlined_call_operand.vmem [shape: f32[8], index: 0, kind: input, shape index: {}]
  %s1 = inlined_call_operand.vmem [shape: f32[8,8], index: 1, kind: output, shape index: {}]
  // Predicated region
  $region2: #{tile.18} parent=0 // pred_check
    _
  $region3: #{tile.18} parent=0 // pred_check_branch
    %3 = sbr.rel (0) target = $region5
  $region4: #{tile.18} parent=0 // pred_region
    _
  $region5: #{tile.18} parent=0 // pred_fallthru
    _
  %v4 = vld [vmem:[%s0] ss:$0 sm:$0xff]
  %5 = vst [vmem:[%s1] sm:$0xff] %v4

// kernel: tile.19
$region0: #{tile.19}
  %s0 = inlined_call_operand.vmem [shape: f32[8,8], index: 0, kind: input, shape index: {}]
  %s1 = inlined_call_operand.vmem [shape: f32[1,64], index: 1, kind: output, shape index: {}]
  $region1: #{tile.19} parent=0
    #allocation0 [shape = 'u8[4096]{0}', space=vmem, size = 0x1000, scoped, tag = 'scoped mem for output reshape']
    %v2 = vld [vmem:[%s0] sm:$0x1]
    %vm3 = vcmask 64512
    %4 = vst.msk [vmem:[#allocation0] sm:$0x1] %vm3, %v2
    %s5 = scalar_lea.vmem %s0, 7
    %v6 = vld [vmem:[%s5] sm:$0x1]
    %7 = vrot.lane.b32.xlu0 %v6, 56
    %v8 = vpop.permute.xlu0 %7
    %vm9 = vcmask 523712
    %10 = vst.msk [vmem:[#allocation0] sm:$0x1] %vm9, %v8
    %s11 = scalar_lea.vmem %s0, 6
    %v12 = vld [vmem:[%s11] sm:$0x1]
    %13 = vrot.lane.b32.xlu0 %v12, 48
    %v14 = vpop.permute.xlu0 %13
    %vm15 = vcmask 458112
    %16 = vst.msk [vmem:[#allocation0] sm:$0x1] %vm15, %v14
    %s17 = scalar_lea.vmem %s0, 5
    %v18 = vld [vmem:[%s17] sm:$0x1]
    %19 = vrot.lane.b32.xlu0 %v18, 40
    %v20 = vpop.permute.xlu0 %19
    %vm21 = vcmask 392512
    %22 = vst.msk [vmem:[#allocation0] sm:$0x1] %vm21, %v20
    %s23 = scalar_lea.vmem %s0, 4
    %v24 = vld [vmem:[%s23] sm:$0x1]
    %25 = vrot.lane.b32.xlu0 %v24, 32
    %v26 = vpop.permute.xlu0 %25
    %vm27 = vcmask 326912
    %28 = vst.msk [vmem:[#allocation0] sm:$0x1] %vm27, %v26
    %s29 = scalar_lea.vmem %s0, 3
    %v30 = vld [vmem:[%s29] sm:$0x1]
    %31 = vrot.lane.b32.xlu0 %v30, 24
    %v32 = vpop.permute.xlu0 %31
    %vm33 = vcmask 261312
    %34 = vst.msk [vmem:[#allocation0] sm:$0x1] %vm33, %v32
    %s35 = scalar_lea.vmem %s0, 2
    %v36 = vld [vmem:[%s35] sm:$0x1]
    %37 = vrot.lane.b32.xlu0 %v36, 16
    %v38 = vpop.permute.xlu0 %37
    %vm39 = vcmask 195712
    %40 = vst.msk [vmem:[#allocation0] sm:$0x1] %vm39, %v38
    %s41 = scalar_lea.vmem %s0, 1
    %v42 = vld [vmem:[%s41] sm:$0x1]
    %43 = vrot.lane.b32.xlu0 %v42, 8
    %v44 = vpop.permute.xlu0 %43
    %vm45 = vcmask 130112
    %46 = vst.msk [vmem:[#allocation0] sm:$0x1] %vm45, %v44
    %s48 = ssub.s32 2, 1
    %v49 = vld [vmem:[#allocation0] sm:%s48]
    %s51 = ssub.s32 2, 1
    %52 = vst [vmem:[%s1] sm:%s51] %v49

// kernel: residual_block_forward.3
$region0: #{residual_block_forward.3}
  #allocation0 [shape = 'u32[]', space=smem, size = 0x4, offset = 0x4, fixed_abs, tag = 'smem constant byte address 0x4 - core index']
  #allocation1 [shape = 'u32[72,128]{1,0:T(1,128)}', space=vmem, size = 0x9000, scoped, tag = 'internal scratch']
  %s0 = inlined_call_operand.vmem [shape: bf16[2,100,32], index: 0, kind: input, shape index: {}]
  %s1 = inlined_call_operand.vmem [shape: bf16[9,32,64], index: 1, kind: input, shape index: {}]
  %s2 = inlined_call_operand.vmem [shape: f32[1,64], index: 2, kind: input, shape index: {}]
  %s3 = inlined_call_operand.vmem [shape: bf16[2,100,64], index: 3, kind: output, shape index: {}]
  %s4 = sld [smem:[#allocation0]]
  $region45: #{residual_block_forward.3} parent=0
    _
  %s6 = ssub.s32 1, %s4
  %s7 = scalar_select 0, %s6, %s4
  loop: start=0, step=1, limit=4
  $region2: #{residual_block_forward.3} parent=0 // loop_pre_header
    _
  $region3: #{residual_block_forward.3} parent=0 // loop_header
    %s9 = sphi 0, %s13
    %p10 = scmp.ge.s32.totalorder %s9, 4
    %s19 = sphi 0, %s21
    %s22 = sphi 0, %s19
    %s23 = sphi 0, %s22
    %s39 = sphi 0, %s23
    %s43 = sphi 0, %s43
    %s45 = sphi 0, %s43
    %s46 = sphi 0, %s45
    %s60 = sphi 0, %s46
    %s64 = sphi 0, %s64
    %s66 = sphi 0, %s64
    %s67 = sphi 0, %s66
    %s81 = sphi 0, %s67
    %s87 = sphi 0, %s89
    %s90 = sphi 0, %s87
    %s91 = sphi 0, %s90
    %s107 = sphi 0, %s91
  $region4: #{residual_block_forward.3} parent=0 // loop_header_branch
    %12 = sbr.rel (%p10) target = $region8
  $region5: #{residual_block_forward.3} parent=0 // loop_body
    %s14 = ssub.s32 %s9, 1
    %s15 = ssub.s32 %s9, 2
    %s16 = sadd.s32 %s9, 1
    %s17 = ssub.s32 %s9, %s16
    %p18 = scmp.eq.s32.totalorder %s17, 0
    %s20 = sadd.s32 %s19, 1
    %s21 = scalar_select %p18, %s19, %s20
    %p24 = pneg %p18
    %p25 = scmp.eq.s32.totalorder %s9, 1
    %p26 = por %p24, %p25
    %p27 = scmp.ne.s32.totalorder %s19, %s22
    %p28 = scmp.eq.s32.totalorder %s9, 0
    %p29 = por %p27, %p28
    %p30 = scmp.ne.s32.totalorder %s19, %s22
    %p31 = scmp.eq.s32.totalorder %s14, 1
    %p32 = por %p30, %p31
    %p33 = scmp.ne.s32.totalorder %s22, %s23
    %p34 = scmp.eq.s32.totalorder %s14, 0
    %p35 = por %p33, %p34
    %p36 = scmp.ne.s32.totalorder %s22, %s23
    %p37 = scmp.eq.s32.totalorder %s15, 1
    %p38 = por %p36, %p37
    %p40 = scmp.ne.s32.totalorder %s23, %s39
    %p41 = scmp.eq.s32.totalorder %s15, 0
    %p42 = por %p40, %p41
    %s44 = sadd.s32 %s43, 1
    %p47 = scmp.eq.s32.totalorder %s9, 1
    %p48 = scmp.ne.s32.totalorder %s43, %s45
    %p49 = scmp.eq.s32.totalorder %s9, 0
    %p50 = por %p48, %p49
    %p51 = scmp.ne.s32.totalorder %s43, %s45
    %p52 = scmp.eq.s32.totalorder %s14, 1
    %p53 = por %p51, %p52
    %p54 = scmp.ne.s32.totalorder %s45, %s46
    %p55 = scmp.eq.s32.totalorder %s14, 0
    %p56 = por %p54, %p55
    %p57 = scmp.ne.s32.totalorder %s45, %s46
    %p58 = scmp.eq.s32.totalorder %s15, 1
    %p59 = por %p57, %p58
    %p61 = scmp.ne.s32.totalorder %s46, %s60
    %p62 = scmp.eq.s32.totalorder %s15, 0
    %p63 = por %p61, %p62
    %s65 = sadd.s32 %s64, 1
    %p68 = scmp.eq.s32.totalorder %s9, 1
    %p69 = scmp.ne.s32.totalorder %s64, %s66
    %p70 = scmp.eq.s32.totalorder %s9, 0
    %p71 = por %p69, %p70
    %p72 = scmp.ne.s32.totalorder %s64, %s66
    %p73 = scmp.eq.s32.totalorder %s14, 1
    %p74 = por %p72, %p73
    %p75 = scmp.ne.s32.totalorder %s66, %s67
    %p76 = scmp.eq.s32.totalorder %s14, 0
    %p77 = por %p75, %p76
    %p78 = scmp.ne.s32.totalorder %s66, %s67
    %p79 = scmp.eq.s32.totalorder %s15, 1
    %p80 = por %p78, %p79
    %p82 = scmp.ne.s32.totalorder %s67, %s81
    %p83 = scmp.eq.s32.totalorder %s15, 0
    %p84 = por %p82, %p83
    %s85 = ssub.s32 %s9, %s16
    %p86 = scmp.eq.s32.totalorder %s85, 0
    %s88 = sadd.s32 %s87, 1
    %s89 = scalar_select %p86, %s87, %s88
    %p92 = pneg %p86
    %p93 = scmp.eq.s32.totalorder %s9, 1
    %p94 = por %p92, %p93
    %p95 = scmp.ne.s32.totalorder %s87, %s90
    %p96 = scmp.eq.s32.totalorder %s9, 0
    %p97 = por %p95, %p96
    %p98 = scmp.ne.s32.totalorder %s87, %s90
    %p99 = scmp.eq.s32.totalorder %s14, 1
    %p100 = por %p98, %p99
    %p101 = scmp.ne.s32.totalorder %s90, %s91
    %p102 = scmp.eq.s32.totalorder %s14, 0
    %p103 = por %p101, %p102
    %p104 = scmp.ne.s32.totalorder %s90, %s91
    %p105 = scmp.eq.s32.totalorder %s15, 1
    %p106 = por %p104, %p105
    %p108 = scmp.ne.s32.totalorder %s91, %s107
    %p109 = scmp.eq.s32.totalorder %s15, 0
    %p110 = por %p108, %p109
    %p111 = scmp.le.s32.totalorder 1, %s9
    %p112 = scmp.lt.s32.totalorder %s9, 3
    %p113 = pnand %p111, %p112
    %p114 = pneg %p113
    // Predicated region
    $region9: #{residual_block_forward.3} parent=5 // pred_check
      _
    $region10: #{residual_block_forward.3} parent=5 // pred_check_branch
      %116 = sbr.rel (%p113) target = $region12
    $region11: #{residual_block_forward.3} parent=5 // pred_region
      %s117 = ssub.s32 %s9, 1
      // Predicated region
      $region13: #{residual_block_forward.3} parent=11 // pred_check
        %p118 = pneg %p56
      $region14: #{residual_block_forward.3} parent=11 // pred_check_branch
        %120 = sbr.rel (%p118) target = $region16
      $region15: #{residual_block_forward.3} parent=11 // pred_region
        _
      $region16: #{residual_block_forward.3} parent=11 // pred_fallthru
        _
      // Predicated region
      $region17: #{residual_block_forward.3} parent=11 // pred_check
        %p121 = pneg %p77
      $region18: #{residual_block_forward.3} parent=11 // pred_check_branch
        %123 = sbr.rel (%p121) target = $region20
      $region19: #{residual_block_forward.3} parent=11 // pred_region
        _
      $region20: #{residual_block_forward.3} parent=11 // pred_fallthru
        _
    $region12: #{residual_block_forward.3} parent=5 // pred_fallthru
      _
    %p124 = scmp.lt.s32.totalorder %s9, 2
    // Predicated region
    $region21: #{residual_block_forward.3} parent=5 // pred_check
      %p125 = pneg %p124
    $region22: #{residual_block_forward.3} parent=5 // pred_check_branch
      %127 = sbr.rel (%p125) target = $region24
    $region23: #{residual_block_forward.3} parent=5 // pred_region
      // Predicated region
      $region25: #{residual_block_forward.3} parent=23 // pred_check
        %p128 = pneg %p29
      $region26: #{residual_block_forward.3} parent=23 // pred_check_branch
        %130 = sbr.rel (%p128) target = $region28
      $region27: #{residual_block_forward.3} parent=23 // pred_region
        %p131 = scmp.lt.s32.totalorder %s9, 1
        %s132 = scalar_select %p131, %s9, 1
        %s133 = smul.addr %s132, 13
        %s134 = smul.addr %s133, 4
        %s135 = scalar_lea.vmem %s0, %s134
      $region28: #{residual_block_forward.3} parent=23 // pred_fallthru
        _
    $region24: #{residual_block_forward.3} parent=5 // pred_fallthru
      _
    %p136 = scmp.le.s32.totalorder 1, %s9
    %p137 = scmp.lt.s32.totalorder %s9, 3
    %p138 = pnand %p136, %p137
    %p139 = pneg %p138
    // Predicated region
    $region29: #{residual_block_forward.3} parent=5 // pred_check
      _
    $region30: #{residual_block_forward.3} parent=5 // pred_check_branch
      %141 = sbr.rel (%p138) target = $region32
    $region31: #{residual_block_forward.3} parent=5 // pred_region
      %s142 = ssub.s32 %s9, 1
      %p143 = scmp.lt.s32.totalorder %s14, 1
      %s144 = scalar_select %p143, %s14, 1
      %s145 = smul.addr %s144, 13
      %s146 = smul.addr %s145, 4
      %s147 = scalar_lea.vmem %s0, %s146
      %p148 = pneg %p35
      %p149 = pneg %p32
      %p150 = pneg %p56
      %p151 = pneg %p53
      %p152 = pneg %p77
      %p153 = pneg %p74
      %p154 = pneg %p103
      %p155 = pneg %p100
      %p156 = scmp.lt.s32.totalorder %s14, 1
      %s157 = scalar_select %p156, %s14, 1
      %s158 = smul.addr %s157, 13
      %s159 = smul.addr %s158, 4
      %s160 = scalar_lea.vmem %s3, %s159
      %p161 = scmp.lt.s32.totalorder %s14, 1
      %s162 = scalar_select %p161, %s14, 1
      %s163 = smul.addr %s162, 13
      %s164 = smul.addr %s163, 4
      %s165 = scalar_lea.vmem %s0, %s164
      %p166 = scmp.lt.s32.totalorder %s14, 1
      %s167 = scalar_select %p166, %s14, 1
      %s168 = smul.addr %s167, 13
      %s169 = smul.addr %s168, 4
      %s170 = scalar_lea.vmem %s3, %s169
      %v172 = vld [vmem:[%s165] sm:$0xf]
      %v173 = vld [vmem:[%s165 + $0x4] sm:$0xf]
      %v174 = vld [vmem:[%s165 + $0x8] sm:$0xf]
      %v175 = vld [vmem:[%s165 + $0xc] sm:$0xf]
      %v176 = vld [vmem:[%s165 + $0x10] sm:$0xf]
      %v177 = vld [vmem:[%s165 + $0x14] sm:$0xf]
      %v178 = vld [vmem:[%s165 + $0x18] sm:$0xf]
      %v179 = vld [vmem:[%s165 + $0x1c] sm:$0xf]
      %v180 = vld [vmem:[%s165 + $0x20] sm:$0xf]
      %v181 = vld [vmem:[%s165 + $0x24] sm:$0x7]
      %v182 = vld [vmem:[%s1] sm:$0xf]
      %v183 = vld [vmem:[%s1 + $0x4] sm:$0xf]
      %v184 = vld [vmem:[%s1 + $0x8] sm:$0xf]
      %v185 = vld [vmem:[%s1 + $0xc] sm:$0xf]
      %v186 = vld [vmem:[%s165 + $0x24] sm:$0xf]
      %s187 = scalar_lea.vmem %s1, 16
      %v188 = vld [vmem:[%s187] sm:$0xf]
      %v189 = vld [vmem:[%s187 + $0x4] sm:$0xf]
      %v190 = vld [vmem:[%s187 + $0x8] sm:$0xf]
      %v191 = vld [vmem:[%s187 + $0xc] sm:$0xf]
      %v202 = vunpack.c.l.b16 %v172
      %v203 = vunpack.c.l.b16 %v173
      %v204 = vunpack.c.l.b16 %v174
      %v205 = vunpack.c.l.b16 %v175
      %v206 = vunpack.c.l.b16 %v176
      %v207 = vunpack.c.l.b16 %v177
      %v208 = vunpack.c.l.b16 %v178
      %v209 = vunpack.c.l.b16 %v179
      %v210 = vunpack.c.l.b16 %v180
      %v211 = vunpack.c.l.b16 %v186
      %v212 = vpack.c.b16 %v203, %v202
      %v213 = vpack.c.b16 %v205, %v204
      %v214 = vpack.c.b16 %v207, %v206
      %v215 = vpack.c.b16 %v209, %v208
      %v216 = vpack.c.b16 %v211, %v210
      %vm217 = vsmask.f32 7424
      %v219 = vshrl.u32 %v212, 16
      %v221 = vshll.u32 %v212, 16
      %v223 = vrot.slane %v221, 1
      %v224 = vor.u32 %v219, %v223
      %v226 = vshll.u32 %v213, 16
      %v228 = vrot.slane %v226, 1
      %v229 = vsel %vm217, %v224, %v228
      %v230 = vshrl.u32 %v213, 16
      %v232 = vor.u32 %v230, %v228
      %v234 = vshll.u32 %v214, 16
      %v236 = vrot.slane %v234, 1
      %v237 = vsel %vm217, %v232, %v236
      %v238 = vshrl.u32 %v214, 16
      %v240 = vor.u32 %v238, %v236
      %v242 = vshll.u32 %v215, 16
      %v244 = vrot.slane %v242, 1
      %v245 = vsel %vm217, %v240, %v244
      %v246 = vshrl.u32 %v215, 16
      %v248 = vor.u32 %v246, %v244
      %v250 = vshll.u32 %v216, 16
      %v252 = vrot.slane %v250, 1
      %v253 = vsel %vm217, %v248, %v252
      %v254 = vshrl.u32 %v216, 16
      %v256 = vor.u32 %v254, %v252
      %v261 = vunpack.c.l.b16 %v188
      %v262 = vunpack.c.l.b16 %v189
      %v263 = vunpack.c.l.b16 %v190
      %v264 = vunpack.c.l.b16 %v191
      %v265 = vpack.c.b16 %v262, %v261
      %v266 = vpack.c.b16 %v264, %v263
      %vm269 = vcmask 261120
      %v271 = vsel %vm269, %v229, 0
      %v274 = vsel %vm269, %v237, 0
      %v277 = vsel %vm269, %v245, 0
      %v280 = vsel %vm269, %v253, 0
      %v283 = vsel %vm269, %v256, 0
      %285 = vmatpush.bf16.msra.mxu0 0
      %286 = vmatpush.bf16.msra.mxu0 0
      %287 = vmatpush.bf16.msra.mxu0 0
      %288 = vmatpush.bf16.msra.mxu0 0
      %289 = vmatpush.bf16.msra.mxu0 0
      %290 = vmatpush.bf16.msra.mxu0 0
      %291 = vmatpush.bf16.msra.mxu0 %v266
      %292 = vmatpush.bf16.msra.mxu0 %v265
      %293 = vmatmul.bf16.gmra.mxu0 %v271
      %v294 = vpop.f32.mrf.mxu0
      %v295 = vadd.f32 0.0, %v294
      %v296 = vpop.f32.mrf.mxu0
      %v297 = vadd.f32 0.0, %v296
      %298 = vmatmul.bf16.gmra.mxu0 %v274
      %v299 = vpop.f32.mrf.mxu0
      %v300 = vadd.f32 0.0, %v299
      %v301 = vpop.f32.mrf.mxu0
      %v302 = vadd.f32 0.0, %v301
      %303 = vmatmul.bf16.gmra.mxu0 %v277
      %v304 = vpop.f32.mrf.mxu0
      %v305 = vadd.f32 0.0, %v304
      %v306 = vpop.f32.mrf.mxu0
      %v307 = vadd.f32 0.0, %v306
      %308 = vmatmul.bf16.gmra.mxu0 %v280
      %v309 = vpop.f32.mrf.mxu0
      %v310 = vadd.f32 0.0, %v309
      %v311 = vpop.f32.mrf.mxu0
      %v312 = vadd.f32 0.0, %v311
      %313 = vmatmul.bf16.gmra.mxu0 %v283
      %v314 = vpop.f32.mrf.mxu0
      %v315 = vadd.f32 0.0, %v314
      %v316 = vpop.f32.mrf.mxu0
      %v317 = vadd.f32 0.0, %v316
      %318 = vdwg.mxu0
      %v320 = vunpack.c.l.b16 %v181
      %v321 = vpack.c.b16 %v320, %v210
      %v326 = vunpack.c.l.b16 %v182
      %v327 = vunpack.c.l.b16 %v183
      %v328 = vunpack.c.l.b16 %v184
      %v329 = vunpack.c.l.b16 %v185
      %v330 = vpack.c.b16 %v327, %v326
      %v331 = vpack.c.b16 %v329, %v328
      %v334 = vsel %vm269, %v212, 0
      %v336 = vsel %vm269, %v213, 0
      %v338 = vsel %vm269, %v214, 0
      %v340 = vsel %vm269, %v215, 0
      %v343 = vsel %vm269, %v321, 0
      %345 = vmatpush.bf16.msra.mxu0 0
      %346 = vmatpush.bf16.msra.mxu0 0
      %347 = vmatpush.bf16.msra.mxu0 0
      %348 = vmatpush.bf16.msra.mxu0 0
      %349 = vmatpush.bf16.msra.mxu0 0
      %350 = vmatpush.bf16.msra.mxu0 0
      %351 = vmatpush.bf16.msra.mxu0 %v331
      %352 = vmatpush.bf16.msra.mxu0 %v330
      %353 = vmatmul.bf16.gmra.mxu0 %v334
      %v354 = vpop.f32.mrf.mxu0
      %v355 = vadd.f32 %v295, %v354
      %v356 = vpop.f32.mrf.mxu0
      %v357 = vadd.f32 %v297, %v356
      %358 = vmatmul.bf16.gmra.mxu0 %v336
      %v359 = vpop.f32.mrf.mxu0
      %v360 = vadd.f32 %v300, %v359
      %v361 = vpop.f32.mrf.mxu0
      %v362 = vadd.f32 %v302, %v361
      %363 = vmatmul.bf16.gmra.mxu0 %v338
      %v364 = vpop.f32.mrf.mxu0
      %v365 = vadd.f32 %v305, %v364
      %v366 = vpop.f32.mrf.mxu0
      %v367 = vadd.f32 %v307, %v366
      %368 = vmatmul.bf16.gmra.mxu0 %v340
      %v369 = vpop.f32.mrf.mxu0
      %v370 = vadd.f32 %v310, %v369
      %v371 = vpop.f32.mrf.mxu0
      %v372 = vadd.f32 %v312, %v371
      %373 = vmatmul.bf16.gmra.mxu0 %v343
      %v374 = vpop.f32.mrf.mxu0
      %v375 = vadd.f32 %v315, %v374
      %v376 = vpop.f32.mrf.mxu0
      %v377 = vadd.f32 %v317, %v376
      %378 = vdwg.mxu0
      %v379 = vld [vmem:[%s165] sm:$0xe]
      %s380 = scalar_lea.vmem %s1, 32
      %v381 = vld [vmem:[%s380] sm:$0xf]
      %v382 = vld [vmem:[%s380 + $0x4] sm:$0xf]
      %v383 = vld [vmem:[%s380 + $0x8] sm:$0xf]
      %v384 = vld [vmem:[%s380 + $0xc] sm:$0xf]
      %v386 = vunpack.c.l.b16 %v379
      %v387 = vpack.c.b16 %v203, %v386
      %vm388 = vcmask 1046528
      %v389 = vrot.slane %v387, 1
      %v390 = vrot.slane %v213, 1
      %v391 = vsel %vm388, %v389, %v390
      %v392 = vrot.slane %v214, 1
      %v393 = vsel %vm388, %v390, %v392
      %v394 = vrot.slane %v215, 1
      %v395 = vsel %vm388, %v392, %v394
      %v396 = vrot.slane %v216, 1
      %v397 = vsel %vm388, %v394, %v396
      %v402 = vunpack.c.l.b16 %v381
      %v403 = vunpack.c.l.b16 %v382
      %v404 = vunpack.c.l.b16 %v383
      %v405 = vunpack.c.l.b16 %v384
      %v406 = vpack.c.b16 %v403, %v402
      %v407 = vpack.c.b16 %v405, %v404
      %v411 = vsel %vm269, %v391, 0
      %v414 = vsel %vm269, %v393, 0
      %v417 = vsel %vm269, %v395, 0
      %v420 = vsel %vm269, %v397, 0
      %v423 = vsel %vm269, %v396, 0
      %425 = vmatpush.bf16.msra.mxu0 0
      %426 = vmatpush.bf16.msra.mxu0 0
      %427 = vmatpush.bf16.msra.mxu0 0
      %428 = vmatpush.bf16.msra.mxu0 0
      %429 = vmatpush.bf16.msra.mxu0 0
      %430 = vmatpush.bf16.msra.mxu0 0
      %431 = vmatpush.bf16.msra.mxu0 %v407
      %432 = vmatpush.bf16.msra.mxu0 %v406
      %433 = vmatmul.bf16.gmra.mxu0 %v411
      %v434 = vpop.f32.mrf.mxu0
      %v435 = vadd.f32 0.0, %v434
      %v436 = vpop.f32.mrf.mxu0
      %v437 = vadd.f32 0.0, %v436
      %438 = vmatmul.bf16.gmra.mxu0 %v414
      %v439 = vpop.f32.mrf.mxu0
      %v440 = vadd.f32 0.0, %v439
      %v441 = vpop.f32.mrf.mxu0
      %v442 = vadd.f32 0.0, %v441
      %443 = vmatmul.bf16.gmra.mxu0 %v417
      %v444 = vpop.f32.mrf.mxu0
      %v445 = vadd.f32 0.0, %v444
      %v446 = vpop.f32.mrf.mxu0
      %v447 = vadd.f32 0.0, %v446
      %448 = vmatmul.bf16.gmra.mxu0 %v420
      %v449 = vpop.f32.mrf.mxu0
      %v450 = vadd.f32 0.0, %v449
      %v451 = vpop.f32.mrf.mxu0
      %v452 = vadd.f32 0.0, %v451
      %453 = vmatmul.bf16.gmra.mxu0 %v423
      %v454 = vpop.f32.mrf.mxu0
      %v455 = vadd.f32 0.0, %v454
      %v456 = vpop.f32.mrf.mxu0
      %v457 = vadd.f32 0.0, %v456
      %458 = vdwg.mxu0
      %v459 = vadd.f32 %v355, %v435
      %v460 = vadd.f32 %v357, %v437
      %v461 = vadd.f32 %v360, %v440
      %v462 = vadd.f32 %v362, %v442
      %v463 = vadd.f32 %v365, %v445
      %v464 = vadd.f32 %v367, %v447
      %v465 = vadd.f32 %v370, %v450
      %v466 = vadd.f32 %v372, %v452
      %v467 = vadd.f32 %v375, %v455
      %v468 = vadd.f32 %v377, %v457
      %v469 = vld [vmem:[%s165 + $0x4] sm:$0xe]
      %v470 = vld [vmem:[%s165 + $0x8] sm:$0xf]
      %v471 = vld [vmem:[%s165 + $0xc] sm:$0xf]
      %v472 = vld [vmem:[%s165 + $0x10] sm:$0xf]
      %v473 = vld [vmem:[%s165 + $0x14] sm:$0xf]
      %v474 = vld [vmem:[%s165 + $0x18] sm:$0xf]
      %v475 = vld [vmem:[%s165 + $0x1c] sm:$0xf]
      %v476 = vld [vmem:[%s165 + $0x20] sm:$0xf]
      %v477 = vld [vmem:[%s165 + $0x24] sm:$0xf]
      %v478 = vld [vmem:[%s165 + $0x28] sm:$0xf]
      %s479 = scalar_lea.vmem %s1, 48
      %v480 = vld [vmem:[%s479] sm:$0xf]
      %v481 = vld [vmem:[%s479 + $0x4] sm:$0xf]
      %v482 = vld [vmem:[%s479 + $0x8] sm:$0xf]
      %v483 = vld [vmem:[%s479 + $0xc] sm:$0xf]
      %v494 = vunpack.c.l.b16 %v469
      %v495 = vunpack.c.l.b16 %v470
      %v496 = vunpack.c.l.b16 %v471
      %v497 = vunpack.c.l.b16 %v472
      %v498 = vunpack.c.l.b16 %v473
      %v499 = vunpack.c.l.b16 %v474
      %v500 = vunpack.c.l.b16 %v475
      %v501 = vunpack.c.l.b16 %v476
      %v502 = vunpack.c.l.b16 %v477
      %v503 = vunpack.c.l.b16 %v478
      %v504 = vpack.c.b16 %v495, %v494
      %v505 = vpack.c.b16 %v497, %v496
      %v506 = vpack.c.b16 %v499, %v498
      %v507 = vpack.c.b16 %v501, %v500
      %v508 = vpack.c.b16 %v503, %v502
      %v509 = vrot.slane %v504, 1
      %v510 = vrot.slane %v505, 1
      %v511 = vsel %vm388, %v509, %v510
      %v512 = vrot.slane %v506, 1
      %v513 = vsel %vm388, %v510, %v512
      %v514 = vrot.slane %v507, 1
      %v515 = vsel %vm388, %v512, %v514
      %v516 = vrot.slane %v508, 1
      %v517 = vsel %vm388, %v514, %v516
      %v522 = vunpack.c.l.b16 %v480
      %v523 = vunpack.c.l.b16 %v481
      %v524 = vunpack.c.l.b16 %v482
      %v525 = vunpack.c.l.b16 %v483
      %v526 = vpack.c.b16 %v523, %v522
      %v527 = vpack.c.b16 %v525, %v524
      %v531 = vsel %vm269, %v511, 0
      %v534 = vsel %vm269, %v513, 0
      %v537 = vsel %vm269, %v515, 0
      %v540 = vsel %vm269, %v517, 0
      %v543 = vsel %vm269, %v516, 0
      %545 = vmatpush.bf16.msra.mxu0 0
      %546 = vmatpush.bf16.msra.mxu0 0
      %547 = vmatpush.bf16.msra.mxu0 0
      %548 = vmatpush.bf16.msra.mxu0 0
      %549 = vmatpush.bf16.msra.mxu0 0
      %550 = vmatpush.bf16.msra.mxu0 0
      %551 = vmatpush.bf16.msra.mxu0 %v527
      %552 = vmatpush.bf16.msra.mxu0 %v526
      %553 = vmatmul.bf16.gmra.mxu0 %v531
      %v554 = vpop.f32.mrf.mxu0
      %v555 = vadd.f32 0.0, %v554
      %v556 = vpop.f32.mrf.mxu0
      %v557 = vadd.f32 0.0, %v556
      %558 = vmatmul.bf16.gmra.mxu0 %v534
      %v559 = vpop.f32.mrf.mxu0
      %v560 = vadd.f32 0.0, %v559
      %v561 = vpop.f32.mrf.mxu0
      %v562 = vadd.f32 0.0, %v561
      %563 = vmatmul.bf16.gmra.mxu0 %v537
      %v564 = vpop.f32.mrf.mxu0
      %v565 = vadd.f32 0.0, %v564
      %v566 = vpop.f32.mrf.mxu0
      %v567 = vadd.f32 0.0, %v566
      %568 = vmatmul.bf16.gmra.mxu0 %v540
      %v569 = vpop.f32.mrf.mxu0
      %v570 = vadd.f32 0.0, %v569
      %v571 = vpop.f32.mrf.mxu0
      %v572 = vadd.f32 0.0, %v571
      %573 = vmatmul.bf16.gmra.mxu0 %v543
      %v574 = vpop.f32.mrf.mxu0
      %v575 = vadd.f32 0.0, %v574
      %v576 = vpop.f32.mrf.mxu0
      %v577 = vadd.f32 0.0, %v576
      %578 = vdwg.mxu0
      %v579 = vadd.f32 %v459, %v555
      %v580 = vadd.f32 %v460, %v557
      %v581 = vadd.f32 %v461, %v560
      %v582 = vadd.f32 %v462, %v562
      %v583 = vadd.f32 %v463, %v565
      %v584 = vadd.f32 %v464, %v567
      %v585 = vadd.f32 %v465, %v570
      %v586 = vadd.f32 %v466, %v572
      %v587 = vadd.f32 %v467, %v575
      %v588 = vadd.f32 %v468, %v577
      %v589 = vld [vmem:[%s165 + $0x4] sm:$0xe]
      %v590 = vld [vmem:[%s165 + $0x8] sm:$0xf]
      %v591 = vld [vmem:[%s165 + $0xc] sm:$0xf]
      %v592 = vld [vmem:[%s165 + $0x10] sm:$0xf]
      %v593 = vld [vmem:[%s165 + $0x14] sm:$0xf]
      %v594 = vld [vmem:[%s165 + $0x18] sm:$0xf]
      %v595 = vld [vmem:[%s165 + $0x1c] sm:$0xf]
      %v596 = vld [vmem:[%s165 + $0x20] sm:$0xf]
      %v597 = vld [vmem:[%s165 + $0x24] sm:$0xf]
      %v598 = vld [vmem:[%s165 + $0x28] sm:$0xf]
      %v599 = vld [vmem:[%s165 + $0x2c] sm:$0x1]
      %s600 = scalar_lea.vmem %s1, 64
      %v601 = vld [vmem:[%s600] sm:$0xf]
      %v602 = vld [vmem:[%s600 + $0x4] sm:$0xf]
      %v603 = vld [vmem:[%s600 + $0x8] sm:$0xf]
      %v604 = vld [vmem:[%s600 + $0xc] sm:$0xf]
      %v616 = vunpack.c.l.b16 %v589
      %v617 = vunpack.c.l.b16 %v590
      %v618 = vunpack.c.l.b16 %v591
      %v619 = vunpack.c.l.b16 %v592
      %v620 = vunpack.c.l.b16 %v593
      %v621 = vunpack.c.l.b16 %v594
      %v622 = vunpack.c.l.b16 %v595
      %v623 = vunpack.c.l.b16 %v596
      %v624 = vunpack.c.l.b16 %v597
      %v625 = vunpack.c.l.b16 %v598
      %v626 = vunpack.c.l.b16 %v599
      %v627 = vpack.c.b16 %v617, %v616
      %v628 = vpack.c.b16 %v619, %v618
      %v629 = vpack.c.b16 %v621, %v620
      %v630 = vpack.c.b16 %v623, %v622
      %v631 = vpack.c.b16 %v625, %v624
      %v632 = vpack.c.b16 %v626, %v626
      %vm633 = vsmask.f32 6400
      %v635 = vshrl.u32 %v627, 16
      %v637 = vrot.slane %v635, 1
      %v638 = vshll.u32 %v627, 16
      %v640 = vrot.slane %v638, 2
      %v641 = vor.u32 %v637, %v640
      %v643 = vshrl.u32 %v628, 16
      %v645 = vrot.slane %v643, 1
      %v646 = vshll.u32 %v628, 16
      %v648 = vrot.slane %v646, 2
      %v649 = vor.u32 %v645, %v648
      %v650 = vsel %vm633, %v641, %v649
      %v652 = vshrl.u32 %v629, 16
      %v654 = vrot.slane %v652, 1
      %v655 = vshll.u32 %v629, 16
      %v657 = vrot.slane %v655, 2
      %v658 = vor.u32 %v654, %v657
      %v659 = vsel %vm633, %v649, %v658
      %v661 = vshrl.u32 %v630, 16
      %v663 = vrot.slane %v661, 1
      %v664 = vshll.u32 %v630, 16
      %v666 = vrot.slane %v664, 2
      %v667 = vor.u32 %v663, %v666
      %v668 = vsel %vm633, %v658, %v667
      %v670 = vshrl.u32 %v631, 16
      %v672 = vrot.slane %v670, 1
      %v673 = vshll.u32 %v631, 16
      %v675 = vrot.slane %v673, 2
      %v676 = vor.u32 %v672, %v675
      %v677 = vsel %vm633, %v667, %v676
      %v679 = vshll.u32 %v632, 16
      %v681 = vrot.slane %v679, 2
      %v682 = vsel %vm633, %v676, %v681
      %v687 = vunpack.c.l.b16 %v601
      %v688 = vunpack.c.l.b16 %v602
      %v689 = vunpack.c.l.b16 %v603
      %v690 = vunpack.c.l.b16 %v604
      %v691 = vpack.c.b16 %v688, %v687
      %v692 = vpack.c.b16 %v690, %v689
      %v696 = vsel %vm269, %v650, 0
      %v699 = vsel %vm269, %v659, 0
      %v702 = vsel %vm269, %v668, 0
      %v705 = vsel %vm269, %v677, 0
      %v708 = vsel %vm269, %v682, 0
      %710 = vmatpush.bf16.msra.mxu0 0
      %711 = vmatpush.bf16.msra.mxu0 0
      %712 = vmatpush.bf16.msra.mxu0 0
      %713 = vmatpush.bf16.msra.mxu0 0
      %714 = vmatpush.bf16.msra.mxu0 0
      %715 = vmatpush.bf16.msra.mxu0 0
      %716 = vmatpush.bf16.msra.mxu0 %v692
      %717 = vmatpush.bf16.msra.mxu0 %v691
      %718 = vmatmul.bf16.gmra.mxu0 %v696
      %v719 = vpop.f32.mrf.mxu0
      %v720 = vadd.f32 0.0, %v719
      %v721 = vpop.f32.mrf.mxu0
      %v722 = vadd.f32 0.0, %v721
      %723 = vmatmul.bf16.gmra.mxu0 %v699
      %v724 = vpop.f32.mrf.mxu0
      %v725 = vadd.f32 0.0, %v724
      %v726 = vpop.f32.mrf.mxu0
      %v727 = vadd.f32 0.0, %v726
      %728 = vmatmul.bf16.gmra.mxu0 %v702
      %v729 = vpop.f32.mrf.mxu0
      %v730 = vadd.f32 0.0, %v729
      %v731 = vpop.f32.mrf.mxu0
      %v732 = vadd.f32 0.0, %v731
      %733 = vmatmul.bf16.gmra.mxu0 %v705
      %v734 = vpop.f32.mrf.mxu0
      %v735 = vadd.f32 0.0, %v734
      %v736 = vpop.f32.mrf.mxu0
      %v737 = vadd.f32 0.0, %v736
      %738 = vmatmul.bf16.gmra.mxu0 %v708
      %v739 = vpop.f32.mrf.mxu0
      %v740 = vadd.f32 0.0, %v739
      %v741 = vpop.f32.mrf.mxu0
      %v742 = vadd.f32 0.0, %v741
      %743 = vdwg.mxu0
      %v744 = vadd.f32 %v579, %v720
      %v745 = vadd.f32 %v580, %v722
      %v746 = vadd.f32 %v581, %v725
      %v747 = vadd.f32 %v582, %v727
      %v748 = vadd.f32 %v583, %v730
      %v749 = vadd.f32 %v584, %v732
      %v750 = vadd.f32 %v585, %v735
      %v751 = vadd.f32 %v586, %v737
      %v752 = vadd.f32 %v587, %v740
      %v753 = vadd.f32 %v588, %v742
      %v754 = vld [vmem:[%s165 + $0x4] sm:$0xc]
      %s755 = scalar_lea.vmem %s1, 80
      %v756 = vld [vmem:[%s755] sm:$0xf]
      %v757 = vld [vmem:[%s755 + $0x4] sm:$0xf]
      %v758 = vld [vmem:[%s755 + $0x8] sm:$0xf]
      %v759 = vld [vmem:[%s755 + $0xc] sm:$0xf]
      %v761 = vunpack.c.l.b16 %v754
      %v762 = vpack.c.b16 %v617, %v761
      %vm763 = vcmask 1045504
      %v764 = vrot.slane %v762, 2
      %v765 = vrot.slane %v628, 2
      %v766 = vsel %vm763, %v764, %v765
      %v767 = vrot.slane %v629, 2
      %v768 = vsel %vm763, %v765, %v767
      %v769 = vrot.slane %v630, 2
      %v770 = vsel %vm763, %v767, %v769
      %v771 = vrot.slane %v631, 2
      %v772 = vsel %vm763, %v769, %v771
      %v773 = vrot.slane %v632, 2
      %v774 = vsel %vm763, %v771, %v773
      %v779 = vunpack.c.l.b16 %v756
      %v780 = vunpack.c.l.b16 %v757
      %v781 = vunpack.c.l.b16 %v758
      %v782 = vunpack.c.l.b16 %v759
      %v783 = vpack.c.b16 %v780, %v779
      %v784 = vpack.c.b16 %v782, %v781
      %v788 = vsel %vm269, %v766, 0
      %v791 = vsel %vm269, %v768, 0
      %v794 = vsel %vm269, %v770, 0
      %v797 = vsel %vm269, %v772, 0
      %v800 = vsel %vm269, %v774, 0
      %802 = vmatpush.bf16.msra.mxu0 0
      %803 = vmatpush.bf16.msra.mxu0 0
      %804 = vmatpush.bf16.msra.mxu0 0
      %805 = vmatpush.bf16.msra.mxu0 0
      %806 = vmatpush.bf16.msra.mxu0 0
      %807 = vmatpush.bf16.msra.mxu0 0
      %808 = vmatpush.bf16.msra.mxu0 %v784
      %809 = vmatpush.bf16.msra.mxu0 %v783
      %810 = vmatmul.bf16.gmra.mxu0 %v788
      %v811 = vpop.f32.mrf.mxu0
      %v812 = vadd.f32 0.0, %v811
      %v813 = vpop.f32.mrf.mxu0
      %v814 = vadd.f32 0.0, %v813
      %815 = vmatmul.bf16.gmra.mxu0 %v791
      %v816 = vpop.f32.mrf.mxu0
      %v817 = vadd.f32 0.0, %v816
      %v818 = vpop.f32.mrf.mxu0
      %v819 = vadd.f32 0.0, %v818
      %820 = vmatmul.bf16.gmra.mxu0 %v794
      %v821 = vpop.f32.mrf.mxu0
      %v822 = vadd.f32 0.0, %v821
      %v823 = vpop.f32.mrf.mxu0
      %v824 = vadd.f32 0.0, %v823
      %825 = vmatmul.bf16.gmra.mxu0 %v797
      %v826 = vpop.f32.mrf.mxu0
      %v827 = vadd.f32 0.0, %v826
      %v828 = vpop.f32.mrf.mxu0
      %v829 = vadd.f32 0.0, %v828
      %830 = vmatmul.bf16.gmra.mxu0 %v800
      %v831 = vpop.f32.mrf.mxu0
      %v832 = vadd.f32 0.0, %v831
      %v833 = vpop.f32.mrf.mxu0
      %v834 = vadd.f32 0.0, %v833
      %835 = vdwg.mxu0
      %v836 = vadd.f32 %v744, %v812
      %v837 = vadd.f32 %v745, %v814
      %v838 = vadd.f32 %v746, %v817
      %v839 = vadd.f32 %v747, %v819
      %v840 = vadd.f32 %v748, %v822
      %v841 = vadd.f32 %v749, %v824
      %v842 = vadd.f32 %v750, %v827
      %v843 = vadd.f32 %v751, %v829
      %v844 = vadd.f32 %v752, %v832
      %v845 = vadd.f32 %v753, %v834
      %v846 = vld [vmem:[%s165 + $0x8] sm:$0xc]
      %v847 = vld [vmem:[%s165 + $0xc] sm:$0xf]
      %v848 = vld [vmem:[%s165 + $0x10] sm:$0xf]
      %v849 = vld [vmem:[%s165 + $0x14] sm:$0xf]
      %v850 = vld [vmem:[%s165 + $0x18] sm:$0xf]
      %v851 = vld [vmem:[%s165 + $0x1c] sm:$0xf]
      %v852 = vld [vmem:[%s165 + $0x20] sm:$0xf]
      %v853 = vld [vmem:[%s165 + $0x24] sm:$0xf]
      %v854 = vld [vmem:[%s165 + $0x28] sm:$0xf]
      %v855 = vld [vmem:[%s165 + $0x2c] sm:$0xf]
      %v856 = vld [vmem:[%s165 + $0x30] sm:$0x1]
      %s857 = scalar_lea.vmem %s1, 96
      %v858 = vld [vmem:[%s857] sm:$0xf]
      %v859 = vld [vmem:[%s857 + $0x4] sm:$0xf]
      %v860 = vld [vmem:[%s857 + $0x8] sm:$0xf]
      %v861 = vld [vmem:[%s857 + $0xc] sm:$0xf]
      %v873 = vunpack.c.l.b16 %v846
      %v874 = vunpack.c.l.b16 %v847
      %v875 = vunpack.c.l.b16 %v848
      %v876 = vunpack.c.l.b16 %v849
      %v877 = vunpack.c.l.b16 %v850
      %v878 = vunpack.c.l.b16 %v851
      %v879 = vunpack.c.l.b16 %v852
      %v880 = vunpack.c.l.b16 %v853
      %v881 = vunpack.c.l.b16 %v854
      %v882 = vunpack.c.l.b16 %v855
      %v883 = vunpack.c.l.b16 %v856
      %v884 = vpack.c.b16 %v874, %v873
      %v885 = vpack.c.b16 %v876, %v875
      %v886 = vpack.c.b16 %v878, %v877
      %v887 = vpack.c.b16 %v880, %v879
      %v888 = vpack.c.b16 %v882, %v881
      %v889 = vpack.c.b16 %v883, %v883
      %v890 = vrot.slane %v884, 2
      %v891 = vrot.slane %v885, 2
      %v892 = vsel %vm763, %v890, %v891
      %v893 = vrot.slane %v886, 2
      %v894 = vsel %vm763, %v891, %v893
      %v895 = vrot.slane %v887, 2
      %v896 = vsel %vm763, %v893, %v895
      %v897 = vrot.slane %v888, 2
      %v898 = vsel %vm763, %v895, %v897
      %v899 = vrot.slane %v889, 2
      %v900 = vsel %vm763, %v897, %v899
      %v905 = vunpack.c.l.b16 %v858
      %v906 = vunpack.c.l.b16 %v859
      %v907 = vunpack.c.l.b16 %v860
      %v908 = vunpack.c.l.b16 %v861
      %v909 = vpack.c.b16 %v906, %v905
      %v910 = vpack.c.b16 %v908, %v907
      %v914 = vsel %vm269, %v892, 0
      %v917 = vsel %vm269, %v894, 0
      %v920 = vsel %vm269, %v896, 0
      %v923 = vsel %vm269, %v898, 0
      %v926 = vsel %vm269, %v900, 0
      %928 = vmatpush.bf16.msra.mxu0 0
      %929 = vmatpush.bf16.msra.mxu0 0
      %930 = vmatpush.bf16.msra.mxu0 0
      %931 = vmatpush.bf16.msra.mxu0 0
      %932 = vmatpush.bf16.msra.mxu0 0
      %933 = vmatpush.bf16.msra.mxu0 0
      %934 = vmatpush.bf16.msra.mxu0 %v910
      %935 = vmatpush.bf16.msra.mxu0 %v909
      %936 = vmatmul.bf16.gmra.mxu0 %v914
      %v937 = vpop.f32.mrf.mxu0
      %v938 = vadd.f32 0.0, %v937
      %v939 = vpop.f32.mrf.mxu0
      %v940 = vadd.f32 0.0, %v939
      %941 = vmatmul.bf16.gmra.mxu0 %v917
      %v942 = vpop.f32.mrf.mxu0
      %v943 = vadd.f32 0.0, %v942
      %v944 = vpop.f32.mrf.mxu0
      %v945 = vadd.f32 0.0, %v944
      %946 = vmatmul.bf16.gmra.mxu0 %v920
      %v947 = vpop.f32.mrf.mxu0
      %v948 = vadd.f32 0.0, %v947
      %v949 = vpop.f32.mrf.mxu0
      %v950 = vadd.f32 0.0, %v949
      %951 = vmatmul.bf16.gmra.mxu0 %v923
      %v952 = vpop.f32.mrf.mxu0
      %v953 = vadd.f32 0.0, %v952
      %v954 = vpop.f32.mrf.mxu0
      %v955 = vadd.f32 0.0, %v954
      %956 = vmatmul.bf16.gmra.mxu0 %v926
      %v957 = vpop.f32.mrf.mxu0
      %v958 = vadd.f32 0.0, %v957
      %v959 = vpop.f32.mrf.mxu0
      %v960 = vadd.f32 0.0, %v959
      %961 = vdwg.mxu0
      %v962 = vadd.f32 %v836, %v938
      %v963 = vadd.f32 %v837, %v940
      %v964 = vadd.f32 %v838, %v943
      %v965 = vadd.f32 %v839, %v945
      %v966 = vadd.f32 %v840, %v948
      %v967 = vadd.f32 %v841, %v950
      %v968 = vadd.f32 %v842, %v953
      %v969 = vadd.f32 %v843, %v955
      %v970 = vadd.f32 %v844, %v958
      %v971 = vadd.f32 %v845, %v960
      %v972 = vld [vmem:[%s165 + $0x30] sm:$0x3]
      %s973 = scalar_lea.vmem %s1, 112
      %v974 = vld [vmem:[%s973] sm:$0xf]
      %v975 = vld [vmem:[%s973 + $0x4] sm:$0xf]
      %v976 = vld [vmem:[%s973 + $0x8] sm:$0xf]
      %v977 = vld [vmem:[%s973 + $0xc] sm:$0xf]
      %v979 = vunpack.c.l.b16 %v972
      %v980 = vpack.c.b16 %v979, %v979
      %vm981 = vsmask.f32 5376
      %v983 = vshrl.u32 %v884, 16
      %v985 = vrot.slane %v983, 2
      %v986 = vshll.u32 %v884, 16
      %v988 = vrot.slane %v986, 3
      %v989 = vor.u32 %v985, %v988
      %v991 = vshrl.u32 %v885, 16
      %v993 = vrot.slane %v991, 2
      %v994 = vshll.u32 %v885, 16
      %v996 = vrot.slane %v994, 3
      %v997 = vor.u32 %v993, %v996
      %v998 = vsel %vm981, %v989, %v997
      %v1000 = vshrl.u32 %v886, 16
      %v1002 = vrot.slane %v1000, 2
      %v1003 = vshll.u32 %v886, 16
      %v1005 = vrot.slane %v1003, 3
      %v1006 = vor.u32 %v1002, %v1005
      %v1007 = vsel %vm981, %v997, %v1006
      %v1009 = vshrl.u32 %v887, 16
      %v1011 = vrot.slane %v1009, 2
      %v1012 = vshll.u32 %v887, 16
      %v1014 = vrot.slane %v1012, 3
      %v1015 = vor.u32 %v1011, %v1014
      %v1016 = vsel %vm981, %v1006, %v1015
      %v1018 = vshrl.u32 %v888, 16
      %v1020 = vrot.slane %v1018, 2
      %v1021 = vshll.u32 %v888, 16
      %v1023 = vrot.slane %v1021, 3
      %v1024 = vor.u32 %v1020, %v1023
      %v1025 = vsel %vm981, %v1015, %v1024
      %v1027 = vshrl.u32 %v980, 16
      %v1029 = vrot.slane %v1027, 2
      %v1030 = vshll.u32 %v980, 16
      %v1032 = vrot.slane %v1030, 3
      %v1033 = vor.u32 %v1029, %v1032
      %v1034 = vsel %vm981, %v1024, %v1033
      %v1039 = vunpack.c.l.b16 %v974
      %v1040 = vunpack.c.l.b16 %v975
      %v1041 = vunpack.c.l.b16 %v976
      %v1042 = vunpack.c.l.b16 %v977
      %v1043 = vpack.c.b16 %v1040, %v1039
      %v1044 = vpack.c.b16 %v1042, %v1041
      %v1048 = vsel %vm269, %v998, 0
      %v1051 = vsel %vm269, %v1007, 0
      %v1054 = vsel %vm269, %v1016, 0
      %v1057 = vsel %vm269, %v1025, 0
      %v1060 = vsel %vm269, %v1034, 0
      %1062 = vmatpush.bf16.msra.mxu0 0
      %1063 = vmatpush.bf16.msra.mxu0 0
      %1064 = vmatpush.bf16.msra.mxu0 0
      %1065 = vmatpush.bf16.msra.mxu0 0
      %1066 = vmatpush.bf16.msra.mxu0 0
      %1067 = vmatpush.bf16.msra.mxu0 0
      %1068 = vmatpush.bf16.msra.mxu0 %v1044
      %1069 = vmatpush.bf16.msra.mxu0 %v1043
      %1070 = vmatmul.bf16.gmra.mxu0 %v1048
      %v1071 = vpop.f32.mrf.mxu0
      %v1072 = vadd.f32 0.0, %v1071
      %v1073 = vpop.f32.mrf.mxu0
      %v1074 = vadd.f32 0.0, %v1073
      %1075 = vmatmul.bf16.gmra.mxu0 %v1051
      %v1076 = vpop.f32.mrf.mxu0
      %v1077 = vadd.f32 0.0, %v1076
      %v1078 = vpop.f32.mrf.mxu0
      %v1079 = vadd.f32 0.0, %v1078
      %1080 = vmatmul.bf16.gmra.mxu0 %v1054
      %v1081 = vpop.f32.mrf.mxu0
      %v1082 = vadd.f32 0.0, %v1081
      %v1083 = vpop.f32.mrf.mxu0
      %v1084 = vadd.f32 0.0, %v1083
      %1085 = vmatmul.bf16.gmra.mxu0 %v1057
      %v1086 = vpop.f32.mrf.mxu0
      %v1087 = vadd.f32 0.0, %v1086
      %v1088 = vpop.f32.mrf.mxu0
      %v1089 = vadd.f32 0.0, %v1088
      %1090 = vmatmul.bf16.gmra.mxu0 %v1060
      %v1091 = vpop.f32.mrf.mxu0
      %v1092 = vadd.f32 0.0, %v1091
      %v1093 = vpop.f32.mrf.mxu0
      %v1094 = vadd.f32 0.0, %v1093
      %1095 = vdwg.mxu0
      %v1096 = vadd.f32 %v962, %v1072
      %v1097 = vadd.f32 %v963, %v1074
      %v1098 = vadd.f32 %v964, %v1077
      %v1099 = vadd.f32 %v965, %v1079
      %v1100 = vadd.f32 %v966, %v1082
      %v1101 = vadd.f32 %v967, %v1084
      %v1102 = vadd.f32 %v968, %v1087
      %v1103 = vadd.f32 %v969, %v1089
      %v1104 = vadd.f32 %v970, %v1092
      %v1105 = vadd.f32 %v971, %v1094
      %v1106 = vld [vmem:[%s165 + $0x8] sm:$0x8]
      %s1107 = scalar_lea.vmem %s1, 128
      %v1108 = vld [vmem:[%s1107] sm:$0xf]
      %v1109 = vld [vmem:[%s1107 + $0x4] sm:$0xf]
      %v1110 = vld [vmem:[%s1107 + $0x8] sm:$0xf]
      %v1111 = vld [vmem:[%s1107 + $0xc] sm:$0xf]
      %v1113 = vunpack.c.l.b16 %v1106
      %v1114 = vpack.c.b16 %v874, %v1113
      %vm1115 = vcmask 1044480
      %v1116 = vrot.slane %v1114, 3
      %v1117 = vrot.slane %v885, 3
      %v1118 = vsel %vm1115, %v1116, %v1117
      %v1119 = vrot.slane %v886, 3
      %v1120 = vsel %vm1115, %v1117, %v1119
      %v1121 = vrot.slane %v887, 3
      %v1122 = vsel %vm1115, %v1119, %v1121
      %v1123 = vrot.slane %v888, 3
      %v1124 = vsel %vm1115, %v1121, %v1123
      %v1125 = vrot.slane %v980, 3
      %v1126 = vsel %vm1115, %v1123, %v1125
      %v1131 = vunpack.c.l.b16 %v1108
      %v1132 = vunpack.c.l.b16 %v1109
      %v1133 = vunpack.c.l.b16 %v1110
      %v1134 = vunpack.c.l.b16 %v1111
      %v1135 = vpack.c.b16 %v1132, %v1131
      %v1136 = vpack.c.b16 %v1134, %v1133
      %v1140 = vsel %vm269, %v1118, 0
      %v1143 = vsel %vm269, %v1120, 0
      %v1146 = vsel %vm269, %v1122, 0
      %v1149 = vsel %vm269, %v1124, 0
      %v1152 = vsel %vm269, %v1126, 0
      %1154 = vmatpush.bf16.msra.mxu0 0
      %1155 = vmatpush.bf16.msra.mxu0 0
      %1156 = vmatpush.bf16.msra.mxu0 0
      %1157 = vmatpush.bf16.msra.mxu0 0
      %1158 = vmatpush.bf16.msra.mxu0 0
      %1159 = vmatpush.bf16.msra.mxu0 0
      %1160 = vmatpush.bf16.msra.mxu0 %v1136
      %1161 = vmatpush.bf16.msra.mxu0 %v1135
      %1162 = vmatmul.bf16.gmra.mxu0 %v1140
      %v1163 = vpop.f32.mrf.mxu0
      %v1164 = vadd.f32 0.0, %v1163
      %v1165 = vpop.f32.mrf.mxu0
      %v1166 = vadd.f32 0.0, %v1165
      %1167 = vmatmul.bf16.gmra.mxu0 %v1143
      %v1168 = vpop.f32.mrf.mxu0
      %v1169 = vadd.f32 0.0, %v1168
      %v1170 = vpop.f32.mrf.mxu0
      %v1171 = vadd.f32 0.0, %v1170
      %1172 = vmatmul.bf16.gmra.mxu0 %v1146
      %v1173 = vpop.f32.mrf.mxu0
      %v1174 = vadd.f32 0.0, %v1173
      %v1175 = vpop.f32.mrf.mxu0
      %v1176 = vadd.f32 0.0, %v1175
      %1177 = vmatmul.bf16.gmra.mxu0 %v1149
      %v1178 = vpop.f32.mrf.mxu0
      %v1179 = vadd.f32 0.0, %v1178
      %v1180 = vpop.f32.mrf.mxu0
      %v1181 = vadd.f32 0.0, %v1180
      %1182 = vmatmul.bf16.gmra.mxu0 %v1152
      %v1183 = vpop.f32.mrf.mxu0
      %v1184 = vadd.f32 0.0, %v1183
      %v1185 = vpop.f32.mrf.mxu0
      %v1186 = vadd.f32 0.0, %v1185
      %1187 = vdwg.mxu0
      %v1188 = vadd.f32 %v1096, %v1164
      %v1189 = vadd.f32 %v1097, %v1166
      %v1190 = vadd.f32 %v1098, %v1169
      %v1191 = vadd.f32 %v1099, %v1171
      %v1192 = vadd.f32 %v1100, %v1174
      %v1193 = vadd.f32 %v1101, %v1176
      %v1194 = vadd.f32 %v1102, %v1179
      %v1195 = vadd.f32 %v1103, %v1181
      %v1196 = vadd.f32 %v1104, %v1184
      %v1197 = vadd.f32 %v1105, %v1186
      %v1198 = vld [vmem:[%s2] sm:$0x1]
      %vm1199 = vcmask 519168
      %1200 = vst.msk [vmem:[%s170] sm:$0xf] %vm1199, 0
      %1201 = vst.msk [vmem:[%s170 + $0x4] sm:$0xf] %vm1199, 0
      %1202 = vst.msk [vmem:[%s170 + $0x8] sm:$0xf] %vm1199, 0
      %1203 = vst.msk [vmem:[%s170 + $0xc] sm:$0xf] %vm1199, 0
      %1204 = vst.msk [vmem:[%s170 + $0x10] sm:$0xf] %vm1199, 0
      %1205 = vst.msk [vmem:[%s170 + $0x14] sm:$0xf] %vm1199, 0
      %1206 = vst.msk [vmem:[%s170 + $0x18] sm:$0xf] %vm1199, 0
      %1207 = vst.msk [vmem:[%s170 + $0x1c] sm:$0xf] %vm1199, 0
      %1208 = vst.msk [vmem:[%s170 + $0x20] sm:$0xf] %vm1199, 0
      %1209 = vst.msk [vmem:[%s170 + $0x24] sm:$0xf] %vm1199, 0
      %1210 = vst.msk [vmem:[%s170 + $0x28] sm:$0xf] %vm1199, 0
      %1211 = vst.msk [vmem:[%s170 + $0x2c] sm:$0xf] %vm1199, 0
      %vm1212 = vcmask 517120
      %1213 = vst.msk [vmem:[%s170 + $0x30] sm:$0x3] %vm1212, 0
      %v1215 = vperm.slane %v1198, 0
      %v1217 = vadd.f32 %v1188, %v1215
      %v1218 = vmax.f32 %v1217, 0.0
      %v1219 = vpack.c.bf16 %v1218, %v1218
      %v1221 = vshrl.u32 %v1219, 16
      %v1223 = vrot.slane %v1221, 6
      %v1224 = vshll.u32 %v1219, 16
      %v1226 = vrot.slane %v1224, 7
      %v1227 = vor.u32 %v1223, %v1226
      %v1228 = vrot.slane %v1227, 4
      %vm1231 = vcmask 519169
      %vm1232 = vsmask.f32 7942
      %vm1233 = vmand %vm1231, %vm1232
      %v1234 = vld [vmem:[%s170 + $0x4] sm:$0xe]
      %v1235 = vsel %vm1233, %v1227, %v1234
      %1236 = vst [vmem:[%s170 + $0x4] sm:$0xe] %v1235
      %vm1237 = vcmask 517120
      %vm1238 = vsmask.f32 1280
      %vm1239 = vmand %vm1237, %vm1238
      %v1240 = vld [vmem:[%s170 + $0x8] sm:$0x3]
      %v1241 = vsel %vm1239, %v1228, %v1240
      %1242 = vst [vmem:[%s170 + $0x8] sm:$0x3] %v1241
      %v1243 = vadd.f32 %v1189, %v1215
      %v1244 = vadd.f32 %v1190, %v1215
      %v1245 = vmax.f32 %v1243, 0.0
      %v1246 = vmax.f32 %v1244, 0.0
      %v1247 = vpack.c.bf16 %v1245, %v1245
      %v1248 = vpack.c.bf16 %v1246, %v1246
      %vm1249 = vsmask.f32 5392
      %vm1250 = vmor %vm1238, %vm1249
      %v1252 = vshrl.u32 %v1247, 16
      %v1254 = vrot.slane %v1252, 6
      %v1255 = vshll.u32 %v1247, 16
      %v1257 = vrot.slane %v1255, 7
      %v1258 = vor.u32 %v1254, %v1257
      %v1259 = vrot.slane %v1258, 4
      %v1261 = vshrl.u32 %v1248, 16
      %v1263 = vrot.slane %v1261, 6
      %v1264 = vshll.u32 %v1248, 16
      %v1266 = vrot.slane %v1264, 7
      %v1267 = vor.u32 %v1263, %v1266
      %v1268 = vsel %vm1250, %v1259, %v1267
      %vm1271 = vcmask 519170
      %vm1272 = vsmask.f32 7946
      %vm1273 = vmand %vm1271, %vm1272
      %v1274 = vld [vmem:[%s170 + $0x8] sm:$0xc]
      %v1275 = vsel %vm1273, %v1258, %v1274
      %1276 = vst [vmem:[%s170 + $0x8] sm:$0xc] %v1275
      %vm1277 = vcmask 518144
      %vm1278 = vsmask.f32 2304
      %vm1279 = vmand %vm1277, %vm1278
      %v1280 = vld [vmem:[%s170 + $0xc] sm:$0x7]
      %v1281 = vsel %vm1279, %v1268, %v1280
      %1282 = vst [vmem:[%s170 + $0xc] sm:$0x7] %v1281
      %v1283 = vadd.f32 %v1191, %v1215
      %v1284 = vmax.f32 %v1283, 0.0
      %v1285 = vpack.c.bf16 %v1284, %v1284
      %v1286 = vrot.slane %v1267, 4
      %v1288 = vshrl.u32 %v1285, 16
      %v1290 = vrot.slane %v1288, 6
      %v1291 = vshll.u32 %v1285, 16
      %v1293 = vrot.slane %v1291, 7
      %v1294 = vor.u32 %v1290, %v1293
      %v1295 = vsel %vm1250, %v1286, %v1294
      %vm1298 = vcmask 519171
      %vm1299 = vsmask.f32 7950
      %vm1300 = vmand %vm1298, %vm1299
      %v1301 = vld [vmem:[%s170 + $0xc] sm:$0x8]
      %v1302 = vsel %vm1300, %v1266, %v1301
      %1303 = vst [vmem:[%s170 + $0xc] sm:$0x8] %v1302
      %vm1304 = vcmask 519168
      %vm1305 = vsmask.f32 3328
      %vm1306 = vmand %vm1304, %vm1305
      %v1307 = vld [vmem:[%s170 + $0x10] sm:$0xf]
      %v1308 = vsel %vm1306, %v1295, %v1307
      %1309 = vst [vmem:[%s170 + $0x10] sm:$0xf] %v1308
      %v1310 = vadd.f32 %v1192, %v1215
      %v1311 = vmax.f32 %v1310, 0.0
      %v1312 = vpack.c.bf16 %v1311, %v1311
      %v1313 = vrot.slane %v1294, 4
      %v1315 = vshrl.u32 %v1312, 16
      %v1317 = vrot.slane %v1315, 6
      %v1318 = vshll.u32 %v1312, 16
      %v1320 = vrot.slane %v1318, 7
      %v1321 = vor.u32 %v1317, %v1320
      %v1322 = vsel %vm1250, %v1313, %v1321
      %v1323 = vrot.slane %v1317, 4
      %vm1326 = vsmask.f32 7938
      %vm1327 = vmand %vm1304, %vm1326
      %v1328 = vld [vmem:[%s170 + $0x14] sm:$0xf]
      %v1329 = vsel %vm1327, %v1322, %v1328
      %1330 = vst [vmem:[%s170 + $0x14] sm:$0xf] %v1329
      %vm1331 = vcmask 516096
      %vm1332 = vsmask.f32 256
      %vm1333 = vmand %vm1331, %vm1332
      %v1334 = vld [vmem:[%s170 + $0x18] sm:$0x1]
      %v1335 = vsel %vm1333, %v1323, %v1334
      %1336 = vst [vmem:[%s170 + $0x18] sm:$0x1] %v1335
      %v1337 = vadd.f32 %v1193, %v1215
      %v1338 = vmax.f32 %v1337, 0.0
      %v1339 = vpack.c.bf16 %v1338, %v1338
      %v1341 = vshrl.u32 %v1339, 16
      %v1343 = vrot.slane %v1341, 6
      %v1344 = vshll.u32 %v1339, 16
      %v1346 = vrot.slane %v1344, 7
      %v1347 = vor.u32 %v1343, %v1346
      %v1348 = vrot.slane %v1347, 4
      %v1351 = vld [vmem:[%s170 + $0x18] sm:$0xe]
      %v1352 = vsel %vm1233, %v1347, %v1351
      %1353 = vst [vmem:[%s170 + $0x18] sm:$0xe] %v1352
      %v1354 = vld [vmem:[%s170 + $0x1c] sm:$0x3]
      %v1355 = vsel %vm1239, %v1348, %v1354
      %1356 = vst [vmem:[%s170 + $0x1c] sm:$0x3] %v1355
      %v1357 = vadd.f32 %v1194, %v1215
      %v1358 = vadd.f32 %v1195, %v1215
      %v1359 = vmax.f32 %v1357, 0.0
      %v1360 = vmax.f32 %v1358, 0.0
      %v1361 = vpack.c.bf16 %v1359, %v1359
      %v1362 = vpack.c.bf16 %v1360, %v1360
      %v1364 = vshrl.u32 %v1361, 16
      %v1366 = vrot.slane %v1364, 6
      %v1367 = vshll.u32 %v1361, 16
      %v1369 = vrot.slane %v1367, 7
      %v1370 = vor.u32 %v1366, %v1369
      %v1371 = vrot.slane %v1370, 4
      %v1373 = vshrl.u32 %v1362, 16
      %v1375 = vrot.slane %v1373, 6
      %v1376 = vshll.u32 %v1362, 16
      %v1378 = vrot.slane %v1376, 7
      %v1379 = vor.u32 %v1375, %v1378
      %v1380 = vsel %vm1250, %v1371, %v1379
      %v1383 = vld [vmem:[%s170 + $0x1c] sm:$0xc]
      %v1384 = vsel %vm1273, %v1370, %v1383
      %1385 = vst [vmem:[%s170 + $0x1c] sm:$0xc] %v1384
      %v1386 = vld [vmem:[%s170 + $0x20] sm:$0x7]
      %v1387 = vsel %vm1279, %v1380, %v1386
      %1388 = vst [vmem:[%s170 + $0x20] sm:$0x7] %v1387
      %v1389 = vadd.f32 %v1196, %v1215
      %v1390 = vmax.f32 %v1389, 0.0
      %v1391 = vpack.c.bf16 %v1390, %v1390
      %v1392 = vrot.slane %v1379, 4
      %v1394 = vshrl.u32 %v1391, 16
      %v1396 = vrot.slane %v1394, 6
      %v1397 = vshll.u32 %v1391, 16
      %v1399 = vrot.slane %v1397, 7
      %v1400 = vor.u32 %v1396, %v1399
      %v1401 = vsel %vm1250, %v1392, %v1400
      %v1404 = vld [vmem:[%s170 + $0x20] sm:$0x8]
      %v1405 = vsel %vm1300, %v1378, %v1404
      %1406 = vst [vmem:[%s170 + $0x20] sm:$0x8] %v1405
      %v1407 = vld [vmem:[%s170 + $0x24] sm:$0xf]
      %v1408 = vsel %vm1306, %v1401, %v1407
      %1409 = vst [vmem:[%s170 + $0x24] sm:$0xf] %v1408
      %v1410 = vadd.f32 %v1197, %v1215
      %v1411 = vmax.f32 %v1410, 0.0
      %v1412 = vpack.c.bf16 %v1411, %v1411
      %v1413 = vrot.slane %v1400, 4
      %v1415 = vshrl.u32 %v1412, 16
      %v1417 = vrot.slane %v1415, 6
      %v1418 = vshll.u32 %v1412, 16
      %v1420 = vrot.slane %v1418, 7
      %v1421 = vor.u32 %v1417, %v1420
      %v1422 = vsel %vm1250, %v1413, %v1421
      %v1423 = vrot.slane %v1417, 4
      %v1426 = vld [vmem:[%s170 + $0x28] sm:$0xf]
      %v1427 = vsel %vm1327, %v1422, %v1426
      %1428 = vst [vmem:[%s170 + $0x28] sm:$0xf] %v1427
      %v1429 = vld [vmem:[%s170 + $0x2c] sm:$0x1]
      %v1430 = vsel %vm1333, %v1423, %v1429
      %1431 = vst [vmem:[%s170 + $0x2c] sm:$0x1] %v1430
      %p1432 = scmp.lt.s32.totalorder %s14, 1
      %s1433 = scalar_select %p1432, %s14, 1
      %s1434 = smul.addr %s1433, 13
      %s1435 = smul.addr %s1434, 4
      %s1436 = scalar_lea.vmem %s3, %s1435
      // Predicated region
      $region33: #{residual_block_forward.3} parent=31 // pred_check
        %p1437 = pneg %p100
      $region34: #{residual_block_forward.3} parent=31 // pred_check_branch
        %1439 = sbr.rel (%p1437) target = $region36
      $region35: #{residual_block_forward.3} parent=31 // pred_region
        _
      $region36: #{residual_block_forward.3} parent=31 // pred_fallthru
        _
    $region32: #{residual_block_forward.3} parent=5 // pred_fallthru
      _
    %p1440 = scmp.le.s32.totalorder 2, %s9
    // Predicated region
    $region37: #{residual_block_forward.3} parent=5 // pred_check
      %p1441 = pneg %p1440
    $region38: #{residual_block_forward.3} parent=5 // pred_check_branch
      %1443 = sbr.rel (%p1441) target = $region40
    $region39: #{residual_block_forward.3} parent=5 // pred_region
      %s1444 = ssub.s32 %s9, 2
      // Predicated region
      $region41: #{residual_block_forward.3} parent=39 // pred_check
        %p1445 = pneg %p106
      $region42: #{residual_block_forward.3} parent=39 // pred_check_branch
        %1447 = sbr.rel (%p1445) target = $region44
      $region43: #{residual_block_forward.3} parent=39 // pred_region
        %p1448 = scmp.lt.s32.totalorder %s15, 1
        %s1449 = scalar_select %p1448, %s15, 1
        %s1450 = smul.addr %s1449, 13
        %s1451 = smul.addr %s1450, 4
        %s1452 = scalar_lea.vmem %s3, %s1451
      $region44: #{residual_block_forward.3} parent=39 // pred_fallthru
        _
    $region40: #{residual_block_forward.3} parent=5 // pred_fallthru
      _
  $region6: #{residual_block_forward.3} parent=0 // loop_footer
    %s13 = sadd.s32 1, %s9
  $region7: #{residual_block_forward.3} parent=0 // loop_footer_branch
    %8 = sbr.rel target = $region3
  $region8: #{residual_block_forward.3} parent=0 // loop_exit
    _

// kernel: residual_block_forward.4
$region0: #{residual_block_forward.4}
  #allocation0 [shape = 'u32[]', space=smem, size = 0x4, offset = 0x4, fixed_abs, tag = 'smem constant byte address 0x4 - core index']
  #allocation1 [shape = 'u32[72,128]{1,0:T(1,128)}', space=vmem, size = 0x9000, scoped, tag = 'internal scratch']
  %s0 = inlined_call_operand.vmem [shape: bf16[2,100,64], index: 0, kind: input, shape index: {}]
  %s1 = inlined_call_operand.vmem [shape: bf16[9,64,64], index: 1, kind: input, shape index: {}]
  %s2 = inlined_call_operand.vmem [shape: f32[1,64], index: 2, kind: input, shape index: {}]
  %s3 = inlined_call_operand.vmem [shape: bf16[2,100,64], index: 3, kind: output, shape index: {}]
  %s4 = sld [smem:[#allocation0]]
  $region45: #{residual_block_forward.4} parent=0
    _
  %s6 = ssub.s32 1, %s4
  %s7 = scalar_select 0, %s6, %s4
  loop: start=0, step=1, limit=4
  $region2: #{residual_block_forward.4} parent=0 // loop_pre_header
    _
  $region3: #{residual_block_forward.4} parent=0 // loop_header
    %s9 = sphi 0, %s13
    %p10 = scmp.ge.s32.totalorder %s9, 4
    %s19 = sphi 0, %s21
    %s22 = sphi 0, %s19
    %s23 = sphi 0, %s22
    %s39 = sphi 0, %s23
    %s43 = sphi 0, %s43
    %s45 = sphi 0, %s43
    %s46 = sphi 0, %s45
    %s60 = sphi 0, %s46
    %s64 = sphi 0, %s64
    %s66 = sphi 0, %s64
    %s67 = sphi 0, %s66
    %s81 = sphi 0, %s67
    %s87 = sphi 0, %s89
    %s90 = sphi 0, %s87
    %s91 = sphi 0, %s90
    %s107 = sphi 0, %s91
  $region4: #{residual_block_forward.4} parent=0 // loop_header_branch
    %12 = sbr.rel (%p10) target = $region8
  $region5: #{residual_block_forward.4} parent=0 // loop_body
    %s14 = ssub.s32 %s9, 1
    %s15 = ssub.s32 %s9, 2
    %s16 = sadd.s32 %s9, 1
    %s17 = ssub.s32 %s9, %s16
    %p18 = scmp.eq.s32.totalorder %s17, 0
    %s20 = sadd.s32 %s19, 1
    %s21 = scalar_select %p18, %s19, %s20
    %p24 = pneg %p18
    %p25 = scmp.eq.s32.totalorder %s9, 1
    %p26 = por %p24, %p25
    %p27 = scmp.ne.s32.totalorder %s19, %s22
    %p28 = scmp.eq.s32.totalorder %s9, 0
    %p29 = por %p27, %p28
    %p30 = scmp.ne.s32.totalorder %s19, %s22
    %p31 = scmp.eq.s32.totalorder %s14, 1
    %p32 = por %p30, %p31
    %p33 = scmp.ne.s32.totalorder %s22, %s23
    %p34 = scmp.eq.s32.totalorder %s14, 0
    %p35 = por %p33, %p34
    %p36 = scmp.ne.s32.totalorder %s22, %s23
    %p37 = scmp.eq.s32.totalorder %s15, 1
    %p38 = por %p36, %p37
    %p40 = scmp.ne.s32.totalorder %s23, %s39
    %p41 = scmp.eq.s32.totalorder %s15, 0
    %p42 = por %p40, %p41
    %s44 = sadd.s32 %s43, 1
    %p47 = scmp.eq.s32.totalorder %s9, 1
    %p48 = scmp.ne.s32.totalorder %s43, %s45
    %p49 = scmp.eq.s32.totalorder %s9, 0
    %p50 = por %p48, %p49
    %p51 = scmp.ne.s32.totalorder %s43, %s45
    %p52 = scmp.eq.s32.totalorder %s14, 1
    %p53 = por %p51, %p52
    %p54 = scmp.ne.s32.totalorder %s45, %s46
    %p55 = scmp.eq.s32.totalorder %s14, 0
    %p56 = por %p54, %p55
    %p57 = scmp.ne.s32.totalorder %s45, %s46
    %p58 = scmp.eq.s32.totalorder %s15, 1
    %p59 = por %p57, %p58
    %p61 = scmp.ne.s32.totalorder %s46, %s60
    %p62 = scmp.eq.s32.totalorder %s15, 0
    %p63 = por %p61, %p62
    %s65 = sadd.s32 %s64, 1
    %p68 = scmp.eq.s32.totalorder %s9, 1
    %p69 = scmp.ne.s32.totalorder %s64, %s66
    %p70 = scmp.eq.s32.totalorder %s9, 0
    %p71 = por %p69, %p70
    %p72 = scmp.ne.s32.totalorder %s64, %s66
    %p73 = scmp.eq.s32.totalorder %s14, 1
    %p74 = por %p72, %p73
    %p75 = scmp.ne.s32.totalorder %s66, %s67
    %p76 = scmp.eq.s32.totalorder %s14, 0
    %p77 = por %p75, %p76
    %p78 = scmp.ne.s32.totalorder %s66, %s67
    %p79 = scmp.eq.s32.totalorder %s15, 1
    %p80 = por %p78, %p79
    %p82 = scmp.ne.s32.totalorder %s67, %s81
    %p83 = scmp.eq.s32.totalorder %s15, 0
    %p84 = por %p82, %p83
    %s85 = ssub.s32 %s9, %s16
    %p86 = scmp.eq.s32.totalorder %s85, 0
    %s88 = sadd.s32 %s87, 1
    %s89 = scalar_select %p86, %s87, %s88
    %p92 = pneg %p86
    %p93 = scmp.eq.s32.totalorder %s9, 1
    %p94 = por %p92, %p93
    %p95 = scmp.ne.s32.totalorder %s87, %s90
    %p96 = scmp.eq.s32.totalorder %s9, 0
    %p97 = por %p95, %p96
    %p98 = scmp.ne.s32.totalorder %s87, %s90
    %p99 = scmp.eq.s32.totalorder %s14, 1
    %p100 = por %p98, %p99
    %p101 = scmp.ne.s32.totalorder %s90, %s91
    %p102 = scmp.eq.s32.totalorder %s14, 0
    %p103 = por %p101, %p102
    %p104 = scmp.ne.s32.totalorder %s90, %s91
    %p105 = scmp.eq.s32.totalorder %s15, 1
    %p106 = por %p104, %p105
    %p108 = scmp.ne.s32.totalorder %s91, %s107
    %p109 = scmp.eq.s32.totalorder %s15, 0
    %p110 = por %p108, %p109
    %p111 = scmp.le.s32.totalorder 1, %s9
    %p112 = scmp.lt.s32.totalorder %s9, 3
    %p113 = pnand %p111, %p112
    %p114 = pneg %p113
    // Predicated region
    $region9: #{residual_block_forward.4} parent=5 // pred_check
      _
    $region10: #{residual_block_forward.4} parent=5 // pred_check_branch
      %116 = sbr.rel (%p113) target = $region12
    $region11: #{residual_block_forward.4} parent=5 // pred_region
      %s117 = ssub.s32 %s9, 1
      // Predicated region
      $region13: #{residual_block_forward.4} parent=11 // pred_check
        %p118 = pneg %p56
      $region14: #{residual_block_forward.4} parent=11 // pred_check_branch
        %120 = sbr.rel (%p118) target = $region16
      $region15: #{residual_block_forward.4} parent=11 // pred_region
        _
      $region16: #{residual_block_forward.4} parent=11 // pred_fallthru
        _
      // Predicated region
      $region17: #{residual_block_forward.4} parent=11 // pred_check
        %p121 = pneg %p77
      $region18: #{residual_block_forward.4} parent=11 // pred_check_branch
        %123 = sbr.rel (%p121) target = $region20
      $region19: #{residual_block_forward.4} parent=11 // pred_region
        _
      $region20: #{residual_block_forward.4} parent=11 // pred_fallthru
        _
    $region12: #{residual_block_forward.4} parent=5 // pred_fallthru
      _
    %p124 = scmp.lt.s32.totalorder %s9, 2
    // Predicated region
    $region21: #{residual_block_forward.4} parent=5 // pred_check
      %p125 = pneg %p124
    $region22: #{residual_block_forward.4} parent=5 // pred_check_branch
      %127 = sbr.rel (%p125) target = $region24
    $region23: #{residual_block_forward.4} parent=5 // pred_region
      // Predicated region
      $region25: #{residual_block_forward.4} parent=23 // pred_check
        %p128 = pneg %p29
      $region26: #{residual_block_forward.4} parent=23 // pred_check_branch
        %130 = sbr.rel (%p128) target = $region28
      $region27: #{residual_block_forward.4} parent=23 // pred_region
        %p131 = scmp.lt.s32.totalorder %s9, 1
        %s132 = scalar_select %p131, %s9, 1
        %s133 = smul.addr %s132, 13
        %s134 = smul.addr %s133, 4
        %s135 = scalar_lea.vmem %s0, %s134
      $region28: #{residual_block_forward.4} parent=23 // pred_fallthru
        _
    $region24: #{residual_block_forward.4} parent=5 // pred_fallthru
      _
    %p136 = scmp.le.s32.totalorder 1, %s9
    %p137 = scmp.lt.s32.totalorder %s9, 3
    %p138 = pnand %p136, %p137
    %p139 = pneg %p138
    // Predicated region
    $region29: #{residual_block_forward.4} parent=5 // pred_check
      _
    $region30: #{residual_block_forward.4} parent=5 // pred_check_branch
      %141 = sbr.rel (%p138) target = $region32
    $region31: #{residual_block_forward.4} parent=5 // pred_region
      %s142 = ssub.s32 %s9, 1
      %p143 = scmp.lt.s32.totalorder %s14, 1
      %s144 = scalar_select %p143, %s14, 1
      %s145 = smul.addr %s144, 13
      %s146 = smul.addr %s145, 4
      %s147 = scalar_lea.vmem %s0, %s146
      %p148 = pneg %p35
      %p149 = pneg %p32
      %p150 = pneg %p56
      %p151 = pneg %p53
      %p152 = pneg %p77
      %p153 = pneg %p74
      %p154 = pneg %p103
      %p155 = pneg %p100
      %p156 = scmp.lt.s32.totalorder %s14, 1
      %s157 = scalar_select %p156, %s14, 1
      %s158 = smul.addr %s157, 13
      %s159 = smul.addr %s158, 4
      %s160 = scalar_lea.vmem %s3, %s159
      %p161 = scmp.lt.s32.totalorder %s14, 1
      %s162 = scalar_select %p161, %s14, 1
      %s163 = smul.addr %s162, 13
      %s164 = smul.addr %s163, 4
      %s165 = scalar_lea.vmem %s0, %s164
      %p166 = scmp.lt.s32.totalorder %s14, 1
      %s167 = scalar_select %p166, %s14, 1
      %s168 = smul.addr %s167, 13
      %s169 = smul.addr %s168, 4
      %s170 = scalar_lea.vmem %s3, %s169
      %v172 = vld [vmem:[%s165] sm:$0xf]
      %v173 = vld [vmem:[%s165 + $0x4] sm:$0xf]
      %v174 = vld [vmem:[%s165 + $0x8] sm:$0xf]
      %v175 = vld [vmem:[%s165 + $0xc] sm:$0xf]
      %v176 = vld [vmem:[%s165 + $0x10] sm:$0xf]
      %v177 = vld [vmem:[%s165 + $0x14] sm:$0xf]
      %v178 = vld [vmem:[%s165 + $0x18] sm:$0xf]
      %v179 = vld [vmem:[%s165 + $0x1c] sm:$0xf]
      %v180 = vld [vmem:[%s165 + $0x20] sm:$0xf]
      %v181 = vld [vmem:[%s165 + $0x24] sm:$0x7]
      %v182 = vld [vmem:[%s1] sm:$0xf]
      %v183 = vld [vmem:[%s1 + $0x4] sm:$0xf]
      %v184 = vld [vmem:[%s1 + $0x8] sm:$0xf]
      %v185 = vld [vmem:[%s1 + $0xc] sm:$0xf]
      %v186 = vld [vmem:[%s1 + $0x10] sm:$0xf]
      %v187 = vld [vmem:[%s1 + $0x14] sm:$0xf]
      %v188 = vld [vmem:[%s1 + $0x18] sm:$0xf]
      %v189 = vld [vmem:[%s1 + $0x1c] sm:$0xf]
      %v190 = vld [vmem:[%s165 + $0x24] sm:$0xf]
      %s191 = scalar_lea.vmem %s1, 32
      %v192 = vld [vmem:[%s191] sm:$0xf]
      %v193 = vld [vmem:[%s191 + $0x4] sm:$0xf]
      %v194 = vld [vmem:[%s191 + $0x8] sm:$0xf]
      %v195 = vld [vmem:[%s191 + $0xc] sm:$0xf]
      %v196 = vld [vmem:[%s191 + $0x10] sm:$0xf]
      %v197 = vld [vmem:[%s191 + $0x14] sm:$0xf]
      %v198 = vld [vmem:[%s191 + $0x18] sm:$0xf]
      %v199 = vld [vmem:[%s191 + $0x1c] sm:$0xf]
      %v210 = vunpack.c.l.b16 %v172
      %v211 = vunpack.c.l.b16 %v173
      %v212 = vunpack.c.l.b16 %v174
      %v213 = vunpack.c.l.b16 %v175
      %v214 = vunpack.c.l.b16 %v176
      %v215 = vunpack.c.l.b16 %v177
      %v216 = vunpack.c.l.b16 %v178
      %v217 = vunpack.c.l.b16 %v179
      %v218 = vunpack.c.l.b16 %v180
      %v219 = vunpack.c.l.b16 %v190
      %v220 = vpack.c.b16 %v211, %v210
      %v221 = vpack.c.b16 %v213, %v212
      %v222 = vpack.c.b16 %v215, %v214
      %v223 = vpack.c.b16 %v217, %v216
      %v224 = vpack.c.b16 %v219, %v218
      %vm225 = vsmask.f32 7424
      %v227 = vshrl.u32 %v220, 16
      %v229 = vshll.u32 %v220, 16
      %v231 = vrot.slane %v229, 1
      %v232 = vor.u32 %v227, %v231
      %v234 = vshll.u32 %v221, 16
      %v236 = vrot.slane %v234, 1
      %v237 = vsel %vm225, %v232, %v236
      %v238 = vshrl.u32 %v221, 16
      %v240 = vor.u32 %v238, %v236
      %v242 = vshll.u32 %v222, 16
      %v244 = vrot.slane %v242, 1
      %v245 = vsel %vm225, %v240, %v244
      %v246 = vshrl.u32 %v222, 16
      %v248 = vor.u32 %v246, %v244
      %v250 = vshll.u32 %v223, 16
      %v252 = vrot.slane %v250, 1
      %v253 = vsel %vm225, %v248, %v252
      %v254 = vshrl.u32 %v223, 16
      %v256 = vor.u32 %v254, %v252
      %v258 = vshll.u32 %v224, 16
      %v260 = vrot.slane %v258, 1
      %v261 = vsel %vm225, %v256, %v260
      %v262 = vshrl.u32 %v224, 16
      %v264 = vor.u32 %v262, %v260
      %v273 = vunpack.c.l.b16 %v192
      %v274 = vunpack.c.l.b16 %v193
      %v275 = vunpack.c.l.b16 %v194
      %v276 = vunpack.c.l.b16 %v195
      %v277 = vunpack.c.l.b16 %v196
      %v278 = vunpack.c.l.b16 %v197
      %v279 = vunpack.c.l.b16 %v198
      %v280 = vunpack.c.l.b16 %v199
      %v281 = vpack.c.b16 %v274, %v273
      %v282 = vpack.c.b16 %v276, %v275
      %v283 = vpack.c.b16 %v278, %v277
      %v284 = vpack.c.b16 %v280, %v279
      %vm289 = vcmask 523264
      %v291 = vsel %vm289, %v237, 0
      %v294 = vsel %vm289, %v245, 0
      %v297 = vsel %vm289, %v253, 0
      %v300 = vsel %vm289, %v261, 0
      %v303 = vsel %vm289, %v264, 0
      %305 = vmatpush.bf16.msra.mxu0 0
      %306 = vmatpush.bf16.msra.mxu0 0
      %307 = vmatpush.bf16.msra.mxu0 0
      %308 = vmatpush.bf16.msra.mxu0 0
      %309 = vmatpush.bf16.msra.mxu0 %v284
      %310 = vmatpush.bf16.msra.mxu0 %v283
      %311 = vmatpush.bf16.msra.mxu0 %v282
      %312 = vmatpush.bf16.msra.mxu0 %v281
      %313 = vmatmul.bf16.gmra.mxu0 %v291
      %v314 = vpop.f32.mrf.mxu0
      %v315 = vadd.f32 0.0, %v314
      %v316 = vpop.f32.mrf.mxu0
      %v317 = vadd.f32 0.0, %v316
      %318 = vmatmul.bf16.gmra.mxu0 %v294
      %v319 = vpop.f32.mrf.mxu0
      %v320 = vadd.f32 0.0, %v319
      %v321 = vpop.f32.mrf.mxu0
      %v322 = vadd.f32 0.0, %v321
      %323 = vmatmul.bf16.gmra.mxu0 %v297
      %v324 = vpop.f32.mrf.mxu0
      %v325 = vadd.f32 0.0, %v324
      %v326 = vpop.f32.mrf.mxu0
      %v327 = vadd.f32 0.0, %v326
      %328 = vmatmul.bf16.gmra.mxu0 %v300
      %v329 = vpop.f32.mrf.mxu0
      %v330 = vadd.f32 0.0, %v329
      %v331 = vpop.f32.mrf.mxu0
      %v332 = vadd.f32 0.0, %v331
      %333 = vmatmul.bf16.gmra.mxu0 %v303
      %v334 = vpop.f32.mrf.mxu0
      %v335 = vadd.f32 0.0, %v334
      %v336 = vpop.f32.mrf.mxu0
      %v337 = vadd.f32 0.0, %v336
      %338 = vdwg.mxu0
      %v340 = vunpack.c.l.b16 %v181
      %v341 = vpack.c.b16 %v340, %v218
      %v350 = vunpack.c.l.b16 %v182
      %v351 = vunpack.c.l.b16 %v183
      %v352 = vunpack.c.l.b16 %v184
      %v353 = vunpack.c.l.b16 %v185
      %v354 = vunpack.c.l.b16 %v186
      %v355 = vunpack.c.l.b16 %v187
      %v356 = vunpack.c.l.b16 %v188
      %v357 = vunpack.c.l.b16 %v189
      %v358 = vpack.c.b16 %v351, %v350
      %v359 = vpack.c.b16 %v353, %v352
      %v360 = vpack.c.b16 %v355, %v354
      %v361 = vpack.c.b16 %v357, %v356
      %v366 = vsel %vm289, %v220, 0
      %v368 = vsel %vm289, %v221, 0
      %v370 = vsel %vm289, %v222, 0
      %v372 = vsel %vm289, %v223, 0
      %v375 = vsel %vm289, %v341, 0
      %377 = vmatpush.bf16.msra.mxu0 0
      %378 = vmatpush.bf16.msra.mxu0 0
      %379 = vmatpush.bf16.msra.mxu0 0
      %380 = vmatpush.bf16.msra.mxu0 0
      %381 = vmatpush.bf16.msra.mxu0 %v361
      %382 = vmatpush.bf16.msra.mxu0 %v360
      %383 = vmatpush.bf16.msra.mxu0 %v359
      %384 = vmatpush.bf16.msra.mxu0 %v358
      %385 = vmatmul.bf16.gmra.mxu0 %v366
      %v386 = vpop.f32.mrf.mxu0
      %v387 = vadd.f32 %v315, %v386
      %v388 = vpop.f32.mrf.mxu0
      %v389 = vadd.f32 %v317, %v388
      %390 = vmatmul.bf16.gmra.mxu0 %v368
      %v391 = vpop.f32.mrf.mxu0
      %v392 = vadd.f32 %v320, %v391
      %v393 = vpop.f32.mrf.mxu0
      %v394 = vadd.f32 %v322, %v393
      %395 = vmatmul.bf16.gmra.mxu0 %v370
      %v396 = vpop.f32.mrf.mxu0
      %v397 = vadd.f32 %v325, %v396
      %v398 = vpop.f32.mrf.mxu0
      %v399 = vadd.f32 %v327, %v398
      %400 = vmatmul.bf16.gmra.mxu0 %v372
      %v401 = vpop.f32.mrf.mxu0
      %v402 = vadd.f32 %v330, %v401
      %v403 = vpop.f32.mrf.mxu0
      %v404 = vadd.f32 %v332, %v403
      %405 = vmatmul.bf16.gmra.mxu0 %v375
      %v406 = vpop.f32.mrf.mxu0
      %v407 = vadd.f32 %v335, %v406
      %v408 = vpop.f32.mrf.mxu0
      %v409 = vadd.f32 %v337, %v408
      %410 = vdwg.mxu0
      %v411 = vld [vmem:[%s165] sm:$0xe]
      %s412 = scalar_lea.vmem %s1, 64
      %v413 = vld [vmem:[%s412] sm:$0xf]
      %v414 = vld [vmem:[%s412 + $0x4] sm:$0xf]
      %v415 = vld [vmem:[%s412 + $0x8] sm:$0xf]
      %v416 = vld [vmem:[%s412 + $0xc] sm:$0xf]
      %v417 = vld [vmem:[%s412 + $0x10] sm:$0xf]
      %v418 = vld [vmem:[%s412 + $0x14] sm:$0xf]
      %v419 = vld [vmem:[%s412 + $0x18] sm:$0xf]
      %v420 = vld [vmem:[%s412 + $0x1c] sm:$0xf]
      %v422 = vunpack.c.l.b16 %v411
      %v423 = vpack.c.b16 %v211, %v422
      %vm424 = vcmask 1046528
      %v425 = vrot.slane %v423, 1
      %v426 = vrot.slane %v221, 1
      %v427 = vsel %vm424, %v425, %v426
      %v428 = vrot.slane %v222, 1
      %v429 = vsel %vm424, %v426, %v428
      %v430 = vrot.slane %v223, 1
      %v431 = vsel %vm424, %v428, %v430
      %v432 = vrot.slane %v224, 1
      %v433 = vsel %vm424, %v430, %v432
      %v442 = vunpack.c.l.b16 %v413
      %v443 = vunpack.c.l.b16 %v414
      %v444 = vunpack.c.l.b16 %v415
      %v445 = vunpack.c.l.b16 %v416
      %v446 = vunpack.c.l.b16 %v417
      %v447 = vunpack.c.l.b16 %v418
      %v448 = vunpack.c.l.b16 %v419
      %v449 = vunpack.c.l.b16 %v420
      %v450 = vpack.c.b16 %v443, %v442
      %v451 = vpack.c.b16 %v445, %v444
      %v452 = vpack.c.b16 %v447, %v446
      %v453 = vpack.c.b16 %v449, %v448
      %v459 = vsel %vm289, %v427, 0
      %v462 = vsel %vm289, %v429, 0
      %v465 = vsel %vm289, %v431, 0
      %v468 = vsel %vm289, %v433, 0
      %v471 = vsel %vm289, %v432, 0
      %473 = vmatpush.bf16.msra.mxu0 0
      %474 = vmatpush.bf16.msra.mxu0 0
      %475 = vmatpush.bf16.msra.mxu0 0
      %476 = vmatpush.bf16.msra.mxu0 0
      %477 = vmatpush.bf16.msra.mxu0 %v453
      %478 = vmatpush.bf16.msra.mxu0 %v452
      %479 = vmatpush.bf16.msra.mxu0 %v451
      %480 = vmatpush.bf16.msra.mxu0 %v450
      %481 = vmatmul.bf16.gmra.mxu0 %v459
      %v482 = vpop.f32.mrf.mxu0
      %v483 = vadd.f32 0.0, %v482
      %v484 = vpop.f32.mrf.mxu0
      %v485 = vadd.f32 0.0, %v484
      %486 = vmatmul.bf16.gmra.mxu0 %v462
      %v487 = vpop.f32.mrf.mxu0
      %v488 = vadd.f32 0.0, %v487
      %v489 = vpop.f32.mrf.mxu0
      %v490 = vadd.f32 0.0, %v489
      %491 = vmatmul.bf16.gmra.mxu0 %v465
      %v492 = vpop.f32.mrf.mxu0
      %v493 = vadd.f32 0.0, %v492
      %v494 = vpop.f32.mrf.mxu0
      %v495 = vadd.f32 0.0, %v494
      %496 = vmatmul.bf16.gmra.mxu0 %v468
      %v497 = vpop.f32.mrf.mxu0
      %v498 = vadd.f32 0.0, %v497
      %v499 = vpop.f32.mrf.mxu0
      %v500 = vadd.f32 0.0, %v499
      %501 = vmatmul.bf16.gmra.mxu0 %v471
      %v502 = vpop.f32.mrf.mxu0
      %v503 = vadd.f32 0.0, %v502
      %v504 = vpop.f32.mrf.mxu0
      %v505 = vadd.f32 0.0, %v504
      %506 = vdwg.mxu0
      %v507 = vadd.f32 %v387, %v483
      %v508 = vadd.f32 %v389, %v485
      %v509 = vadd.f32 %v392, %v488
      %v510 = vadd.f32 %v394, %v490
      %v511 = vadd.f32 %v397, %v493
      %v512 = vadd.f32 %v399, %v495
      %v513 = vadd.f32 %v402, %v498
      %v514 = vadd.f32 %v404, %v500
      %v515 = vadd.f32 %v407, %v503
      %v516 = vadd.f32 %v409, %v505
      %v517 = vld [vmem:[%s165 + $0x4] sm:$0xe]
      %v518 = vld [vmem:[%s165 + $0x8] sm:$0xf]
      %v519 = vld [vmem:[%s165 + $0xc] sm:$0xf]
      %v520 = vld [vmem:[%s165 + $0x10] sm:$0xf]
      %v521 = vld [vmem:[%s165 + $0x14] sm:$0xf]
      %v522 = vld [vmem:[%s165 + $0x18] sm:$0xf]
      %v523 = vld [vmem:[%s165 + $0x1c] sm:$0xf]
      %v524 = vld [vmem:[%s165 + $0x20] sm:$0xf]
      %v525 = vld [vmem:[%s165 + $0x24] sm:$0xf]
      %v526 = vld [vmem:[%s165 + $0x28] sm:$0xf]
      %s527 = scalar_lea.vmem %s1, 96
      %v528 = vld [vmem:[%s527] sm:$0xf]
      %v529 = vld [vmem:[%s527 + $0x4] sm:$0xf]
      %v530 = vld [vmem:[%s527 + $0x8] sm:$0xf]
      %v531 = vld [vmem:[%s527 + $0xc] sm:$0xf]
      %v532 = vld [vmem:[%s527 + $0x10] sm:$0xf]
      %v533 = vld [vmem:[%s527 + $0x14] sm:$0xf]
      %v534 = vld [vmem:[%s527 + $0x18] sm:$0xf]
      %v535 = vld [vmem:[%s527 + $0x1c] sm:$0xf]
      %v546 = vunpack.c.l.b16 %v517
      %v547 = vunpack.c.l.b16 %v518
      %v548 = vunpack.c.l.b16 %v519
      %v549 = vunpack.c.l.b16 %v520
      %v550 = vunpack.c.l.b16 %v521
      %v551 = vunpack.c.l.b16 %v522
      %v552 = vunpack.c.l.b16 %v523
      %v553 = vunpack.c.l.b16 %v524
      %v554 = vunpack.c.l.b16 %v525
      %v555 = vunpack.c.l.b16 %v526
      %v556 = vpack.c.b16 %v547, %v546
      %v557 = vpack.c.b16 %v549, %v548
      %v558 = vpack.c.b16 %v551, %v550
      %v559 = vpack.c.b16 %v553, %v552
      %v560 = vpack.c.b16 %v555, %v554
      %v561 = vrot.slane %v556, 1
      %v562 = vrot.slane %v557, 1
      %v563 = vsel %vm424, %v561, %v562
      %v564 = vrot.slane %v558, 1
      %v565 = vsel %vm424, %v562, %v564
      %v566 = vrot.slane %v559, 1
      %v567 = vsel %vm424, %v564, %v566
      %v568 = vrot.slane %v560, 1
      %v569 = vsel %vm424, %v566, %v568
      %v578 = vunpack.c.l.b16 %v528
      %v579 = vunpack.c.l.b16 %v529
      %v580 = vunpack.c.l.b16 %v530
      %v581 = vunpack.c.l.b16 %v531
      %v582 = vunpack.c.l.b16 %v532
      %v583 = vunpack.c.l.b16 %v533
      %v584 = vunpack.c.l.b16 %v534
      %v585 = vunpack.c.l.b16 %v535
      %v586 = vpack.c.b16 %v579, %v578
      %v587 = vpack.c.b16 %v581, %v580
      %v588 = vpack.c.b16 %v583, %v582
      %v589 = vpack.c.b16 %v585, %v584
      %v595 = vsel %vm289, %v563, 0
      %v598 = vsel %vm289, %v565, 0
      %v601 = vsel %vm289, %v567, 0
      %v604 = vsel %vm289, %v569, 0
      %v607 = vsel %vm289, %v568, 0
      %609 = vmatpush.bf16.msra.mxu0 0
      %610 = vmatpush.bf16.msra.mxu0 0
      %611 = vmatpush.bf16.msra.mxu0 0
      %612 = vmatpush.bf16.msra.mxu0 0
      %613 = vmatpush.bf16.msra.mxu0 %v589
      %614 = vmatpush.bf16.msra.mxu0 %v588
      %615 = vmatpush.bf16.msra.mxu0 %v587
      %616 = vmatpush.bf16.msra.mxu0 %v586
      %617 = vmatmul.bf16.gmra.mxu0 %v595
      %v618 = vpop.f32.mrf.mxu0
      %v619 = vadd.f32 0.0, %v618
      %v620 = vpop.f32.mrf.mxu0
      %v621 = vadd.f32 0.0, %v620
      %622 = vmatmul.bf16.gmra.mxu0 %v598
      %v623 = vpop.f32.mrf.mxu0
      %v624 = vadd.f32 0.0, %v623
      %v625 = vpop.f32.mrf.mxu0
      %v626 = vadd.f32 0.0, %v625
      %627 = vmatmul.bf16.gmra.mxu0 %v601
      %v628 = vpop.f32.mrf.mxu0
      %v629 = vadd.f32 0.0, %v628
      %v630 = vpop.f32.mrf.mxu0
      %v631 = vadd.f32 0.0, %v630
      %632 = vmatmul.bf16.gmra.mxu0 %v604
      %v633 = vpop.f32.mrf.mxu0
      %v634 = vadd.f32 0.0, %v633
      %v635 = vpop.f32.mrf.mxu0
      %v636 = vadd.f32 0.0, %v635
      %637 = vmatmul.bf16.gmra.mxu0 %v607
      %v638 = vpop.f32.mrf.mxu0
      %v639 = vadd.f32 0.0, %v638
      %v640 = vpop.f32.mrf.mxu0
      %v641 = vadd.f32 0.0, %v640
      %642 = vdwg.mxu0
      %v643 = vadd.f32 %v507, %v619
      %v644 = vadd.f32 %v508, %v621
      %v645 = vadd.f32 %v509, %v624
      %v646 = vadd.f32 %v510, %v626
      %v647 = vadd.f32 %v511, %v629
      %v648 = vadd.f32 %v512, %v631
      %v649 = vadd.f32 %v513, %v634
      %v650 = vadd.f32 %v514, %v636
      %v651 = vadd.f32 %v515, %v639
      %v652 = vadd.f32 %v516, %v641
      %v653 = vld [vmem:[%s165 + $0x4] sm:$0xe]
      %v654 = vld [vmem:[%s165 + $0x8] sm:$0xf]
      %v655 = vld [vmem:[%s165 + $0xc] sm:$0xf]
      %v656 = vld [vmem:[%s165 + $0x10] sm:$0xf]
      %v657 = vld [vmem:[%s165 + $0x14] sm:$0xf]
      %v658 = vld [vmem:[%s165 + $0x18] sm:$0xf]
      %v659 = vld [vmem:[%s165 + $0x1c] sm:$0xf]
      %v660 = vld [vmem:[%s165 + $0x20] sm:$0xf]
      %v661 = vld [vmem:[%s165 + $0x24] sm:$0xf]
      %v662 = vld [vmem:[%s165 + $0x28] sm:$0xf]
      %v663 = vld [vmem:[%s165 + $0x2c] sm:$0x1]
      %s664 = scalar_lea.vmem %s1, 128
      %v665 = vld [vmem:[%s664] sm:$0xf]
      %v666 = vld [vmem:[%s664 + $0x4] sm:$0xf]
      %v667 = vld [vmem:[%s664 + $0x8] sm:$0xf]
      %v668 = vld [vmem:[%s664 + $0xc] sm:$0xf]
      %v669 = vld [vmem:[%s664 + $0x10] sm:$0xf]
      %v670 = vld [vmem:[%s664 + $0x14] sm:$0xf]
      %v671 = vld [vmem:[%s664 + $0x18] sm:$0xf]
      %v672 = vld [vmem:[%s664 + $0x1c] sm:$0xf]
      %v684 = vunpack.c.l.b16 %v653
      %v685 = vunpack.c.l.b16 %v654
      %v686 = vunpack.c.l.b16 %v655
      %v687 = vunpack.c.l.b16 %v656
      %v688 = vunpack.c.l.b16 %v657
      %v689 = vunpack.c.l.b16 %v658
      %v690 = vunpack.c.l.b16 %v659
      %v691 = vunpack.c.l.b16 %v660
      %v692 = vunpack.c.l.b16 %v661
      %v693 = vunpack.c.l.b16 %v662
      %v694 = vunpack.c.l.b16 %v663
      %v695 = vpack.c.b16 %v685, %v684
      %v696 = vpack.c.b16 %v687, %v686
      %v697 = vpack.c.b16 %v689, %v688
      %v698 = vpack.c.b16 %v691, %v690
      %v699 = vpack.c.b16 %v693, %v692
      %v700 = vpack.c.b16 %v694, %v694
      %vm701 = vsmask.f32 6400
      %v703 = vshrl.u32 %v695, 16
      %v705 = vrot.slane %v703, 1
      %v706 = vshll.u32 %v695, 16
      %v708 = vrot.slane %v706, 2
      %v709 = vor.u32 %v705, %v708
      %v711 = vshrl.u32 %v696, 16
      %v713 = vrot.slane %v711, 1
      %v714 = vshll.u32 %v696, 16
      %v716 = vrot.slane %v714, 2
      %v717 = vor.u32 %v713, %v716
      %v718 = vsel %vm701, %v709, %v717
      %v720 = vshrl.u32 %v697, 16
      %v722 = vrot.slane %v720, 1
      %v723 = vshll.u32 %v697, 16
      %v725 = vrot.slane %v723, 2
      %v726 = vor.u32 %v722, %v725
      %v727 = vsel %vm701, %v717, %v726
      %v729 = vshrl.u32 %v698, 16
      %v731 = vrot.slane %v729, 1
      %v732 = vshll.u32 %v698, 16
      %v734 = vrot.slane %v732, 2
      %v735 = vor.u32 %v731, %v734
      %v736 = vsel %vm701, %v726, %v735
      %v738 = vshrl.u32 %v699, 16
      %v740 = vrot.slane %v738, 1
      %v741 = vshll.u32 %v699, 16
      %v743 = vrot.slane %v741, 2
      %v744 = vor.u32 %v740, %v743
      %v745 = vsel %vm701, %v735, %v744
      %v747 = vshll.u32 %v700, 16
      %v749 = vrot.slane %v747, 2
      %v750 = vsel %vm701, %v744, %v749
      %v759 = vunpack.c.l.b16 %v665
      %v760 = vunpack.c.l.b16 %v666
      %v761 = vunpack.c.l.b16 %v667
      %v762 = vunpack.c.l.b16 %v668
      %v763 = vunpack.c.l.b16 %v669
      %v764 = vunpack.c.l.b16 %v670
      %v765 = vunpack.c.l.b16 %v671
      %v766 = vunpack.c.l.b16 %v672
      %v767 = vpack.c.b16 %v760, %v759
      %v768 = vpack.c.b16 %v762, %v761
      %v769 = vpack.c.b16 %v764, %v763
      %v770 = vpack.c.b16 %v766, %v765
      %v776 = vsel %vm289, %v718, 0
      %v779 = vsel %vm289, %v727, 0
      %v782 = vsel %vm289, %v736, 0
      %v785 = vsel %vm289, %v745, 0
      %v788 = vsel %vm289, %v750, 0
      %790 = vmatpush.bf16.msra.mxu0 0
      %791 = vmatpush.bf16.msra.mxu0 0
      %792 = vmatpush.bf16.msra.mxu0 0
      %793 = vmatpush.bf16.msra.mxu0 0
      %794 = vmatpush.bf16.msra.mxu0 %v770
      %795 = vmatpush.bf16.msra.mxu0 %v769
      %796 = vmatpush.bf16.msra.mxu0 %v768
      %797 = vmatpush.bf16.msra.mxu0 %v767
      %798 = vmatmul.bf16.gmra.mxu0 %v776
      %v799 = vpop.f32.mrf.mxu0
      %v800 = vadd.f32 0.0, %v799
      %v801 = vpop.f32.mrf.mxu0
      %v802 = vadd.f32 0.0, %v801
      %803 = vmatmul.bf16.gmra.mxu0 %v779
      %v804 = vpop.f32.mrf.mxu0
      %v805 = vadd.f32 0.0, %v804
      %v806 = vpop.f32.mrf.mxu0
      %v807 = vadd.f32 0.0, %v806
      %808 = vmatmul.bf16.gmra.mxu0 %v782
      %v809 = vpop.f32.mrf.mxu0
      %v810 = vadd.f32 0.0, %v809
      %v811 = vpop.f32.mrf.mxu0
      %v812 = vadd.f32 0.0, %v811
      %813 = vmatmul.bf16.gmra.mxu0 %v785
      %v814 = vpop.f32.mrf.mxu0
      %v815 = vadd.f32 0.0, %v814
      %v816 = vpop.f32.mrf.mxu0
      %v817 = vadd.f32 0.0, %v816
      %818 = vmatmul.bf16.gmra.mxu0 %v788
      %v819 = vpop.f32.mrf.mxu0
      %v820 = vadd.f32 0.0, %v819
      %v821 = vpop.f32.mrf.mxu0
      %v822 = vadd.f32 0.0, %v821
      %823 = vdwg.mxu0
      %v824 = vadd.f32 %v643, %v800
      %v825 = vadd.f32 %v644, %v802
      %v826 = vadd.f32 %v645, %v805
      %v827 = vadd.f32 %v646, %v807
      %v828 = vadd.f32 %v647, %v810
      %v829 = vadd.f32 %v648, %v812
      %v830 = vadd.f32 %v649, %v815
      %v831 = vadd.f32 %v650, %v817
      %v832 = vadd.f32 %v651, %v820
      %v833 = vadd.f32 %v652, %v822
      %v834 = vld [vmem:[%s165 + $0x4] sm:$0xc]
      %s835 = scalar_lea.vmem %s1, 160
      %v836 = vld [vmem:[%s835] sm:$0xf]
      %v837 = vld [vmem:[%s835 + $0x4] sm:$0xf]
      %v838 = vld [vmem:[%s835 + $0x8] sm:$0xf]
      %v839 = vld [vmem:[%s835 + $0xc] sm:$0xf]
      %v840 = vld [vmem:[%s835 + $0x10] sm:$0xf]
      %v841 = vld [vmem:[%s835 + $0x14] sm:$0xf]
      %v842 = vld [vmem:[%s835 + $0x18] sm:$0xf]
      %v843 = vld [vmem:[%s835 + $0x1c] sm:$0xf]
      %v845 = vunpack.c.l.b16 %v834
      %v846 = vpack.c.b16 %v685, %v845
      %vm847 = vcmask 1045504
      %v848 = vrot.slane %v846, 2
      %v849 = vrot.slane %v696, 2
      %v850 = vsel %vm847, %v848, %v849
      %v851 = vrot.slane %v697, 2
      %v852 = vsel %vm847, %v849, %v851
      %v853 = vrot.slane %v698, 2
      %v854 = vsel %vm847, %v851, %v853
      %v855 = vrot.slane %v699, 2
      %v856 = vsel %vm847, %v853, %v855
      %v857 = vrot.slane %v700, 2
      %v858 = vsel %vm847, %v855, %v857
      %v867 = vunpack.c.l.b16 %v836
      %v868 = vunpack.c.l.b16 %v837
      %v869 = vunpack.c.l.b16 %v838
      %v870 = vunpack.c.l.b16 %v839
      %v871 = vunpack.c.l.b16 %v840
      %v872 = vunpack.c.l.b16 %v841
      %v873 = vunpack.c.l.b16 %v842
      %v874 = vunpack.c.l.b16 %v843
      %v875 = vpack.c.b16 %v868, %v867
      %v876 = vpack.c.b16 %v870, %v869
      %v877 = vpack.c.b16 %v872, %v871
      %v878 = vpack.c.b16 %v874, %v873
      %v884 = vsel %vm289, %v850, 0
      %v887 = vsel %vm289, %v852, 0
      %v890 = vsel %vm289, %v854, 0
      %v893 = vsel %vm289, %v856, 0
      %v896 = vsel %vm289, %v858, 0
      %898 = vmatpush.bf16.msra.mxu0 0
      %899 = vmatpush.bf16.msra.mxu0 0
      %900 = vmatpush.bf16.msra.mxu0 0
      %901 = vmatpush.bf16.msra.mxu0 0
      %902 = vmatpush.bf16.msra.mxu0 %v878
      %903 = vmatpush.bf16.msra.mxu0 %v877
      %904 = vmatpush.bf16.msra.mxu0 %v876
      %905 = vmatpush.bf16.msra.mxu0 %v875
      %906 = vmatmul.bf16.gmra.mxu0 %v884
      %v907 = vpop.f32.mrf.mxu0
      %v908 = vadd.f32 0.0, %v907
      %v909 = vpop.f32.mrf.mxu0
      %v910 = vadd.f32 0.0, %v909
      %911 = vmatmul.bf16.gmra.mxu0 %v887
      %v912 = vpop.f32.mrf.mxu0
      %v913 = vadd.f32 0.0, %v912
      %v914 = vpop.f32.mrf.mxu0
      %v915 = vadd.f32 0.0, %v914
      %916 = vmatmul.bf16.gmra.mxu0 %v890
      %v917 = vpop.f32.mrf.mxu0
      %v918 = vadd.f32 0.0, %v917
      %v919 = vpop.f32.mrf.mxu0
      %v920 = vadd.f32 0.0, %v919
      %921 = vmatmul.bf16.gmra.mxu0 %v893
      %v922 = vpop.f32.mrf.mxu0
      %v923 = vadd.f32 0.0, %v922
      %v924 = vpop.f32.mrf.mxu0
      %v925 = vadd.f32 0.0, %v924
      %926 = vmatmul.bf16.gmra.mxu0 %v896
      %v927 = vpop.f32.mrf.mxu0
      %v928 = vadd.f32 0.0, %v927
      %v929 = vpop.f32.mrf.mxu0
      %v930 = vadd.f32 0.0, %v929
      %931 = vdwg.mxu0
      %v932 = vadd.f32 %v824, %v908
      %v933 = vadd.f32 %v825, %v910
      %v934 = vadd.f32 %v826, %v913
      %v935 = vadd.f32 %v827, %v915
      %v936 = vadd.f32 %v828, %v918
      %v937 = vadd.f32 %v829, %v920
      %v938 = vadd.f32 %v830, %v923
      %v939 = vadd.f32 %v831, %v925
      %v940 = vadd.f32 %v832, %v928
      %v941 = vadd.f32 %v833, %v930
      %v942 = vld [vmem:[%s165 + $0x8] sm:$0xc]
      %v943 = vld [vmem:[%s165 + $0xc] sm:$0xf]
      %v944 = vld [vmem:[%s165 + $0x10] sm:$0xf]
      %v945 = vld [vmem:[%s165 + $0x14] sm:$0xf]
      %v946 = vld [vmem:[%s165 + $0x18] sm:$0xf]
      %v947 = vld [vmem:[%s165 + $0x1c] sm:$0xf]
      %v948 = vld [vmem:[%s165 + $0x20] sm:$0xf]
      %v949 = vld [vmem:[%s165 + $0x24] sm:$0xf]
      %v950 = vld [vmem:[%s165 + $0x28] sm:$0xf]
      %v951 = vld [vmem:[%s165 + $0x2c] sm:$0xf]
      %v952 = vld [vmem:[%s165 + $0x30] sm:$0x1]
      %s953 = scalar_lea.vmem %s1, 192
      %v954 = vld [vmem:[%s953] sm:$0xf]
      %v955 = vld [vmem:[%s953 + $0x4] sm:$0xf]
      %v956 = vld [vmem:[%s953 + $0x8] sm:$0xf]
      %v957 = vld [vmem:[%s953 + $0xc] sm:$0xf]
      %v958 = vld [vmem:[%s953 + $0x10] sm:$0xf]
      %v959 = vld [vmem:[%s953 + $0x14] sm:$0xf]
      %v960 = vld [vmem:[%s953 + $0x18] sm:$0xf]
      %v961 = vld [vmem:[%s953 + $0x1c] sm:$0xf]
      %v973 = vunpack.c.l.b16 %v942
      %v974 = vunpack.c.l.b16 %v943
      %v975 = vunpack.c.l.b16 %v944
      %v976 = vunpack.c.l.b16 %v945
      %v977 = vunpack.c.l.b16 %v946
      %v978 = vunpack.c.l.b16 %v947
      %v979 = vunpack.c.l.b16 %v948
      %v980 = vunpack.c.l.b16 %v949
      %v981 = vunpack.c.l.b16 %v950
      %v982 = vunpack.c.l.b16 %v951
      %v983 = vunpack.c.l.b16 %v952
      %v984 = vpack.c.b16 %v974, %v973
      %v985 = vpack.c.b16 %v976, %v975
      %v986 = vpack.c.b16 %v978, %v977
      %v987 = vpack.c.b16 %v980, %v979
      %v988 = vpack.c.b16 %v982, %v981
      %v989 = vpack.c.b16 %v983, %v983
      %v990 = vrot.slane %v984, 2
      %v991 = vrot.slane %v985, 2
      %v992 = vsel %vm847, %v990, %v991
      %v993 = vrot.slane %v986, 2
      %v994 = vsel %vm847, %v991, %v993
      %v995 = vrot.slane %v987, 2
      %v996 = vsel %vm847, %v993, %v995
      %v997 = vrot.slane %v988, 2
      %v998 = vsel %vm847, %v995, %v997
      %v999 = vrot.slane %v989, 2
      %v1000 = vsel %vm847, %v997, %v999
      %v1009 = vunpack.c.l.b16 %v954
      %v1010 = vunpack.c.l.b16 %v955
      %v1011 = vunpack.c.l.b16 %v956
      %v1012 = vunpack.c.l.b16 %v957
      %v1013 = vunpack.c.l.b16 %v958
      %v1014 = vunpack.c.l.b16 %v959
      %v1015 = vunpack.c.l.b16 %v960
      %v1016 = vunpack.c.l.b16 %v961
      %v1017 = vpack.c.b16 %v1010, %v1009
      %v1018 = vpack.c.b16 %v1012, %v1011
      %v1019 = vpack.c.b16 %v1014, %v1013
      %v1020 = vpack.c.b16 %v1016, %v1015
      %v1026 = vsel %vm289, %v992, 0
      %v1029 = vsel %vm289, %v994, 0
      %v1032 = vsel %vm289, %v996, 0
      %v1035 = vsel %vm289, %v998, 0
      %v1038 = vsel %vm289, %v1000, 0
      %1040 = vmatpush.bf16.msra.mxu0 0
      %1041 = vmatpush.bf16.msra.mxu0 0
      %1042 = vmatpush.bf16.msra.mxu0 0
      %1043 = vmatpush.bf16.msra.mxu0 0
      %1044 = vmatpush.bf16.msra.mxu0 %v1020
      %1045 = vmatpush.bf16.msra.mxu0 %v1019
      %1046 = vmatpush.bf16.msra.mxu0 %v1018
      %1047 = vmatpush.bf16.msra.mxu0 %v1017
      %1048 = vmatmul.bf16.gmra.mxu0 %v1026
      %v1049 = vpop.f32.mrf.mxu0
      %v1050 = vadd.f32 0.0, %v1049
      %v1051 = vpop.f32.mrf.mxu0
      %v1052 = vadd.f32 0.0, %v1051
      %1053 = vmatmul.bf16.gmra.mxu0 %v1029
      %v1054 = vpop.f32.mrf.mxu0
      %v1055 = vadd.f32 0.0, %v1054
      %v1056 = vpop.f32.mrf.mxu0
      %v1057 = vadd.f32 0.0, %v1056
      %1058 = vmatmul.bf16.gmra.mxu0 %v1032
      %v1059 = vpop.f32.mrf.mxu0
      %v1060 = vadd.f32 0.0, %v1059
      %v1061 = vpop.f32.mrf.mxu0
      %v1062 = vadd.f32 0.0, %v1061
      %1063 = vmatmul.bf16.gmra.mxu0 %v1035
      %v1064 = vpop.f32.mrf.mxu0
      %v1065 = vadd.f32 0.0, %v1064
      %v1066 = vpop.f32.mrf.mxu0
      %v1067 = vadd.f32 0.0, %v1066
      %1068 = vmatmul.bf16.gmra.mxu0 %v1038
      %v1069 = vpop.f32.mrf.mxu0
      %v1070 = vadd.f32 0.0, %v1069
      %v1071 = vpop.f32.mrf.mxu0
      %v1072 = vadd.f32 0.0, %v1071
      %1073 = vdwg.mxu0
      %v1074 = vadd.f32 %v932, %v1050
      %v1075 = vadd.f32 %v933, %v1052
      %v1076 = vadd.f32 %v934, %v1055
      %v1077 = vadd.f32 %v935, %v1057
      %v1078 = vadd.f32 %v936, %v1060
      %v1079 = vadd.f32 %v937, %v1062
      %v1080 = vadd.f32 %v938, %v1065
      %v1081 = vadd.f32 %v939, %v1067
      %v1082 = vadd.f32 %v940, %v1070
      %v1083 = vadd.f32 %v941, %v1072
      %v1084 = vld [vmem:[%s165 + $0x30] sm:$0x3]
      %s1085 = scalar_lea.vmem %s1, 224
      %v1086 = vld [vmem:[%s1085] sm:$0xf]
      %v1087 = vld [vmem:[%s1085 + $0x4] sm:$0xf]
      %v1088 = vld [vmem:[%s1085 + $0x8] sm:$0xf]
      %v1089 = vld [vmem:[%s1085 + $0xc] sm:$0xf]
      %v1090 = vld [vmem:[%s1085 + $0x10] sm:$0xf]
      %v1091 = vld [vmem:[%s1085 + $0x14] sm:$0xf]
      %v1092 = vld [vmem:[%s1085 + $0x18] sm:$0xf]
      %v1093 = vld [vmem:[%s1085 + $0x1c] sm:$0xf]
      %v1095 = vunpack.c.l.b16 %v1084
      %v1096 = vpack.c.b16 %v1095, %v1095
      %vm1097 = vsmask.f32 5376
      %v1099 = vshrl.u32 %v984, 16
      %v1101 = vrot.slane %v1099, 2
      %v1102 = vshll.u32 %v984, 16
      %v1104 = vrot.slane %v1102, 3
      %v1105 = vor.u32 %v1101, %v1104
      %v1107 = vshrl.u32 %v985, 16
      %v1109 = vrot.slane %v1107, 2
      %v1110 = vshll.u32 %v985, 16
      %v1112 = vrot.slane %v1110, 3
      %v1113 = vor.u32 %v1109, %v1112
      %v1114 = vsel %vm1097, %v1105, %v1113
      %v1116 = vshrl.u32 %v986, 16
      %v1118 = vrot.slane %v1116, 2
      %v1119 = vshll.u32 %v986, 16
      %v1121 = vrot.slane %v1119, 3
      %v1122 = vor.u32 %v1118, %v1121
      %v1123 = vsel %vm1097, %v1113, %v1122
      %v1125 = vshrl.u32 %v987, 16
      %v1127 = vrot.slane %v1125, 2
      %v1128 = vshll.u32 %v987, 16
      %v1130 = vrot.slane %v1128, 3
      %v1131 = vor.u32 %v1127, %v1130
      %v1132 = vsel %vm1097, %v1122, %v1131
      %v1134 = vshrl.u32 %v988, 16
      %v1136 = vrot.slane %v1134, 2
      %v1137 = vshll.u32 %v988, 16
      %v1139 = vrot.slane %v1137, 3
      %v1140 = vor.u32 %v1136, %v1139
      %v1141 = vsel %vm1097, %v1131, %v1140
      %v1143 = vshrl.u32 %v1096, 16
      %v1145 = vrot.slane %v1143, 2
      %v1146 = vshll.u32 %v1096, 16
      %v1148 = vrot.slane %v1146, 3
      %v1149 = vor.u32 %v1145, %v1148
      %v1150 = vsel %vm1097, %v1140, %v1149
      %v1159 = vunpack.c.l.b16 %v1086
      %v1160 = vunpack.c.l.b16 %v1087
      %v1161 = vunpack.c.l.b16 %v1088
      %v1162 = vunpack.c.l.b16 %v1089
      %v1163 = vunpack.c.l.b16 %v1090
      %v1164 = vunpack.c.l.b16 %v1091
      %v1165 = vunpack.c.l.b16 %v1092
      %v1166 = vunpack.c.l.b16 %v1093
      %v1167 = vpack.c.b16 %v1160, %v1159
      %v1168 = vpack.c.b16 %v1162, %v1161
      %v1169 = vpack.c.b16 %v1164, %v1163
      %v1170 = vpack.c.b16 %v1166, %v1165
      %v1176 = vsel %vm289, %v1114, 0
      %v1179 = vsel %vm289, %v1123, 0
      %v1182 = vsel %vm289, %v1132, 0
      %v1185 = vsel %vm289, %v1141, 0
      %v1188 = vsel %vm289, %v1150, 0
      %1190 = vmatpush.bf16.msra.mxu0 0
      %1191 = vmatpush.bf16.msra.mxu0 0
      %1192 = vmatpush.bf16.msra.mxu0 0
      %1193 = vmatpush.bf16.msra.mxu0 0
      %1194 = vmatpush.bf16.msra.mxu0 %v1170
      %1195 = vmatpush.bf16.msra.mxu0 %v1169
      %1196 = vmatpush.bf16.msra.mxu0 %v1168
      %1197 = vmatpush.bf16.msra.mxu0 %v1167
      %1198 = vmatmul.bf16.gmra.mxu0 %v1176
      %v1199 = vpop.f32.mrf.mxu0
      %v1200 = vadd.f32 0.0, %v1199
      %v1201 = vpop.f32.mrf.mxu0
      %v1202 = vadd.f32 0.0, %v1201
      %1203 = vmatmul.bf16.gmra.mxu0 %v1179
      %v1204 = vpop.f32.mrf.mxu0
      %v1205 = vadd.f32 0.0, %v1204
      %v1206 = vpop.f32.mrf.mxu0
      %v1207 = vadd.f32 0.0, %v1206
      %1208 = vmatmul.bf16.gmra.mxu0 %v1182
      %v1209 = vpop.f32.mrf.mxu0
      %v1210 = vadd.f32 0.0, %v1209
      %v1211 = vpop.f32.mrf.mxu0
      %v1212 = vadd.f32 0.0, %v1211
      %1213 = vmatmul.bf16.gmra.mxu0 %v1185
      %v1214 = vpop.f32.mrf.mxu0
      %v1215 = vadd.f32 0.0, %v1214
      %v1216 = vpop.f32.mrf.mxu0
      %v1217 = vadd.f32 0.0, %v1216
      %1218 = vmatmul.bf16.gmra.mxu0 %v1188
      %v1219 = vpop.f32.mrf.mxu0
      %v1220 = vadd.f32 0.0, %v1219
      %v1221 = vpop.f32.mrf.mxu0
      %v1222 = vadd.f32 0.0, %v1221
      %1223 = vdwg.mxu0
      %v1224 = vadd.f32 %v1074, %v1200
      %v1225 = vadd.f32 %v1075, %v1202
      %v1226 = vadd.f32 %v1076, %v1205
      %v1227 = vadd.f32 %v1077, %v1207
      %v1228 = vadd.f32 %v1078, %v1210
      %v1229 = vadd.f32 %v1079, %v1212
      %v1230 = vadd.f32 %v1080, %v1215
      %v1231 = vadd.f32 %v1081, %v1217
      %v1232 = vadd.f32 %v1082, %v1220
      %v1233 = vadd.f32 %v1083, %v1222
      %v1234 = vld [vmem:[%s165 + $0x8] sm:$0x8]
      %s1235 = scalar_lea.vmem %s1, 256
      %v1236 = vld [vmem:[%s1235] sm:$0xf]
      %v1237 = vld [vmem:[%s1235 + $0x4] sm:$0xf]
      %v1238 = vld [vmem:[%s1235 + $0x8] sm:$0xf]
      %v1239 = vld [vmem:[%s1235 + $0xc] sm:$0xf]
      %v1240 = vld [vmem:[%s1235 + $0x10] sm:$0xf]
      %v1241 = vld [vmem:[%s1235 + $0x14] sm:$0xf]
      %v1242 = vld [vmem:[%s1235 + $0x18] sm:$0xf]
      %v1243 = vld [vmem:[%s1235 + $0x1c] sm:$0xf]
      %v1245 = vunpack.c.l.b16 %v1234
      %v1246 = vpack.c.b16 %v974, %v1245
      %vm1247 = vcmask 1044480
      %v1248 = vrot.slane %v1246, 3
      %v1249 = vrot.slane %v985, 3
      %v1250 = vsel %vm1247, %v1248, %v1249
      %v1251 = vrot.slane %v986, 3
      %v1252 = vsel %vm1247, %v1249, %v1251
      %v1253 = vrot.slane %v987, 3
      %v1254 = vsel %vm1247, %v1251, %v1253
      %v1255 = vrot.slane %v988, 3
      %v1256 = vsel %vm1247, %v1253, %v1255
      %v1257 = vrot.slane %v1096, 3
      %v1258 = vsel %vm1247, %v1255, %v1257
      %v1267 = vunpack.c.l.b16 %v1236
      %v1268 = vunpack.c.l.b16 %v1237
      %v1269 = vunpack.c.l.b16 %v1238
      %v1270 = vunpack.c.l.b16 %v1239
      %v1271 = vunpack.c.l.b16 %v1240
      %v1272 = vunpack.c.l.b16 %v1241
      %v1273 = vunpack.c.l.b16 %v1242
      %v1274 = vunpack.c.l.b16 %v1243
      %v1275 = vpack.c.b16 %v1268, %v1267
      %v1276 = vpack.c.b16 %v1270, %v1269
      %v1277 = vpack.c.b16 %v1272, %v1271
      %v1278 = vpack.c.b16 %v1274, %v1273
      %v1284 = vsel %vm289, %v1250, 0
      %v1287 = vsel %vm289, %v1252, 0
      %v1290 = vsel %vm289, %v1254, 0
      %v1293 = vsel %vm289, %v1256, 0
      %v1296 = vsel %vm289, %v1258, 0
      %1298 = vmatpush.bf16.msra.mxu0 0
      %1299 = vmatpush.bf16.msra.mxu0 0
      %1300 = vmatpush.bf16.msra.mxu0 0
      %1301 = vmatpush.bf16.msra.mxu0 0
      %1302 = vmatpush.bf16.msra.mxu0 %v1278
      %1303 = vmatpush.bf16.msra.mxu0 %v1277
      %1304 = vmatpush.bf16.msra.mxu0 %v1276
      %1305 = vmatpush.bf16.msra.mxu0 %v1275
      %1306 = vmatmul.bf16.gmra.mxu0 %v1284
      %v1307 = vpop.f32.mrf.mxu0
      %v1308 = vadd.f32 0.0, %v1307
      %v1309 = vpop.f32.mrf.mxu0
      %v1310 = vadd.f32 0.0, %v1309
      %1311 = vmatmul.bf16.gmra.mxu0 %v1287
      %v1312 = vpop.f32.mrf.mxu0
      %v1313 = vadd.f32 0.0, %v1312
      %v1314 = vpop.f32.mrf.mxu0
      %v1315 = vadd.f32 0.0, %v1314
      %1316 = vmatmul.bf16.gmra.mxu0 %v1290
      %v1317 = vpop.f32.mrf.mxu0
      %v1318 = vadd.f32 0.0, %v1317
      %v1319 = vpop.f32.mrf.mxu0
      %v1320 = vadd.f32 0.0, %v1319
      %1321 = vmatmul.bf16.gmra.mxu0 %v1293
      %v1322 = vpop.f32.mrf.mxu0
      %v1323 = vadd.f32 0.0, %v1322
      %v1324 = vpop.f32.mrf.mxu0
      %v1325 = vadd.f32 0.0, %v1324
      %1326 = vmatmul.bf16.gmra.mxu0 %v1296
      %v1327 = vpop.f32.mrf.mxu0
      %v1328 = vadd.f32 0.0, %v1327
      %v1329 = vpop.f32.mrf.mxu0
      %v1330 = vadd.f32 0.0, %v1329
      %1331 = vdwg.mxu0
      %v1332 = vadd.f32 %v1224, %v1308
      %v1333 = vadd.f32 %v1225, %v1310
      %v1334 = vadd.f32 %v1226, %v1313
      %v1335 = vadd.f32 %v1227, %v1315
      %v1336 = vadd.f32 %v1228, %v1318
      %v1337 = vadd.f32 %v1229, %v1320
      %v1338 = vadd.f32 %v1230, %v1323
      %v1339 = vadd.f32 %v1231, %v1325
      %v1340 = vadd.f32 %v1232, %v1328
      %v1341 = vadd.f32 %v1233, %v1330
      %v1342 = vld [vmem:[%s2] sm:$0x1]
      %vm1343 = vcmask 519168
      %1344 = vst.msk [vmem:[%s170] sm:$0xf] %vm1343, 0
      %1345 = vst.msk [vmem:[%s170 + $0x4] sm:$0xf] %vm1343, 0
      %1346 = vst.msk [vmem:[%s170 + $0x8] sm:$0xf] %vm1343, 0
      %1347 = vst.msk [vmem:[%s170 + $0xc] sm:$0xf] %vm1343, 0
      %1348 = vst.msk [vmem:[%s170 + $0x10] sm:$0xf] %vm1343, 0
      %1349 = vst.msk [vmem:[%s170 + $0x14] sm:$0xf] %vm1343, 0
      %1350 = vst.msk [vmem:[%s170 + $0x18] sm:$0xf] %vm1343, 0
      %1351 = vst.msk [vmem:[%s170 + $0x1c] sm:$0xf] %vm1343, 0
      %1352 = vst.msk [vmem:[%s170 + $0x20] sm:$0xf] %vm1343, 0
      %1353 = vst.msk [vmem:[%s170 + $0x24] sm:$0xf] %vm1343, 0
      %1354 = vst.msk [vmem:[%s170 + $0x28] sm:$0xf] %vm1343, 0
      %1355 = vst.msk [vmem:[%s170 + $0x2c] sm:$0xf] %vm1343, 0
      %vm1356 = vcmask 517120
      %1357 = vst.msk [vmem:[%s170 + $0x30] sm:$0x3] %vm1356, 0
      %v1359 = vperm.slane %v1342, 0
      %v1361 = vadd.f32 %v1332, %v1359
      %v1362 = vmax.f32 %v1361, 0.0
      %v1363 = vpack.c.bf16 %v1362, %v1362
      %v1365 = vshrl.u32 %v1363, 16
      %v1367 = vrot.slane %v1365, 6
      %v1368 = vshll.u32 %v1363, 16
      %v1370 = vrot.slane %v1368, 7
      %v1371 = vor.u32 %v1367, %v1370
      %v1372 = vrot.slane %v1371, 4
      %vm1375 = vcmask 519169
      %vm1376 = vsmask.f32 7942
      %vm1377 = vmand %vm1375, %vm1376
      %v1378 = vld [vmem:[%s170 + $0x4] sm:$0xe]
      %v1379 = vsel %vm1377, %v1371, %v1378
      %1380 = vst [vmem:[%s170 + $0x4] sm:$0xe] %v1379
      %vm1381 = vcmask 517120
      %vm1382 = vsmask.f32 1280
      %vm1383 = vmand %vm1381, %vm1382
      %v1384 = vld [vmem:[%s170 + $0x8] sm:$0x3]
      %v1385 = vsel %vm1383, %v1372, %v1384
      %1386 = vst [vmem:[%s170 + $0x8] sm:$0x3] %v1385
      %v1387 = vadd.f32 %v1333, %v1359
      %v1388 = vadd.f32 %v1334, %v1359
      %v1389 = vmax.f32 %v1387, 0.0
      %v1390 = vmax.f32 %v1388, 0.0
      %v1391 = vpack.c.bf16 %v1389, %v1389
      %v1392 = vpack.c.bf16 %v1390, %v1390
      %vm1393 = vsmask.f32 5392
      %vm1394 = vmor %vm1382, %vm1393
      %v1396 = vshrl.u32 %v1391, 16
      %v1398 = vrot.slane %v1396, 6
      %v1399 = vshll.u32 %v1391, 16
      %v1401 = vrot.slane %v1399, 7
      %v1402 = vor.u32 %v1398, %v1401
      %v1403 = vrot.slane %v1402, 4
      %v1405 = vshrl.u32 %v1392, 16
      %v1407 = vrot.slane %v1405, 6
      %v1408 = vshll.u32 %v1392, 16
      %v1410 = vrot.slane %v1408, 7
      %v1411 = vor.u32 %v1407, %v1410
      %v1412 = vsel %vm1394, %v1403, %v1411
      %vm1415 = vcmask 519170
      %vm1416 = vsmask.f32 7946
      %vm1417 = vmand %vm1415, %vm1416
      %v1418 = vld [vmem:[%s170 + $0x8] sm:$0xc]
      %v1419 = vsel %vm1417, %v1402, %v1418
      %1420 = vst [vmem:[%s170 + $0x8] sm:$0xc] %v1419
      %vm1421 = vcmask 518144
      %vm1422 = vsmask.f32 2304
      %vm1423 = vmand %vm1421, %vm1422
      %v1424 = vld [vmem:[%s170 + $0xc] sm:$0x7]
      %v1425 = vsel %vm1423, %v1412, %v1424
      %1426 = vst [vmem:[%s170 + $0xc] sm:$0x7] %v1425
      %v1427 = vadd.f32 %v1335, %v1359
      %v1428 = vmax.f32 %v1427, 0.0
      %v1429 = vpack.c.bf16 %v1428, %v1428
      %v1430 = vrot.slane %v1411, 4
      %v1432 = vshrl.u32 %v1429, 16
      %v1434 = vrot.slane %v1432, 6
      %v1435 = vshll.u32 %v1429, 16
      %v1437 = vrot.slane %v1435, 7
      %v1438 = vor.u32 %v1434, %v1437
      %v1439 = vsel %vm1394, %v1430, %v1438
      %vm1442 = vcmask 519171
      %vm1443 = vsmask.f32 7950
      %vm1444 = vmand %vm1442, %vm1443
      %v1445 = vld [vmem:[%s170 + $0xc] sm:$0x8]
      %v1446 = vsel %vm1444, %v1410, %v1445
      %1447 = vst [vmem:[%s170 + $0xc] sm:$0x8] %v1446
      %vm1448 = vcmask 519168
      %vm1449 = vsmask.f32 3328
      %vm1450 = vmand %vm1448, %vm1449
      %v1451 = vld [vmem:[%s170 + $0x10] sm:$0xf]
      %v1452 = vsel %vm1450, %v1439, %v1451
      %1453 = vst [vmem:[%s170 + $0x10] sm:$0xf] %v1452
      %v1454 = vadd.f32 %v1336, %v1359
      %v1455 = vmax.f32 %v1454, 0.0
      %v1456 = vpack.c.bf16 %v1455, %v1455
      %v1457 = vrot.slane %v1438, 4
      %v1459 = vshrl.u32 %v1456, 16
      %v1461 = vrot.slane %v1459, 6
      %v1462 = vshll.u32 %v1456, 16
      %v1464 = vrot.slane %v1462, 7
      %v1465 = vor.u32 %v1461, %v1464
      %v1466 = vsel %vm1394, %v1457, %v1465
      %v1467 = vrot.slane %v1461, 4
      %vm1470 = vsmask.f32 7938
      %vm1471 = vmand %vm1448, %vm1470
      %v1472 = vld [vmem:[%s170 + $0x14] sm:$0xf]
      %v1473 = vsel %vm1471, %v1466, %v1472
      %1474 = vst [vmem:[%s170 + $0x14] sm:$0xf] %v1473
      %vm1475 = vcmask 516096
      %vm1476 = vsmask.f32 256
      %vm1477 = vmand %vm1475, %vm1476
      %v1478 = vld [vmem:[%s170 + $0x18] sm:$0x1]
      %v1479 = vsel %vm1477, %v1467, %v1478
      %1480 = vst [vmem:[%s170 + $0x18] sm:$0x1] %v1479
      %v1481 = vadd.f32 %v1337, %v1359
      %v1482 = vmax.f32 %v1481, 0.0
      %v1483 = vpack.c.bf16 %v1482, %v1482
      %v1485 = vshrl.u32 %v1483, 16
      %v1487 = vrot.slane %v1485, 6
      %v1488 = vshll.u32 %v1483, 16
      %v1490 = vrot.slane %v1488, 7
      %v1491 = vor.u32 %v1487, %v1490
      %v1492 = vrot.slane %v1491, 4
      %v1495 = vld [vmem:[%s170 + $0x18] sm:$0xe]
      %v1496 = vsel %vm1377, %v1491, %v1495
      %1497 = vst [vmem:[%s170 + $0x18] sm:$0xe] %v1496
      %v1498 = vld [vmem:[%s170 + $0x1c] sm:$0x3]
      %v1499 = vsel %vm1383, %v1492, %v1498
      %1500 = vst [vmem:[%s170 + $0x1c] sm:$0x3] %v1499
      %v1501 = vadd.f32 %v1338, %v1359
      %v1502 = vadd.f32 %v1339, %v1359
      %v1503 = vmax.f32 %v1501, 0.0
      %v1504 = vmax.f32 %v1502, 0.0
      %v1505 = vpack.c.bf16 %v1503, %v1503
      %v1506 = vpack.c.bf16 %v1504, %v1504
      %v1508 = vshrl.u32 %v1505, 16
      %v1510 = vrot.slane %v1508, 6
      %v1511 = vshll.u32 %v1505, 16
      %v1513 = vrot.slane %v1511, 7
      %v1514 = vor.u32 %v1510, %v1513
      %v1515 = vrot.slane %v1514, 4
      %v1517 = vshrl.u32 %v1506, 16
      %v1519 = vrot.slane %v1517, 6
      %v1520 = vshll.u32 %v1506, 16
      %v1522 = vrot.slane %v1520, 7
      %v1523 = vor.u32 %v1519, %v1522
      %v1524 = vsel %vm1394, %v1515, %v1523
      %v1527 = vld [vmem:[%s170 + $0x1c] sm:$0xc]
      %v1528 = vsel %vm1417, %v1514, %v1527
      %1529 = vst [vmem:[%s170 + $0x1c] sm:$0xc] %v1528
      %v1530 = vld [vmem:[%s170 + $0x20] sm:$0x7]
      %v1531 = vsel %vm1423, %v1524, %v1530
      %1532 = vst [vmem:[%s170 + $0x20] sm:$0x7] %v1531
      %v1533 = vadd.f32 %v1340, %v1359
      %v1534 = vmax.f32 %v1533, 0.0
      %v1535 = vpack.c.bf16 %v1534, %v1534
      %v1536 = vrot.slane %v1523, 4
      %v1538 = vshrl.u32 %v1535, 16
      %v1540 = vrot.slane %v1538, 6
      %v1541 = vshll.u32 %v1535, 16
      %v1543 = vrot.slane %v1541, 7
      %v1544 = vor.u32 %v1540, %v1543
      %v1545 = vsel %vm1394, %v1536, %v1544
      %v1548 = vld [vmem:[%s170 + $0x20] sm:$0x8]
      %v1549 = vsel %vm1444, %v1522, %v1548
      %1550 = vst [vmem:[%s170 + $0x20] sm:$0x8] %v1549
      %v1551 = vld [vmem:[%s170 + $0x24] sm:$0xf]
      %v1552 = vsel %vm1450, %v1545, %v1551
      %1553 = vst [vmem:[%s170 + $0x24] sm:$0xf] %v1552
      %v1554 = vadd.f32 %v1341, %v1359
      %v1555 = vmax.f32 %v1554, 0.0
      %v1556 = vpack.c.bf16 %v1555, %v1555
      %v1557 = vrot.slane %v1544, 4
      %v1559 = vshrl.u32 %v1556, 16
      %v1561 = vrot.slane %v1559, 6
      %v1562 = vshll.u32 %v1556, 16
      %v1564 = vrot.slane %v1562, 7
      %v1565 = vor.u32 %v1561, %v1564
      %v1566 = vsel %vm1394, %v1557, %v1565
      %v1567 = vrot.slane %v1561, 4
      %v1570 = vld [vmem:[%s170 + $0x28] sm:$0xf]
      %v1571 = vsel %vm1471, %v1566, %v1570
      %1572 = vst [vmem:[%s170 + $0x28] sm:$0xf] %v1571
      %v1573 = vld [vmem:[%s170 + $0x2c] sm:$0x1]
      %v1574 = vsel %vm1477, %v1567, %v1573
      %1575 = vst [vmem:[%s170 + $0x2c] sm:$0x1] %v1574
      %p1576 = scmp.lt.s32.totalorder %s14, 1
      %s1577 = scalar_select %p1576, %s14, 1
      %s1578 = smul.addr %s1577, 13
      %s1579 = smul.addr %s1578, 4
      %s1580 = scalar_lea.vmem %s3, %s1579
      // Predicated region
      $region33: #{residual_block_forward.4} parent=31 // pred_check
        %p1581 = pneg %p100
      $region34: #{residual_block_forward.4} parent=31 // pred_check_branch
        %1583 = sbr.rel (%p1581) target = $region36
      $region35: #{residual_block_forward.4} parent=31 // pred_region
        _
      $region36: #{residual_block_forward.4} parent=31 // pred_fallthru
        _
    $region32: #{residual_block_forward.4} parent=5 // pred_fallthru
      _
    %p1584 = scmp.le.s32.totalorder 2, %s9
    // Predicated region
    $region37: #{residual_block_forward.4} parent=5 // pred_check
      %p1585 = pneg %p1584
    $region38: #{residual_block_forward.4} parent=5 // pred_check_branch
      %1587 = sbr.rel (%p1585) target = $region40
    $region39: #{residual_block_forward.4} parent=5 // pred_region
      %s1588 = ssub.s32 %s9, 2
      // Predicated region
      $region41: #{residual_block_forward.4} parent=39 // pred_check
        %p1589 = pneg %p106
      $region42: #{residual_block_forward.4} parent=39 // pred_check_branch
        %1591 = sbr.rel (%p1589) target = $region44
      $region43: #{residual_block_forward.4} parent=39 // pred_region
        %p1592 = scmp.lt.s32.totalorder %s15, 1
        %s1593 = scalar_select %p1592, %s15, 1
        %s1594 = smul.addr %s1593, 13
        %s1595 = smul.addr %s1594, 4
        %s1596 = scalar_lea.vmem %s3, %s1595
      $region44: #{residual_block_forward.4} parent=39 // pred_fallthru
        _
    $region40: #{residual_block_forward.4} parent=5 // pred_fallthru
      _
  $region6: #{residual_block_forward.4} parent=0 // loop_footer
    %s13 = sadd.s32 1, %s9
  $region7: #{residual_block_forward.4} parent=0 // loop_footer_branch
    %8 = sbr.rel target = $region3
  $region8: #{residual_block_forward.4} parent=0 // loop_exit
    _

// kernel: residual_block_forward.5
$region0: #{residual_block_forward.5}
  #allocation0 [shape = 'u32[]', space=smem, size = 0x4, offset = 0x4, fixed_abs, tag = 'smem constant byte address 0x4 - core index']
  #allocation1 [shape = 'u32[72,128]{1,0:T(1,128)}', space=vmem, size = 0x9000, scoped, tag = 'internal scratch']
  %s0 = inlined_call_operand.vmem [shape: bf16[2,100,64], index: 0, kind: input, shape index: {}]
  %s1 = inlined_call_operand.vmem [shape: bf16[9,64,64], index: 1, kind: input, shape index: {}]
  %s2 = inlined_call_operand.vmem [shape: f32[1,64], index: 2, kind: input, shape index: {}]
  %s3 = inlined_call_operand.vmem [shape: bf16[2,100,64], index: 3, kind: input, shape index: {}]
  %s4 = inlined_call_operand.vmem [shape: bf16[2,8,8,64], index: 4, kind: output, shape index: {}]
  %s5 = sld [smem:[#allocation0]]
  $region49: #{residual_block_forward.5} parent=0
    _
  %s7 = ssub.s32 1, %s5
  %s8 = scalar_select 0, %s7, %s5
  loop: start=0, step=1, limit=4
  $region2: #{residual_block_forward.5} parent=0 // loop_pre_header
    _
  $region3: #{residual_block_forward.5} parent=0 // loop_header
    %s10 = sphi 0, %s14
    %p11 = scmp.ge.s32.totalorder %s10, 4
    %s20 = sphi 0, %s22
    %s23 = sphi 0, %s20
    %s24 = sphi 0, %s23
    %s40 = sphi 0, %s24
    %s44 = sphi 0, %s44
    %s46 = sphi 0, %s44
    %s47 = sphi 0, %s46
    %s61 = sphi 0, %s47
    %s65 = sphi 0, %s65
    %s67 = sphi 0, %s65
    %s68 = sphi 0, %s67
    %s82 = sphi 0, %s68
    %s88 = sphi 0, %s90
    %s91 = sphi 0, %s88
    %s92 = sphi 0, %s91
    %s108 = sphi 0, %s92
    %s114 = sphi 0, %s116
    %s117 = sphi 0, %s114
    %s118 = sphi 0, %s117
    %s134 = sphi 0, %s118
  $region4: #{residual_block_forward.5} parent=0 // loop_header_branch
    %13 = sbr.rel (%p11) target = $region8
  $region5: #{residual_block_forward.5} parent=0 // loop_body
    %s15 = ssub.s32 %s10, 1
    %s16 = ssub.s32 %s10, 2
    %s17 = sadd.s32 %s10, 1
    %s18 = ssub.s32 %s10, %s17
    %p19 = scmp.eq.s32.totalorder %s18, 0
    %s21 = sadd.s32 %s20, 1
    %s22 = scalar_select %p19, %s20, %s21
    %p25 = pneg %p19
    %p26 = scmp.eq.s32.totalorder %s10, 1
    %p27 = por %p25, %p26
    %p28 = scmp.ne.s32.totalorder %s20, %s23
    %p29 = scmp.eq.s32.totalorder %s10, 0
    %p30 = por %p28, %p29
    %p31 = scmp.ne.s32.totalorder %s20, %s23
    %p32 = scmp.eq.s32.totalorder %s15, 1
    %p33 = por %p31, %p32
    %p34 = scmp.ne.s32.totalorder %s23, %s24
    %p35 = scmp.eq.s32.totalorder %s15, 0
    %p36 = por %p34, %p35
    %p37 = scmp.ne.s32.totalorder %s23, %s24
    %p38 = scmp.eq.s32.totalorder %s16, 1
    %p39 = por %p37, %p38
    %p41 = scmp.ne.s32.totalorder %s24, %s40
    %p42 = scmp.eq.s32.totalorder %s16, 0
    %p43 = por %p41, %p42
    %s45 = sadd.s32 %s44, 1
    %p48 = scmp.eq.s32.totalorder %s10, 1
    %p49 = scmp.ne.s32.totalorder %s44, %s46
    %p50 = scmp.eq.s32.totalorder %s10, 0
    %p51 = por %p49, %p50
    %p52 = scmp.ne.s32.totalorder %s44, %s46
    %p53 = scmp.eq.s32.totalorder %s15, 1
    %p54 = por %p52, %p53
    %p55 = scmp.ne.s32.totalorder %s46, %s47
    %p56 = scmp.eq.s32.totalorder %s15, 0
    %p57 = por %p55, %p56
    %p58 = scmp.ne.s32.totalorder %s46, %s47
    %p59 = scmp.eq.s32.totalorder %s16, 1
    %p60 = por %p58, %p59
    %p62 = scmp.ne.s32.totalorder %s47, %s61
    %p63 = scmp.eq.s32.totalorder %s16, 0
    %p64 = por %p62, %p63
    %s66 = sadd.s32 %s65, 1
    %p69 = scmp.eq.s32.totalorder %s10, 1
    %p70 = scmp.ne.s32.totalorder %s65, %s67
    %p71 = scmp.eq.s32.totalorder %s10, 0
    %p72 = por %p70, %p71
    %p73 = scmp.ne.s32.totalorder %s65, %s67
    %p74 = scmp.eq.s32.totalorder %s15, 1
    %p75 = por %p73, %p74
    %p76 = scmp.ne.s32.totalorder %s67, %s68
    %p77 = scmp.eq.s32.totalorder %s15, 0
    %p78 = por %p76, %p77
    %p79 = scmp.ne.s32.totalorder %s67, %s68
    %p80 = scmp.eq.s32.totalorder %s16, 1
    %p81 = por %p79, %p80
    %p83 = scmp.ne.s32.totalorder %s68, %s82
    %p84 = scmp.eq.s32.totalorder %s16, 0
    %p85 = por %p83, %p84
    %s86 = ssub.s32 %s10, %s17
    %p87 = scmp.eq.s32.totalorder %s86, 0
    %s89 = sadd.s32 %s88, 1
    %s90 = scalar_select %p87, %s88, %s89
    %p93 = pneg %p87
    %p94 = scmp.eq.s32.totalorder %s10, 1
    %p95 = por %p93, %p94
    %p96 = scmp.ne.s32.totalorder %s88, %s91
    %p97 = scmp.eq.s32.totalorder %s10, 0
    %p98 = por %p96, %p97
    %p99 = scmp.ne.s32.totalorder %s88, %s91
    %p100 = scmp.eq.s32.totalorder %s15, 1
    %p101 = por %p99, %p100
    %p102 = scmp.ne.s32.totalorder %s91, %s92
    %p103 = scmp.eq.s32.totalorder %s15, 0
    %p104 = por %p102, %p103
    %p105 = scmp.ne.s32.totalorder %s91, %s92
    %p106 = scmp.eq.s32.totalorder %s16, 1
    %p107 = por %p105, %p106
    %p109 = scmp.ne.s32.totalorder %s92, %s108
    %p110 = scmp.eq.s32.totalorder %s16, 0
    %p111 = por %p109, %p110
    %s112 = ssub.s32 %s10, %s17
    %p113 = scmp.eq.s32.totalorder %s112, 0
    %s115 = sadd.s32 %s114, 1
    %s116 = scalar_select %p113, %s114, %s115
    %p119 = pneg %p113
    %p120 = scmp.eq.s32.totalorder %s10, 1
    %p121 = por %p119, %p120
    %p122 = scmp.ne.s32.totalorder %s114, %s117
    %p123 = scmp.eq.s32.totalorder %s10, 0
    %p124 = por %p122, %p123
    %p125 = scmp.ne.s32.totalorder %s114, %s117
    %p126 = scmp.eq.s32.totalorder %s15, 1
    %p127 = por %p125, %p126
    %p128 = scmp.ne.s32.totalorder %s117, %s118
    %p129 = scmp.eq.s32.totalorder %s15, 0
    %p130 = por %p128, %p129
    %p131 = scmp.ne.s32.totalorder %s117, %s118
    %p132 = scmp.eq.s32.totalorder %s16, 1
    %p133 = por %p131, %p132
    %p135 = scmp.ne.s32.totalorder %s118, %s134
    %p136 = scmp.eq.s32.totalorder %s16, 0
    %p137 = por %p135, %p136
    %p138 = scmp.le.s32.totalorder 1, %s10
    %p139 = scmp.lt.s32.totalorder %s10, 3
    %p140 = pnand %p138, %p139
    %p141 = pneg %p140
    // Predicated region
    $region9: #{residual_block_forward.5} parent=5 // pred_check
      _
    $region10: #{residual_block_forward.5} parent=5 // pred_check_branch
      %143 = sbr.rel (%p140) target = $region12
    $region11: #{residual_block_forward.5} parent=5 // pred_region
      %s144 = ssub.s32 %s10, 1
      // Predicated region
      $region13: #{residual_block_forward.5} parent=11 // pred_check
        %p145 = pneg %p57
      $region14: #{residual_block_forward.5} parent=11 // pred_check_branch
        %147 = sbr.rel (%p145) target = $region16
      $region15: #{residual_block_forward.5} parent=11 // pred_region
        _
      $region16: #{residual_block_forward.5} parent=11 // pred_fallthru
        _
      // Predicated region
      $region17: #{residual_block_forward.5} parent=11 // pred_check
        %p148 = pneg %p78
      $region18: #{residual_block_forward.5} parent=11 // pred_check_branch
        %150 = sbr.rel (%p148) target = $region20
      $region19: #{residual_block_forward.5} parent=11 // pred_region
        _
      $region20: #{residual_block_forward.5} parent=11 // pred_fallthru
        _
    $region12: #{residual_block_forward.5} parent=5 // pred_fallthru
      _
    %p151 = scmp.lt.s32.totalorder %s10, 2
    // Predicated region
    $region21: #{residual_block_forward.5} parent=5 // pred_check
      %p152 = pneg %p151
    $region22: #{residual_block_forward.5} parent=5 // pred_check_branch
      %154 = sbr.rel (%p152) target = $region24
    $region23: #{residual_block_forward.5} parent=5 // pred_region
      // Predicated region
      $region25: #{residual_block_forward.5} parent=23 // pred_check
        %p155 = pneg %p30
      $region26: #{residual_block_forward.5} parent=23 // pred_check_branch
        %157 = sbr.rel (%p155) target = $region28
      $region27: #{residual_block_forward.5} parent=23 // pred_region
        %p158 = scmp.lt.s32.totalorder %s10, 1
        %s159 = scalar_select %p158, %s10, 1
        %s160 = smul.addr %s159, 13
        %s161 = smul.addr %s160, 4
        %s162 = scalar_lea.vmem %s0, %s161
      $region28: #{residual_block_forward.5} parent=23 // pred_fallthru
        _
      // Predicated region
      $region29: #{residual_block_forward.5} parent=23 // pred_check
        %p163 = pneg %p98
      $region30: #{residual_block_forward.5} parent=23 // pred_check_branch
        %165 = sbr.rel (%p163) target = $region32
      $region31: #{residual_block_forward.5} parent=23 // pred_region
        %p166 = scmp.lt.s32.totalorder %s10, 1
        %s167 = scalar_select %p166, %s10, 1
        %s168 = smul.addr %s167, 13
        %s169 = smul.addr %s168, 4
        %s170 = scalar_lea.vmem %s3, %s169
      $region32: #{residual_block_forward.5} parent=23 // pred_fallthru
        _
    $region24: #{residual_block_forward.5} parent=5 // pred_fallthru
      _
    %p171 = scmp.le.s32.totalorder 1, %s10
    %p172 = scmp.lt.s32.totalorder %s10, 3
    %p173 = pnand %p171, %p172
    %p174 = pneg %p173
    // Predicated region
    $region33: #{residual_block_forward.5} parent=5 // pred_check
      _
    $region34: #{residual_block_forward.5} parent=5 // pred_check_branch
      %176 = sbr.rel (%p173) target = $region36
    $region35: #{residual_block_forward.5} parent=5 // pred_region
      %s177 = ssub.s32 %s10, 1
      %p178 = scmp.lt.s32.totalorder %s15, 1
      %s179 = scalar_select %p178, %s15, 1
      %s180 = smul.addr %s179, 13
      %s181 = smul.addr %s180, 4
      %s182 = scalar_lea.vmem %s0, %s181
      %p183 = pneg %p36
      %p184 = pneg %p33
      %p185 = pneg %p57
      %p186 = pneg %p54
      %p187 = pneg %p78
      %p188 = pneg %p75
      %p189 = scmp.lt.s32.totalorder %s15, 1
      %s190 = scalar_select %p189, %s15, 1
      %s191 = smul.addr %s190, 13
      %s192 = smul.addr %s191, 4
      %s193 = scalar_lea.vmem %s3, %s192
      %p194 = pneg %p104
      %p195 = pneg %p101
      %p196 = pneg %p130
      %p197 = pneg %p127
      %p198 = scmp.lt.s32.totalorder %s15, 1
      %s199 = scalar_select %p198, %s15, 1
      %s200 = smul.addr %s199, 8
      %s201 = smul.addr %s200, 4
      %s202 = scalar_lea.vmem %s4, %s201
      %p203 = scmp.lt.s32.totalorder %s15, 1
      %s204 = scalar_select %p203, %s15, 1
      %s205 = smul.addr %s204, 13
      %s206 = smul.addr %s205, 4
      %s207 = scalar_lea.vmem %s0, %s206
      %p208 = scmp.lt.s32.totalorder %s15, 1
      %s209 = scalar_select %p208, %s15, 1
      %s210 = smul.addr %s209, 13
      %s211 = smul.addr %s210, 4
      %s212 = scalar_lea.vmem %s3, %s211
      %p213 = scmp.lt.s32.totalorder %s15, 1
      %s214 = scalar_select %p213, %s15, 1
      %s215 = smul.addr %s214, 8
      %s216 = smul.addr %s215, 4
      %s217 = scalar_lea.vmem %s4, %s216
      %v219 = vld [vmem:[%s207] sm:$0xf]
      %v220 = vld [vmem:[%s207 + $0x4] sm:$0xf]
      %v221 = vld [vmem:[%s207 + $0x8] sm:$0xf]
      %v222 = vld [vmem:[%s207 + $0xc] sm:$0xf]
      %v223 = vld [vmem:[%s207 + $0x10] sm:$0xf]
      %v224 = vld [vmem:[%s207 + $0x14] sm:$0xf]
      %v225 = vld [vmem:[%s207 + $0x18] sm:$0xf]
      %v226 = vld [vmem:[%s207 + $0x1c] sm:$0xf]
      %v227 = vld [vmem:[%s207 + $0x20] sm:$0xf]
      %v228 = vld [vmem:[%s207 + $0x24] sm:$0x7]
      %v229 = vld [vmem:[%s1] sm:$0xf]
      %v230 = vld [vmem:[%s1 + $0x4] sm:$0xf]
      %v231 = vld [vmem:[%s1 + $0x8] sm:$0xf]
      %v232 = vld [vmem:[%s1 + $0xc] sm:$0xf]
      %v233 = vld [vmem:[%s1 + $0x10] sm:$0xf]
      %v234 = vld [vmem:[%s1 + $0x14] sm:$0xf]
      %v235 = vld [vmem:[%s1 + $0x18] sm:$0xf]
      %v236 = vld [vmem:[%s1 + $0x1c] sm:$0xf]
      %v237 = vld [vmem:[%s207 + $0x24] sm:$0xf]
      %s238 = scalar_lea.vmem %s1, 32
      %v239 = vld [vmem:[%s238] sm:$0xf]
      %v240 = vld [vmem:[%s238 + $0x4] sm:$0xf]
      %v241 = vld [vmem:[%s238 + $0x8] sm:$0xf]
      %v242 = vld [vmem:[%s238 + $0xc] sm:$0xf]
      %v243 = vld [vmem:[%s238 + $0x10] sm:$0xf]
      %v244 = vld [vmem:[%s238 + $0x14] sm:$0xf]
      %v245 = vld [vmem:[%s238 + $0x18] sm:$0xf]
      %v246 = vld [vmem:[%s238 + $0x1c] sm:$0xf]
      %v257 = vunpack.c.l.b16 %v219
      %v258 = vunpack.c.l.b16 %v220
      %v259 = vunpack.c.l.b16 %v221
      %v260 = vunpack.c.l.b16 %v222
      %v261 = vunpack.c.l.b16 %v223
      %v262 = vunpack.c.l.b16 %v224
      %v263 = vunpack.c.l.b16 %v225
      %v264 = vunpack.c.l.b16 %v226
      %v265 = vunpack.c.l.b16 %v227
      %v266 = vunpack.c.l.b16 %v237
      %v267 = vpack.c.b16 %v258, %v257
      %v268 = vpack.c.b16 %v260, %v259
      %v269 = vpack.c.b16 %v262, %v261
      %v270 = vpack.c.b16 %v264, %v263
      %v271 = vpack.c.b16 %v266, %v265
      %vm272 = vsmask.f32 7424
      %v274 = vshrl.u32 %v267, 16
      %v276 = vshll.u32 %v267, 16
      %v278 = vrot.slane %v276, 1
      %v279 = vor.u32 %v274, %v278
      %v281 = vshll.u32 %v268, 16
      %v283 = vrot.slane %v281, 1
      %v284 = vsel %vm272, %v279, %v283
      %v285 = vshrl.u32 %v268, 16
      %v287 = vor.u32 %v285, %v283
      %v289 = vshll.u32 %v269, 16
      %v291 = vrot.slane %v289, 1
      %v292 = vsel %vm272, %v287, %v291
      %v293 = vshrl.u32 %v269, 16
      %v295 = vor.u32 %v293, %v291
      %v297 = vshll.u32 %v270, 16
      %v299 = vrot.slane %v297, 1
      %v300 = vsel %vm272, %v295, %v299
      %v301 = vshrl.u32 %v270, 16
      %v303 = vor.u32 %v301, %v299
      %v305 = vshll.u32 %v271, 16
      %v307 = vrot.slane %v305, 1
      %v308 = vsel %vm272, %v303, %v307
      %v309 = vshrl.u32 %v271, 16
      %v311 = vor.u32 %v309, %v307
      %v320 = vunpack.c.l.b16 %v239
      %v321 = vunpack.c.l.b16 %v240
      %v322 = vunpack.c.l.b16 %v241
      %v323 = vunpack.c.l.b16 %v242
      %v324 = vunpack.c.l.b16 %v243
      %v325 = vunpack.c.l.b16 %v244
      %v326 = vunpack.c.l.b16 %v245
      %v327 = vunpack.c.l.b16 %v246
      %v328 = vpack.c.b16 %v321, %v320
      %v329 = vpack.c.b16 %v323, %v322
      %v330 = vpack.c.b16 %v325, %v324
      %v331 = vpack.c.b16 %v327, %v326
      %vm336 = vcmask 523264
      %v338 = vsel %vm336, %v284, 0
      %v341 = vsel %vm336, %v292, 0
      %v344 = vsel %vm336, %v300, 0
      %v347 = vsel %vm336, %v308, 0
      %v350 = vsel %vm336, %v311, 0
      %352 = vmatpush.bf16.msra.mxu0 0
      %353 = vmatpush.bf16.msra.mxu0 0
      %354 = vmatpush.bf16.msra.mxu0 0
      %355 = vmatpush.bf16.msra.mxu0 0
      %356 = vmatpush.bf16.msra.mxu0 %v331
      %357 = vmatpush.bf16.msra.mxu0 %v330
      %358 = vmatpush.bf16.msra.mxu0 %v329
      %359 = vmatpush.bf16.msra.mxu0 %v328
      %360 = vmatmul.bf16.gmra.mxu0 %v338
      %v361 = vpop.f32.mrf.mxu0
      %v362 = vadd.f32 0.0, %v361
      %v363 = vpop.f32.mrf.mxu0
      %v364 = vadd.f32 0.0, %v363
      %365 = vmatmul.bf16.gmra.mxu0 %v341
      %v366 = vpop.f32.mrf.mxu0
      %v367 = vadd.f32 0.0, %v366
      %v368 = vpop.f32.mrf.mxu0
      %v369 = vadd.f32 0.0, %v368
      %370 = vmatmul.bf16.gmra.mxu0 %v344
      %v371 = vpop.f32.mrf.mxu0
      %v372 = vadd.f32 0.0, %v371
      %v373 = vpop.f32.mrf.mxu0
      %v374 = vadd.f32 0.0, %v373
      %375 = vmatmul.bf16.gmra.mxu0 %v347
      %v376 = vpop.f32.mrf.mxu0
      %v377 = vadd.f32 0.0, %v376
      %v378 = vpop.f32.mrf.mxu0
      %v379 = vadd.f32 0.0, %v378
      %380 = vmatmul.bf16.gmra.mxu0 %v350
      %v381 = vpop.f32.mrf.mxu0
      %v382 = vadd.f32 0.0, %v381
      %v383 = vpop.f32.mrf.mxu0
      %v384 = vadd.f32 0.0, %v383
      %385 = vdwg.mxu0
      %v387 = vunpack.c.l.b16 %v228
      %v388 = vpack.c.b16 %v387, %v265
      %v397 = vunpack.c.l.b16 %v229
      %v398 = vunpack.c.l.b16 %v230
      %v399 = vunpack.c.l.b16 %v231
      %v400 = vunpack.c.l.b16 %v232
      %v401 = vunpack.c.l.b16 %v233
      %v402 = vunpack.c.l.b16 %v234
      %v403 = vunpack.c.l.b16 %v235
      %v404 = vunpack.c.l.b16 %v236
      %v405 = vpack.c.b16 %v398, %v397
      %v406 = vpack.c.b16 %v400, %v399
      %v407 = vpack.c.b16 %v402, %v401
      %v408 = vpack.c.b16 %v404, %v403
      %v413 = vsel %vm336, %v267, 0
      %v415 = vsel %vm336, %v268, 0
      %v417 = vsel %vm336, %v269, 0
      %v419 = vsel %vm336, %v270, 0
      %v422 = vsel %vm336, %v388, 0
      %424 = vmatpush.bf16.msra.mxu0 0
      %425 = vmatpush.bf16.msra.mxu0 0
      %426 = vmatpush.bf16.msra.mxu0 0
      %427 = vmatpush.bf16.msra.mxu0 0
      %428 = vmatpush.bf16.msra.mxu0 %v408
      %429 = vmatpush.bf16.msra.mxu0 %v407
      %430 = vmatpush.bf16.msra.mxu0 %v406
      %431 = vmatpush.bf16.msra.mxu0 %v405
      %432 = vmatmul.bf16.gmra.mxu0 %v413
      %v433 = vpop.f32.mrf.mxu0
      %v434 = vadd.f32 %v362, %v433
      %v435 = vpop.f32.mrf.mxu0
      %v436 = vadd.f32 %v364, %v435
      %437 = vmatmul.bf16.gmra.mxu0 %v415
      %v438 = vpop.f32.mrf.mxu0
      %v439 = vadd.f32 %v367, %v438
      %v440 = vpop.f32.mrf.mxu0
      %v441 = vadd.f32 %v369, %v440
      %442 = vmatmul.bf16.gmra.mxu0 %v417
      %v443 = vpop.f32.mrf.mxu0
      %v444 = vadd.f32 %v372, %v443
      %v445 = vpop.f32.mrf.mxu0
      %v446 = vadd.f32 %v374, %v445
      %447 = vmatmul.bf16.gmra.mxu0 %v419
      %v448 = vpop.f32.mrf.mxu0
      %v449 = vadd.f32 %v377, %v448
      %v450 = vpop.f32.mrf.mxu0
      %v451 = vadd.f32 %v379, %v450
      %452 = vmatmul.bf16.gmra.mxu0 %v422
      %v453 = vpop.f32.mrf.mxu0
      %v454 = vadd.f32 %v382, %v453
      %v455 = vpop.f32.mrf.mxu0
      %v456 = vadd.f32 %v384, %v455
      %457 = vdwg.mxu0
      %v458 = vld [vmem:[%s207] sm:$0xe]
      %s459 = scalar_lea.vmem %s1, 64
      %v460 = vld [vmem:[%s459] sm:$0xf]
      %v461 = vld [vmem:[%s459 + $0x4] sm:$0xf]
      %v462 = vld [vmem:[%s459 + $0x8] sm:$0xf]
      %v463 = vld [vmem:[%s459 + $0xc] sm:$0xf]
      %v464 = vld [vmem:[%s459 + $0x10] sm:$0xf]
      %v465 = vld [vmem:[%s459 + $0x14] sm:$0xf]
      %v466 = vld [vmem:[%s459 + $0x18] sm:$0xf]
      %v467 = vld [vmem:[%s459 + $0x1c] sm:$0xf]
      %v469 = vunpack.c.l.b16 %v458
      %v470 = vpack.c.b16 %v258, %v469
      %vm471 = vcmask 1046528
      %v472 = vrot.slane %v470, 1
      %v473 = vrot.slane %v268, 1
      %v474 = vsel %vm471, %v472, %v473
      %v475 = vrot.slane %v269, 1
      %v476 = vsel %vm471, %v473, %v475
      %v477 = vrot.slane %v270, 1
      %v478 = vsel %vm471, %v475, %v477
      %v479 = vrot.slane %v271, 1
      %v480 = vsel %vm471, %v477, %v479
      %v489 = vunpack.c.l.b16 %v460
      %v490 = vunpack.c.l.b16 %v461
      %v491 = vunpack.c.l.b16 %v462
      %v492 = vunpack.c.l.b16 %v463
      %v493 = vunpack.c.l.b16 %v464
      %v494 = vunpack.c.l.b16 %v465
      %v495 = vunpack.c.l.b16 %v466
      %v496 = vunpack.c.l.b16 %v467
      %v497 = vpack.c.b16 %v490, %v489
      %v498 = vpack.c.b16 %v492, %v491
      %v499 = vpack.c.b16 %v494, %v493
      %v500 = vpack.c.b16 %v496, %v495
      %v506 = vsel %vm336, %v474, 0
      %v509 = vsel %vm336, %v476, 0
      %v512 = vsel %vm336, %v478, 0
      %v515 = vsel %vm336, %v480, 0
      %v518 = vsel %vm336, %v479, 0
      %520 = vmatpush.bf16.msra.mxu0 0
      %521 = vmatpush.bf16.msra.mxu0 0
      %522 = vmatpush.bf16.msra.mxu0 0
      %523 = vmatpush.bf16.msra.mxu0 0
      %524 = vmatpush.bf16.msra.mxu0 %v500
      %525 = vmatpush.bf16.msra.mxu0 %v499
      %526 = vmatpush.bf16.msra.mxu0 %v498
      %527 = vmatpush.bf16.msra.mxu0 %v497
      %528 = vmatmul.bf16.gmra.mxu0 %v506
      %v529 = vpop.f32.mrf.mxu0
      %v530 = vadd.f32 0.0, %v529
      %v531 = vpop.f32.mrf.mxu0
      %v532 = vadd.f32 0.0, %v531
      %533 = vmatmul.bf16.gmra.mxu0 %v509
      %v534 = vpop.f32.mrf.mxu0
      %v535 = vadd.f32 0.0, %v534
      %v536 = vpop.f32.mrf.mxu0
      %v537 = vadd.f32 0.0, %v536
      %538 = vmatmul.bf16.gmra.mxu0 %v512
      %v539 = vpop.f32.mrf.mxu0
      %v540 = vadd.f32 0.0, %v539
      %v541 = vpop.f32.mrf.mxu0
      %v542 = vadd.f32 0.0, %v541
      %543 = vmatmul.bf16.gmra.mxu0 %v515
      %v544 = vpop.f32.mrf.mxu0
      %v545 = vadd.f32 0.0, %v544
      %v546 = vpop.f32.mrf.mxu0
      %v547 = vadd.f32 0.0, %v546
      %548 = vmatmul.bf16.gmra.mxu0 %v518
      %v549 = vpop.f32.mrf.mxu0
      %v550 = vadd.f32 0.0, %v549
      %v551 = vpop.f32.mrf.mxu0
      %v552 = vadd.f32 0.0, %v551
      %553 = vdwg.mxu0
      %v554 = vadd.f32 %v434, %v530
      %v555 = vadd.f32 %v436, %v532
      %v556 = vadd.f32 %v439, %v535
      %v557 = vadd.f32 %v441, %v537
      %v558 = vadd.f32 %v444, %v540
      %v559 = vadd.f32 %v446, %v542
      %v560 = vadd.f32 %v449, %v545
      %v561 = vadd.f32 %v451, %v547
      %v562 = vadd.f32 %v454, %v550
      %v563 = vadd.f32 %v456, %v552
      %v564 = vld [vmem:[%s207 + $0x4] sm:$0xe]
      %v565 = vld [vmem:[%s207 + $0x8] sm:$0xf]
      %v566 = vld [vmem:[%s207 + $0xc] sm:$0xf]
      %v567 = vld [vmem:[%s207 + $0x10] sm:$0xf]
      %v568 = vld [vmem:[%s207 + $0x14] sm:$0xf]
      %v569 = vld [vmem:[%s207 + $0x18] sm:$0xf]
      %v570 = vld [vmem:[%s207 + $0x1c] sm:$0xf]
      %v571 = vld [vmem:[%s207 + $0x20] sm:$0xf]
      %v572 = vld [vmem:[%s207 + $0x24] sm:$0xf]
      %v573 = vld [vmem:[%s207 + $0x28] sm:$0xf]
      %s574 = scalar_lea.vmem %s1, 96
      %v575 = vld [vmem:[%s574] sm:$0xf]
      %v576 = vld [vmem:[%s574 + $0x4] sm:$0xf]
      %v577 = vld [vmem:[%s574 + $0x8] sm:$0xf]
      %v578 = vld [vmem:[%s574 + $0xc] sm:$0xf]
      %v579 = vld [vmem:[%s574 + $0x10] sm:$0xf]
      %v580 = vld [vmem:[%s574 + $0x14] sm:$0xf]
      %v581 = vld [vmem:[%s574 + $0x18] sm:$0xf]
      %v582 = vld [vmem:[%s574 + $0x1c] sm:$0xf]
      %v593 = vunpack.c.l.b16 %v564
      %v594 = vunpack.c.l.b16 %v565
      %v595 = vunpack.c.l.b16 %v566
      %v596 = vunpack.c.l.b16 %v567
      %v597 = vunpack.c.l.b16 %v568
      %v598 = vunpack.c.l.b16 %v569
      %v599 = vunpack.c.l.b16 %v570
      %v600 = vunpack.c.l.b16 %v571
      %v601 = vunpack.c.l.b16 %v572
      %v602 = vunpack.c.l.b16 %v573
      %v603 = vpack.c.b16 %v594, %v593
      %v604 = vpack.c.b16 %v596, %v595
      %v605 = vpack.c.b16 %v598, %v597
      %v606 = vpack.c.b16 %v600, %v599
      %v607 = vpack.c.b16 %v602, %v601
      %v608 = vrot.slane %v603, 1
      %v609 = vrot.slane %v604, 1
      %v610 = vsel %vm471, %v608, %v609
      %v611 = vrot.slane %v605, 1
      %v612 = vsel %vm471, %v609, %v611
      %v613 = vrot.slane %v606, 1
      %v614 = vsel %vm471, %v611, %v613
      %v615 = vrot.slane %v607, 1
      %v616 = vsel %vm471, %v613, %v615
      %v625 = vunpack.c.l.b16 %v575
      %v626 = vunpack.c.l.b16 %v576
      %v627 = vunpack.c.l.b16 %v577
      %v628 = vunpack.c.l.b16 %v578
      %v629 = vunpack.c.l.b16 %v579
      %v630 = vunpack.c.l.b16 %v580
      %v631 = vunpack.c.l.b16 %v581
      %v632 = vunpack.c.l.b16 %v582
      %v633 = vpack.c.b16 %v626, %v625
      %v634 = vpack.c.b16 %v628, %v627
      %v635 = vpack.c.b16 %v630, %v629
      %v636 = vpack.c.b16 %v632, %v631
      %v642 = vsel %vm336, %v610, 0
      %v645 = vsel %vm336, %v612, 0
      %v648 = vsel %vm336, %v614, 0
      %v651 = vsel %vm336, %v616, 0
      %v654 = vsel %vm336, %v615, 0
      %656 = vmatpush.bf16.msra.mxu0 0
      %657 = vmatpush.bf16.msra.mxu0 0
      %658 = vmatpush.bf16.msra.mxu0 0
      %659 = vmatpush.bf16.msra.mxu0 0
      %660 = vmatpush.bf16.msra.mxu0 %v636
      %661 = vmatpush.bf16.msra.mxu0 %v635
      %662 = vmatpush.bf16.msra.mxu0 %v634
      %663 = vmatpush.bf16.msra.mxu0 %v633
      %664 = vmatmul.bf16.gmra.mxu0 %v642
      %v665 = vpop.f32.mrf.mxu0
      %v666 = vadd.f32 0.0, %v665
      %v667 = vpop.f32.mrf.mxu0
      %v668 = vadd.f32 0.0, %v667
      %669 = vmatmul.bf16.gmra.mxu0 %v645
      %v670 = vpop.f32.mrf.mxu0
      %v671 = vadd.f32 0.0, %v670
      %v672 = vpop.f32.mrf.mxu0
      %v673 = vadd.f32 0.0, %v672
      %674 = vmatmul.bf16.gmra.mxu0 %v648
      %v675 = vpop.f32.mrf.mxu0
      %v676 = vadd.f32 0.0, %v675
      %v677 = vpop.f32.mrf.mxu0
      %v678 = vadd.f32 0.0, %v677
      %679 = vmatmul.bf16.gmra.mxu0 %v651
      %v680 = vpop.f32.mrf.mxu0
      %v681 = vadd.f32 0.0, %v680
      %v682 = vpop.f32.mrf.mxu0
      %v683 = vadd.f32 0.0, %v682
      %684 = vmatmul.bf16.gmra.mxu0 %v654
      %v685 = vpop.f32.mrf.mxu0
      %v686 = vadd.f32 0.0, %v685
      %v687 = vpop.f32.mrf.mxu0
      %v688 = vadd.f32 0.0, %v687
      %689 = vdwg.mxu0
      %v690 = vadd.f32 %v554, %v666
      %v691 = vadd.f32 %v555, %v668
      %v692 = vadd.f32 %v556, %v671
      %v693 = vadd.f32 %v557, %v673
      %v694 = vadd.f32 %v558, %v676
      %v695 = vadd.f32 %v559, %v678
      %v696 = vadd.f32 %v560, %v681
      %v697 = vadd.f32 %v561, %v683
      %v698 = vadd.f32 %v562, %v686
      %v699 = vadd.f32 %v563, %v688
      %v700 = vld [vmem:[%s207 + $0x4] sm:$0xe]
      %v701 = vld [vmem:[%s207 + $0x8] sm:$0xf]
      %v702 = vld [vmem:[%s207 + $0xc] sm:$0xf]
      %v703 = vld [vmem:[%s207 + $0x10] sm:$0xf]
      %v704 = vld [vmem:[%s207 + $0x14] sm:$0xf]
      %v705 = vld [vmem:[%s207 + $0x18] sm:$0xf]
      %v706 = vld [vmem:[%s207 + $0x1c] sm:$0xf]
      %v707 = vld [vmem:[%s207 + $0x20] sm:$0xf]
      %v708 = vld [vmem:[%s207 + $0x24] sm:$0xf]
      %v709 = vld [vmem:[%s207 + $0x28] sm:$0xf]
      %v710 = vld [vmem:[%s207 + $0x2c] sm:$0x1]
      %s711 = scalar_lea.vmem %s1, 128
      %v712 = vld [vmem:[%s711] sm:$0xf]
      %v713 = vld [vmem:[%s711 + $0x4] sm:$0xf]
      %v714 = vld [vmem:[%s711 + $0x8] sm:$0xf]
      %v715 = vld [vmem:[%s711 + $0xc] sm:$0xf]
      %v716 = vld [vmem:[%s711 + $0x10] sm:$0xf]
      %v717 = vld [vmem:[%s711 + $0x14] sm:$0xf]
      %v718 = vld [vmem:[%s711 + $0x18] sm:$0xf]
      %v719 = vld [vmem:[%s711 + $0x1c] sm:$0xf]
      %v731 = vunpack.c.l.b16 %v700
      %v732 = vunpack.c.l.b16 %v701
      %v733 = vunpack.c.l.b16 %v702
      %v734 = vunpack.c.l.b16 %v703
      %v735 = vunpack.c.l.b16 %v704
      %v736 = vunpack.c.l.b16 %v705
      %v737 = vunpack.c.l.b16 %v706
      %v738 = vunpack.c.l.b16 %v707
      %v739 = vunpack.c.l.b16 %v708
      %v740 = vunpack.c.l.b16 %v709
      %v741 = vunpack.c.l.b16 %v710
      %v742 = vpack.c.b16 %v732, %v731
      %v743 = vpack.c.b16 %v734, %v733
      %v744 = vpack.c.b16 %v736, %v735
      %v745 = vpack.c.b16 %v738, %v737
      %v746 = vpack.c.b16 %v740, %v739
      %v747 = vpack.c.b16 %v741, %v741
      %vm748 = vsmask.f32 6400
      %v750 = vshrl.u32 %v742, 16
      %v752 = vrot.slane %v750, 1
      %v753 = vshll.u32 %v742, 16
      %v755 = vrot.slane %v753, 2
      %v756 = vor.u32 %v752, %v755
      %v758 = vshrl.u32 %v743, 16
      %v760 = vrot.slane %v758, 1
      %v761 = vshll.u32 %v743, 16
      %v763 = vrot.slane %v761, 2
      %v764 = vor.u32 %v760, %v763
      %v765 = vsel %vm748, %v756, %v764
      %v767 = vshrl.u32 %v744, 16
      %v769 = vrot.slane %v767, 1
      %v770 = vshll.u32 %v744, 16
      %v772 = vrot.slane %v770, 2
      %v773 = vor.u32 %v769, %v772
      %v774 = vsel %vm748, %v764, %v773
      %v776 = vshrl.u32 %v745, 16
      %v778 = vrot.slane %v776, 1
      %v779 = vshll.u32 %v745, 16
      %v781 = vrot.slane %v779, 2
      %v782 = vor.u32 %v778, %v781
      %v783 = vsel %vm748, %v773, %v782
      %v785 = vshrl.u32 %v746, 16
      %v787 = vrot.slane %v785, 1
      %v788 = vshll.u32 %v746, 16
      %v790 = vrot.slane %v788, 2
      %v791 = vor.u32 %v787, %v790
      %v792 = vsel %vm748, %v782, %v791
      %v794 = vshll.u32 %v747, 16
      %v796 = vrot.slane %v794, 2
      %v797 = vsel %vm748, %v791, %v796
      %v806 = vunpack.c.l.b16 %v712
      %v807 = vunpack.c.l.b16 %v713
      %v808 = vunpack.c.l.b16 %v714
      %v809 = vunpack.c.l.b16 %v715
      %v810 = vunpack.c.l.b16 %v716
      %v811 = vunpack.c.l.b16 %v717
      %v812 = vunpack.c.l.b16 %v718
      %v813 = vunpack.c.l.b16 %v719
      %v814 = vpack.c.b16 %v807, %v806
      %v815 = vpack.c.b16 %v809, %v808
      %v816 = vpack.c.b16 %v811, %v810
      %v817 = vpack.c.b16 %v813, %v812
      %v823 = vsel %vm336, %v765, 0
      %v826 = vsel %vm336, %v774, 0
      %v829 = vsel %vm336, %v783, 0
      %v832 = vsel %vm336, %v792, 0
      %v835 = vsel %vm336, %v797, 0
      %837 = vmatpush.bf16.msra.mxu0 0
      %838 = vmatpush.bf16.msra.mxu0 0
      %839 = vmatpush.bf16.msra.mxu0 0
      %840 = vmatpush.bf16.msra.mxu0 0
      %841 = vmatpush.bf16.msra.mxu0 %v817
      %842 = vmatpush.bf16.msra.mxu0 %v816
      %843 = vmatpush.bf16.msra.mxu0 %v815
      %844 = vmatpush.bf16.msra.mxu0 %v814
      %845 = vmatmul.bf16.gmra.mxu0 %v823
      %v846 = vpop.f32.mrf.mxu0
      %v847 = vadd.f32 0.0, %v846
      %v848 = vpop.f32.mrf.mxu0
      %v849 = vadd.f32 0.0, %v848
      %850 = vmatmul.bf16.gmra.mxu0 %v826
      %v851 = vpop.f32.mrf.mxu0
      %v852 = vadd.f32 0.0, %v851
      %v853 = vpop.f32.mrf.mxu0
      %v854 = vadd.f32 0.0, %v853
      %855 = vmatmul.bf16.gmra.mxu0 %v829
      %v856 = vpop.f32.mrf.mxu0
      %v857 = vadd.f32 0.0, %v856
      %v858 = vpop.f32.mrf.mxu0
      %v859 = vadd.f32 0.0, %v858
      %860 = vmatmul.bf16.gmra.mxu0 %v832
      %v861 = vpop.f32.mrf.mxu0
      %v862 = vadd.f32 0.0, %v861
      %v863 = vpop.f32.mrf.mxu0
      %v864 = vadd.f32 0.0, %v863
      %865 = vmatmul.bf16.gmra.mxu0 %v835
      %v866 = vpop.f32.mrf.mxu0
      %v867 = vadd.f32 0.0, %v866
      %v868 = vpop.f32.mrf.mxu0
      %v869 = vadd.f32 0.0, %v868
      %870 = vdwg.mxu0
      %v871 = vadd.f32 %v690, %v847
      %v872 = vadd.f32 %v691, %v849
      %v873 = vadd.f32 %v692, %v852
      %v874 = vadd.f32 %v693, %v854
      %v875 = vadd.f32 %v694, %v857
      %v876 = vadd.f32 %v695, %v859
      %v877 = vadd.f32 %v696, %v862
      %v878 = vadd.f32 %v697, %v864
      %v879 = vadd.f32 %v698, %v867
      %v880 = vadd.f32 %v699, %v869
      %v881 = vld [vmem:[%s207 + $0x4] sm:$0xc]
      %s882 = scalar_lea.vmem %s1, 160
      %v883 = vld [vmem:[%s882] sm:$0xf]
      %v884 = vld [vmem:[%s882 + $0x4] sm:$0xf]
      %v885 = vld [vmem:[%s882 + $0x8] sm:$0xf]
      %v886 = vld [vmem:[%s882 + $0xc] sm:$0xf]
      %v887 = vld [vmem:[%s882 + $0x10] sm:$0xf]
      %v888 = vld [vmem:[%s882 + $0x14] sm:$0xf]
      %v889 = vld [vmem:[%s882 + $0x18] sm:$0xf]
      %v890 = vld [vmem:[%s882 + $0x1c] sm:$0xf]
      %v892 = vunpack.c.l.b16 %v881
      %v893 = vpack.c.b16 %v732, %v892
      %vm894 = vcmask 1045504
      %v895 = vrot.slane %v893, 2
      %v896 = vrot.slane %v743, 2
      %v897 = vsel %vm894, %v895, %v896
      %v898 = vrot.slane %v744, 2
      %v899 = vsel %vm894, %v896, %v898
      %v900 = vrot.slane %v745, 2
      %v901 = vsel %vm894, %v898, %v900
      %v902 = vrot.slane %v746, 2
      %v903 = vsel %vm894, %v900, %v902
      %v904 = vrot.slane %v747, 2
      %v905 = vsel %vm894, %v902, %v904
      %v914 = vunpack.c.l.b16 %v883
      %v915 = vunpack.c.l.b16 %v884
      %v916 = vunpack.c.l.b16 %v885
      %v917 = vunpack.c.l.b16 %v886
      %v918 = vunpack.c.l.b16 %v887
      %v919 = vunpack.c.l.b16 %v888
      %v920 = vunpack.c.l.b16 %v889
      %v921 = vunpack.c.l.b16 %v890
      %v922 = vpack.c.b16 %v915, %v914
      %v923 = vpack.c.b16 %v917, %v916
      %v924 = vpack.c.b16 %v919, %v918
      %v925 = vpack.c.b16 %v921, %v920
      %v931 = vsel %vm336, %v897, 0
      %v934 = vsel %vm336, %v899, 0
      %v937 = vsel %vm336, %v901, 0
      %v940 = vsel %vm336, %v903, 0
      %v943 = vsel %vm336, %v905, 0
      %945 = vmatpush.bf16.msra.mxu0 0
      %946 = vmatpush.bf16.msra.mxu0 0
      %947 = vmatpush.bf16.msra.mxu0 0
      %948 = vmatpush.bf16.msra.mxu0 0
      %949 = vmatpush.bf16.msra.mxu0 %v925
      %950 = vmatpush.bf16.msra.mxu0 %v924
      %951 = vmatpush.bf16.msra.mxu0 %v923
      %952 = vmatpush.bf16.msra.mxu0 %v922
      %953 = vmatmul.bf16.gmra.mxu0 %v931
      %v954 = vpop.f32.mrf.mxu0
      %v955 = vadd.f32 0.0, %v954
      %v956 = vpop.f32.mrf.mxu0
      %v957 = vadd.f32 0.0, %v956
      %958 = vmatmul.bf16.gmra.mxu0 %v934
      %v959 = vpop.f32.mrf.mxu0
      %v960 = vadd.f32 0.0, %v959
      %v961 = vpop.f32.mrf.mxu0
      %v962 = vadd.f32 0.0, %v961
      %963 = vmatmul.bf16.gmra.mxu0 %v937
      %v964 = vpop.f32.mrf.mxu0
      %v965 = vadd.f32 0.0, %v964
      %v966 = vpop.f32.mrf.mxu0
      %v967 = vadd.f32 0.0, %v966
      %968 = vmatmul.bf16.gmra.mxu0 %v940
      %v969 = vpop.f32.mrf.mxu0
      %v970 = vadd.f32 0.0, %v969
      %v971 = vpop.f32.mrf.mxu0
      %v972 = vadd.f32 0.0, %v971
      %973 = vmatmul.bf16.gmra.mxu0 %v943
      %v974 = vpop.f32.mrf.mxu0
      %v975 = vadd.f32 0.0, %v974
      %v976 = vpop.f32.mrf.mxu0
      %v977 = vadd.f32 0.0, %v976
      %978 = vdwg.mxu0
      %v979 = vadd.f32 %v871, %v955
      %v980 = vadd.f32 %v872, %v957
      %v981 = vadd.f32 %v873, %v960
      %v982 = vadd.f32 %v874, %v962
      %v983 = vadd.f32 %v875, %v965
      %v984 = vadd.f32 %v876, %v967
      %v985 = vadd.f32 %v877, %v970
      %v986 = vadd.f32 %v878, %v972
      %v987 = vadd.f32 %v879, %v975
      %v988 = vadd.f32 %v880, %v977
      %v989 = vld [vmem:[%s207 + $0x8] sm:$0xc]
      %v990 = vld [vmem:[%s207 + $0xc] sm:$0xf]
      %v991 = vld [vmem:[%s207 + $0x10] sm:$0xf]
      %v992 = vld [vmem:[%s207 + $0x14] sm:$0xf]
      %v993 = vld [vmem:[%s207 + $0x18] sm:$0xf]
      %v994 = vld [vmem:[%s207 + $0x1c] sm:$0xf]
      %v995 = vld [vmem:[%s207 + $0x20] sm:$0xf]
      %v996 = vld [vmem:[%s207 + $0x24] sm:$0xf]
      %v997 = vld [vmem:[%s207 + $0x28] sm:$0xf]
      %v998 = vld [vmem:[%s207 + $0x2c] sm:$0xf]
      %v999 = vld [vmem:[%s207 + $0x30] sm:$0x1]
      %s1000 = scalar_lea.vmem %s1, 192
      %v1001 = vld [vmem:[%s1000] sm:$0xf]
      %v1002 = vld [vmem:[%s1000 + $0x4] sm:$0xf]
      %v1003 = vld [vmem:[%s1000 + $0x8] sm:$0xf]
      %v1004 = vld [vmem:[%s1000 + $0xc] sm:$0xf]
      %v1005 = vld [vmem:[%s1000 + $0x10] sm:$0xf]
      %v1006 = vld [vmem:[%s1000 + $0x14] sm:$0xf]
      %v1007 = vld [vmem:[%s1000 + $0x18] sm:$0xf]
      %v1008 = vld [vmem:[%s1000 + $0x1c] sm:$0xf]
      %v1020 = vunpack.c.l.b16 %v989
      %v1021 = vunpack.c.l.b16 %v990
      %v1022 = vunpack.c.l.b16 %v991
      %v1023 = vunpack.c.l.b16 %v992
      %v1024 = vunpack.c.l.b16 %v993
      %v1025 = vunpack.c.l.b16 %v994
      %v1026 = vunpack.c.l.b16 %v995
      %v1027 = vunpack.c.l.b16 %v996
      %v1028 = vunpack.c.l.b16 %v997
      %v1029 = vunpack.c.l.b16 %v998
      %v1030 = vunpack.c.l.b16 %v999
      %v1031 = vpack.c.b16 %v1021, %v1020
      %v1032 = vpack.c.b16 %v1023, %v1022
      %v1033 = vpack.c.b16 %v1025, %v1024
      %v1034 = vpack.c.b16 %v1027, %v1026
      %v1035 = vpack.c.b16 %v1029, %v1028
      %v1036 = vpack.c.b16 %v1030, %v1030
      %v1037 = vrot.slane %v1031, 2
      %v1038 = vrot.slane %v1032, 2
      %v1039 = vsel %vm894, %v1037, %v1038
      %v1040 = vrot.slane %v1033, 2
      %v1041 = vsel %vm894, %v1038, %v1040
      %v1042 = vrot.slane %v1034, 2
      %v1043 = vsel %vm894, %v1040, %v1042
      %v1044 = vrot.slane %v1035, 2
      %v1045 = vsel %vm894, %v1042, %v1044
      %v1046 = vrot.slane %v1036, 2
      %v1047 = vsel %vm894, %v1044, %v1046
      %v1056 = vunpack.c.l.b16 %v1001
      %v1057 = vunpack.c.l.b16 %v1002
      %v1058 = vunpack.c.l.b16 %v1003
      %v1059 = vunpack.c.l.b16 %v1004
      %v1060 = vunpack.c.l.b16 %v1005
      %v1061 = vunpack.c.l.b16 %v1006
      %v1062 = vunpack.c.l.b16 %v1007
      %v1063 = vunpack.c.l.b16 %v1008
      %v1064 = vpack.c.b16 %v1057, %v1056
      %v1065 = vpack.c.b16 %v1059, %v1058
      %v1066 = vpack.c.b16 %v1061, %v1060
      %v1067 = vpack.c.b16 %v1063, %v1062
      %v1073 = vsel %vm336, %v1039, 0
      %v1076 = vsel %vm336, %v1041, 0
      %v1079 = vsel %vm336, %v1043, 0
      %v1082 = vsel %vm336, %v1045, 0
      %v1085 = vsel %vm336, %v1047, 0
      %1087 = vmatpush.bf16.msra.mxu0 0
      %1088 = vmatpush.bf16.msra.mxu0 0
      %1089 = vmatpush.bf16.msra.mxu0 0
      %1090 = vmatpush.bf16.msra.mxu0 0
      %1091 = vmatpush.bf16.msra.mxu0 %v1067
      %1092 = vmatpush.bf16.msra.mxu0 %v1066
      %1093 = vmatpush.bf16.msra.mxu0 %v1065
      %1094 = vmatpush.bf16.msra.mxu0 %v1064
      %1095 = vmatmul.bf16.gmra.mxu0 %v1073
      %v1096 = vpop.f32.mrf.mxu0
      %v1097 = vadd.f32 0.0, %v1096
      %v1098 = vpop.f32.mrf.mxu0
      %v1099 = vadd.f32 0.0, %v1098
      %1100 = vmatmul.bf16.gmra.mxu0 %v1076
      %v1101 = vpop.f32.mrf.mxu0
      %v1102 = vadd.f32 0.0, %v1101
      %v1103 = vpop.f32.mrf.mxu0
      %v1104 = vadd.f32 0.0, %v1103
      %1105 = vmatmul.bf16.gmra.mxu0 %v1079
      %v1106 = vpop.f32.mrf.mxu0
      %v1107 = vadd.f32 0.0, %v1106
      %v1108 = vpop.f32.mrf.mxu0
      %v1109 = vadd.f32 0.0, %v1108
      %1110 = vmatmul.bf16.gmra.mxu0 %v1082
      %v1111 = vpop.f32.mrf.mxu0
      %v1112 = vadd.f32 0.0, %v1111
      %v1113 = vpop.f32.mrf.mxu0
      %v1114 = vadd.f32 0.0, %v1113
      %1115 = vmatmul.bf16.gmra.mxu0 %v1085
      %v1116 = vpop.f32.mrf.mxu0
      %v1117 = vadd.f32 0.0, %v1116
      %v1118 = vpop.f32.mrf.mxu0
      %v1119 = vadd.f32 0.0, %v1118
      %1120 = vdwg.mxu0
      %v1121 = vadd.f32 %v979, %v1097
      %v1122 = vadd.f32 %v980, %v1099
      %v1123 = vadd.f32 %v981, %v1102
      %v1124 = vadd.f32 %v982, %v1104
      %v1125 = vadd.f32 %v983, %v1107
      %v1126 = vadd.f32 %v984, %v1109
      %v1127 = vadd.f32 %v985, %v1112
      %v1128 = vadd.f32 %v986, %v1114
      %v1129 = vadd.f32 %v987, %v1117
      %v1130 = vadd.f32 %v988, %v1119
      %v1131 = vld [vmem:[%s207 + $0x30] sm:$0x3]
      %s1132 = scalar_lea.vmem %s1, 224
      %v1133 = vld [vmem:[%s1132] sm:$0xf]
      %v1134 = vld [vmem:[%s1132 + $0x4] sm:$0xf]
      %v1135 = vld [vmem:[%s1132 + $0x8] sm:$0xf]
      %v1136 = vld [vmem:[%s1132 + $0xc] sm:$0xf]
      %v1137 = vld [vmem:[%s1132 + $0x10] sm:$0xf]
      %v1138 = vld [vmem:[%s1132 + $0x14] sm:$0xf]
      %v1139 = vld [vmem:[%s1132 + $0x18] sm:$0xf]
      %v1140 = vld [vmem:[%s1132 + $0x1c] sm:$0xf]
      %v1142 = vunpack.c.l.b16 %v1131
      %v1143 = vpack.c.b16 %v1142, %v1142
      %vm1144 = vsmask.f32 5376
      %v1146 = vshrl.u32 %v1031, 16
      %v1148 = vrot.slane %v1146, 2
      %v1149 = vshll.u32 %v1031, 16
      %v1151 = vrot.slane %v1149, 3
      %v1152 = vor.u32 %v1148, %v1151
      %v1154 = vshrl.u32 %v1032, 16
      %v1156 = vrot.slane %v1154, 2
      %v1157 = vshll.u32 %v1032, 16
      %v1159 = vrot.slane %v1157, 3
      %v1160 = vor.u32 %v1156, %v1159
      %v1161 = vsel %vm1144, %v1152, %v1160
      %v1163 = vshrl.u32 %v1033, 16
      %v1165 = vrot.slane %v1163, 2
      %v1166 = vshll.u32 %v1033, 16
      %v1168 = vrot.slane %v1166, 3
      %v1169 = vor.u32 %v1165, %v1168
      %v1170 = vsel %vm1144, %v1160, %v1169
      %v1172 = vshrl.u32 %v1034, 16
      %v1174 = vrot.slane %v1172, 2
      %v1175 = vshll.u32 %v1034, 16
      %v1177 = vrot.slane %v1175, 3
      %v1178 = vor.u32 %v1174, %v1177
      %v1179 = vsel %vm1144, %v1169, %v1178
      %v1181 = vshrl.u32 %v1035, 16
      %v1183 = vrot.slane %v1181, 2
      %v1184 = vshll.u32 %v1035, 16
      %v1186 = vrot.slane %v1184, 3
      %v1187 = vor.u32 %v1183, %v1186
      %v1188 = vsel %vm1144, %v1178, %v1187
      %v1190 = vshrl.u32 %v1143, 16
      %v1192 = vrot.slane %v1190, 2
      %v1193 = vshll.u32 %v1143, 16
      %v1195 = vrot.slane %v1193, 3
      %v1196 = vor.u32 %v1192, %v1195
      %v1197 = vsel %vm1144, %v1187, %v1196
      %v1206 = vunpack.c.l.b16 %v1133
      %v1207 = vunpack.c.l.b16 %v1134
      %v1208 = vunpack.c.l.b16 %v1135
      %v1209 = vunpack.c.l.b16 %v1136
      %v1210 = vunpack.c.l.b16 %v1137
      %v1211 = vunpack.c.l.b16 %v1138
      %v1212 = vunpack.c.l.b16 %v1139
      %v1213 = vunpack.c.l.b16 %v1140
      %v1214 = vpack.c.b16 %v1207, %v1206
      %v1215 = vpack.c.b16 %v1209, %v1208
      %v1216 = vpack.c.b16 %v1211, %v1210
      %v1217 = vpack.c.b16 %v1213, %v1212
      %v1223 = vsel %vm336, %v1161, 0
      %v1226 = vsel %vm336, %v1170, 0
      %v1229 = vsel %vm336, %v1179, 0
      %v1232 = vsel %vm336, %v1188, 0
      %v1235 = vsel %vm336, %v1197, 0
      %1237 = vmatpush.bf16.msra.mxu0 0
      %1238 = vmatpush.bf16.msra.mxu0 0
      %1239 = vmatpush.bf16.msra.mxu0 0
      %1240 = vmatpush.bf16.msra.mxu0 0
      %1241 = vmatpush.bf16.msra.mxu0 %v1217
      %1242 = vmatpush.bf16.msra.mxu0 %v1216
      %1243 = vmatpush.bf16.msra.mxu0 %v1215
      %1244 = vmatpush.bf16.msra.mxu0 %v1214
      %1245 = vmatmul.bf16.gmra.mxu0 %v1223
      %v1246 = vpop.f32.mrf.mxu0
      %v1247 = vadd.f32 0.0, %v1246
      %v1248 = vpop.f32.mrf.mxu0
      %v1249 = vadd.f32 0.0, %v1248
      %1250 = vmatmul.bf16.gmra.mxu0 %v1226
      %v1251 = vpop.f32.mrf.mxu0
      %v1252 = vadd.f32 0.0, %v1251
      %v1253 = vpop.f32.mrf.mxu0
      %v1254 = vadd.f32 0.0, %v1253
      %1255 = vmatmul.bf16.gmra.mxu0 %v1229
      %v1256 = vpop.f32.mrf.mxu0
      %v1257 = vadd.f32 0.0, %v1256
      %v1258 = vpop.f32.mrf.mxu0
      %v1259 = vadd.f32 0.0, %v1258
      %1260 = vmatmul.bf16.gmra.mxu0 %v1232
      %v1261 = vpop.f32.mrf.mxu0
      %v1262 = vadd.f32 0.0, %v1261
      %v1263 = vpop.f32.mrf.mxu0
      %v1264 = vadd.f32 0.0, %v1263
      %1265 = vmatmul.bf16.gmra.mxu0 %v1235
      %v1266 = vpop.f32.mrf.mxu0
      %v1267 = vadd.f32 0.0, %v1266
      %v1268 = vpop.f32.mrf.mxu0
      %v1269 = vadd.f32 0.0, %v1268
      %1270 = vdwg.mxu0
      %v1271 = vadd.f32 %v1121, %v1247
      %v1272 = vadd.f32 %v1122, %v1249
      %v1273 = vadd.f32 %v1123, %v1252
      %v1274 = vadd.f32 %v1124, %v1254
      %v1275 = vadd.f32 %v1125, %v1257
      %v1276 = vadd.f32 %v1126, %v1259
      %v1277 = vadd.f32 %v1127, %v1262
      %v1278 = vadd.f32 %v1128, %v1264
      %v1279 = vadd.f32 %v1129, %v1267
      %v1280 = vadd.f32 %v1130, %v1269
      %v1281 = vld [vmem:[%s207 + $0x8] sm:$0x8]
      %s1282 = scalar_lea.vmem %s1, 256
      %v1283 = vld [vmem:[%s1282] sm:$0xf]
      %v1284 = vld [vmem:[%s1282 + $0x4] sm:$0xf]
      %v1285 = vld [vmem:[%s1282 + $0x8] sm:$0xf]
      %v1286 = vld [vmem:[%s1282 + $0xc] sm:$0xf]
      %v1287 = vld [vmem:[%s1282 + $0x10] sm:$0xf]
      %v1288 = vld [vmem:[%s1282 + $0x14] sm:$0xf]
      %v1289 = vld [vmem:[%s1282 + $0x18] sm:$0xf]
      %v1290 = vld [vmem:[%s1282 + $0x1c] sm:$0xf]
      %v1292 = vunpack.c.l.b16 %v1281
      %v1293 = vpack.c.b16 %v1021, %v1292
      %vm1294 = vcmask 1044480
      %v1295 = vrot.slane %v1293, 3
      %v1296 = vrot.slane %v1032, 3
      %v1297 = vsel %vm1294, %v1295, %v1296
      %v1298 = vrot.slane %v1033, 3
      %v1299 = vsel %vm1294, %v1296, %v1298
      %v1300 = vrot.slane %v1034, 3
      %v1301 = vsel %vm1294, %v1298, %v1300
      %v1302 = vrot.slane %v1035, 3
      %v1303 = vsel %vm1294, %v1300, %v1302
      %v1304 = vrot.slane %v1143, 3
      %v1305 = vsel %vm1294, %v1302, %v1304
      %v1314 = vunpack.c.l.b16 %v1283
      %v1315 = vunpack.c.l.b16 %v1284
      %v1316 = vunpack.c.l.b16 %v1285
      %v1317 = vunpack.c.l.b16 %v1286
      %v1318 = vunpack.c.l.b16 %v1287
      %v1319 = vunpack.c.l.b16 %v1288
      %v1320 = vunpack.c.l.b16 %v1289
      %v1321 = vunpack.c.l.b16 %v1290
      %v1322 = vpack.c.b16 %v1315, %v1314
      %v1323 = vpack.c.b16 %v1317, %v1316
      %v1324 = vpack.c.b16 %v1319, %v1318
      %v1325 = vpack.c.b16 %v1321, %v1320
      %v1331 = vsel %vm336, %v1297, 0
      %v1334 = vsel %vm336, %v1299, 0
      %v1337 = vsel %vm336, %v1301, 0
      %v1340 = vsel %vm336, %v1303, 0
      %v1343 = vsel %vm336, %v1305, 0
      %1345 = vmatpush.bf16.msra.mxu0 0
      %1346 = vmatpush.bf16.msra.mxu0 0
      %1347 = vmatpush.bf16.msra.mxu0 0
      %1348 = vmatpush.bf16.msra.mxu0 0
      %1349 = vmatpush.bf16.msra.mxu0 %v1325
      %1350 = vmatpush.bf16.msra.mxu0 %v1324
      %1351 = vmatpush.bf16.msra.mxu0 %v1323
      %1352 = vmatpush.bf16.msra.mxu0 %v1322
      %1353 = vmatmul.bf16.gmra.mxu0 %v1331
      %v1354 = vpop.f32.mrf.mxu0
      %v1355 = vadd.f32 0.0, %v1354
      %v1356 = vpop.f32.mrf.mxu0
      %v1357 = vadd.f32 0.0, %v1356
      %1358 = vmatmul.bf16.gmra.mxu0 %v1334
      %v1359 = vpop.f32.mrf.mxu0
      %v1360 = vadd.f32 0.0, %v1359
      %v1361 = vpop.f32.mrf.mxu0
      %v1362 = vadd.f32 0.0, %v1361
      %1363 = vmatmul.bf16.gmra.mxu0 %v1337
      %v1364 = vpop.f32.mrf.mxu0
      %v1365 = vadd.f32 0.0, %v1364
      %v1366 = vpop.f32.mrf.mxu0
      %v1367 = vadd.f32 0.0, %v1366
      %1368 = vmatmul.bf16.gmra.mxu0 %v1340
      %v1369 = vpop.f32.mrf.mxu0
      %v1370 = vadd.f32 0.0, %v1369
      %v1371 = vpop.f32.mrf.mxu0
      %v1372 = vadd.f32 0.0, %v1371
      %1373 = vmatmul.bf16.gmra.mxu0 %v1343
      %v1374 = vpop.f32.mrf.mxu0
      %v1375 = vadd.f32 0.0, %v1374
      %v1376 = vpop.f32.mrf.mxu0
      %v1377 = vadd.f32 0.0, %v1376
      %1378 = vdwg.mxu0
      %v1379 = vadd.f32 %v1271, %v1355
      %v1380 = vadd.f32 %v1272, %v1357
      %v1381 = vadd.f32 %v1273, %v1360
      %v1382 = vadd.f32 %v1274, %v1362
      %v1383 = vadd.f32 %v1275, %v1365
      %v1384 = vadd.f32 %v1276, %v1367
      %v1385 = vadd.f32 %v1277, %v1370
      %v1386 = vadd.f32 %v1278, %v1372
      %v1387 = vadd.f32 %v1279, %v1375
      %v1388 = vadd.f32 %v1280, %v1377
      %v1389 = vld [vmem:[%s2] sm:$0x1]
      %v1391 = vperm.slane %v1389, 0
      %v1393 = vadd.f32 %v1379, %v1391
      %v1394 = vld [vmem:[%s212 + $0x4] sm:$0xe]
      %v1395 = vld [vmem:[%s212 + $0x8] sm:$0x3]
      %v1396 = vunpack.c.l.bf16 %v1394
      %v1397 = vunpack.c.l.bf16 %v1395
      %vm1400 = vcmask 1044480
      %v1401 = vrot.slane %v1396, 3
      %v1402 = vrot.slane %v1397, 3
      %v1403 = vsel %vm1400, %v1401, %v1402
      %v1405 = vadd.f32 %v1393, %v1403
      %v1406 = vmax.f32 %v1405, 0.0
      %v1407 = vpack.c.bf16 %v1406, %v1406
      %vm1408 = vcmask 519168
      %1409 = vst.msk [vmem:[%s217] sm:$0xf] %vm1408, %v1407
      %v1410 = vadd.f32 %v1380, %v1391
      %v1411 = vadd.f32 %v1381, %v1391
      %v1412 = vld [vmem:[%s212 + $0x8] sm:$0xc]
      %v1413 = vld [vmem:[%s212 + $0xc] sm:$0x7]
      %v1414 = vunpack.c.l.bf16 %v1412
      %v1415 = vunpack.c.l.bf16 %v1413
      %v1418 = vrot.slane %v1414, 3
      %v1419 = vrot.slane %v1415, 3
      %v1420 = vsel %vm1400, %v1418, %v1419
      %v1423 = vadd.f32 %v1410, %v1420
      %v1424 = vadd.f32 %v1411, %v1419
      %v1425 = vmax.f32 %v1423, 0.0
      %v1426 = vmax.f32 %v1424, 0.0
      %v1427 = vpack.c.bf16 %v1425, %v1425
      %v1428 = vpack.c.bf16 %v1426, %v1426
      %vm1431 = vcmask 1042432
      %vm1432 = vcmask 1046532
      %vm1433 = vmor %vm1431, %vm1432
      %v1434 = vrot.slane %v1427, 5
      %v1435 = vrot.slane %v1434, 4
      %v1436 = vrot.slane %v1428, 5
      %v1437 = vsel %vm1433, %v1435, %v1436
      %s1439 = scalar_lea.vmem %s217, 4
      %1440 = vst.msk [vmem:[%s1439] sm:$0xf] %vm1408, %v1437
      %v1441 = vadd.f32 %v1382, %v1391
      %v1442 = vld [vmem:[%s212 + $0xc] sm:$0x8]
      %v1443 = vld [vmem:[%s212 + $0x10] sm:$0xf]
      %v1444 = vunpack.c.l.bf16 %v1442
      %v1445 = vunpack.c.l.bf16 %v1443
      %v1448 = vrot.slane %v1444, 3
      %v1449 = vrot.slane %v1445, 3
      %v1450 = vsel %vm1400, %v1448, %v1449
      %v1453 = vadd.f32 %v1411, %v1450
      %v1454 = vadd.f32 %v1441, %v1449
      %v1455 = vmax.f32 %v1453, 0.0
      %v1456 = vmax.f32 %v1454, 0.0
      %v1457 = vpack.c.bf16 %v1455, %v1455
      %v1458 = vpack.c.bf16 %v1456, %v1456
      %vm1461 = vcmask 1041408
      %vm1462 = vcmask 1045508
      %vm1463 = vmor %vm1461, %vm1462
      %v1464 = vrot.slane %v1457, 6
      %v1465 = vrot.slane %v1464, 4
      %v1466 = vrot.slane %v1458, 6
      %v1467 = vsel %vm1463, %v1465, %v1466
      %s1469 = scalar_lea.vmem %s217, 8
      %1470 = vst.msk [vmem:[%s1469] sm:$0xf] %vm1408, %v1467
      %v1471 = vadd.f32 %v1383, %v1391
      %v1472 = vld [vmem:[%s212 + $0x14] sm:$0xf]
      %v1473 = vld [vmem:[%s212 + $0x18] sm:$0x1]
      %v1474 = vunpack.c.l.bf16 %v1472
      %v1475 = vunpack.c.l.bf16 %v1473
      %v1478 = vrot.slane %v1474, 3
      %v1479 = vrot.slane %v1475, 3
      %v1480 = vsel %vm1400, %v1478, %v1479
      %v1483 = vadd.f32 %v1441, %v1478
      %v1484 = vadd.f32 %v1471, %v1480
      %v1485 = vmax.f32 %v1483, 0.0
      %v1486 = vmax.f32 %v1484, 0.0
      %v1487 = vpack.c.bf16 %v1485, %v1485
      %v1488 = vpack.c.bf16 %v1486, %v1486
      %vm1491 = vcmask 1040384
      %vm1492 = vcmask 1044484
      %vm1493 = vmor %vm1491, %vm1492
      %v1494 = vrot.slane %v1487, 7
      %v1495 = vrot.slane %v1494, 4
      %v1496 = vrot.slane %v1488, 7
      %v1497 = vsel %vm1493, %v1495, %v1496
      %s1499 = scalar_lea.vmem %s217, 12
      %1500 = vst.msk [vmem:[%s1499] sm:$0xf] %vm1408, %v1497
      %v1501 = vadd.f32 %v1384, %v1391
      %v1502 = vld [vmem:[%s212 + $0x18] sm:$0xe]
      %v1503 = vld [vmem:[%s212 + $0x1c] sm:$0x3]
      %v1504 = vunpack.c.l.bf16 %v1502
      %v1505 = vunpack.c.l.bf16 %v1503
      %v1508 = vrot.slane %v1504, 3
      %v1509 = vrot.slane %v1505, 3
      %v1510 = vsel %vm1400, %v1508, %v1509
      %v1512 = vadd.f32 %v1501, %v1510
      %v1513 = vmax.f32 %v1512, 0.0
      %v1514 = vpack.c.bf16 %v1513, %v1513
      %s1515 = scalar_lea.vmem %s217, 16
      %1516 = vst.msk [vmem:[%s1515] sm:$0xf] %vm1408, %v1514
      %v1517 = vadd.f32 %v1385, %v1391
      %v1518 = vadd.f32 %v1386, %v1391
      %v1519 = vld [vmem:[%s212 + $0x1c] sm:$0xc]
      %v1520 = vld [vmem:[%s212 + $0x20] sm:$0x7]
      %v1521 = vunpack.c.l.bf16 %v1519
      %v1522 = vunpack.c.l.bf16 %v1520
      %v1525 = vrot.slane %v1521, 3
      %v1526 = vrot.slane %v1522, 3
      %v1527 = vsel %vm1400, %v1525, %v1526
      %v1530 = vadd.f32 %v1517, %v1527
      %v1531 = vadd.f32 %v1518, %v1526
      %v1532 = vmax.f32 %v1530, 0.0
      %v1533 = vmax.f32 %v1531, 0.0
      %v1534 = vpack.c.bf16 %v1532, %v1532
      %v1535 = vpack.c.bf16 %v1533, %v1533
      %v1538 = vrot.slane %v1534, 5
      %v1539 = vrot.slane %v1538, 4
      %v1540 = vrot.slane %v1535, 5
      %v1541 = vsel %vm1433, %v1539, %v1540
      %s1543 = scalar_lea.vmem %s217, 20
      %1544 = vst.msk [vmem:[%s1543] sm:$0xf] %vm1408, %v1541
      %v1545 = vadd.f32 %v1387, %v1391
      %v1546 = vld [vmem:[%s212 + $0x20] sm:$0x8]
      %v1547 = vld [vmem:[%s212 + $0x24] sm:$0xf]
      %v1548 = vunpack.c.l.bf16 %v1546
      %v1549 = vunpack.c.l.bf16 %v1547
      %v1552 = vrot.slane %v1548, 3
      %v1553 = vrot.slane %v1549, 3
      %v1554 = vsel %vm1400, %v1552, %v1553
      %v1557 = vadd.f32 %v1518, %v1554
      %v1558 = vadd.f32 %v1545, %v1553
      %v1559 = vmax.f32 %v1557, 0.0
      %v1560 = vmax.f32 %v1558, 0.0
      %v1561 = vpack.c.bf16 %v1559, %v1559
      %v1562 = vpack.c.bf16 %v1560, %v1560
      %v1565 = vrot.slane %v1561, 6
      %v1566 = vrot.slane %v1565, 4
      %v1567 = vrot.slane %v1562, 6
      %v1568 = vsel %vm1463, %v1566, %v1567
      %s1570 = scalar_lea.vmem %s217, 24
      %1571 = vst.msk [vmem:[%s1570] sm:$0xf] %vm1408, %v1568
      %v1572 = vadd.f32 %v1388, %v1391
      %v1573 = vld [vmem:[%s212 + $0x28] sm:$0xf]
      %v1574 = vld [vmem:[%s212 + $0x2c] sm:$0x1]
      %v1575 = vunpack.c.l.bf16 %v1573
      %v1576 = vunpack.c.l.bf16 %v1574
      %v1579 = vrot.slane %v1575, 3
      %v1580 = vrot.slane %v1576, 3
      %v1581 = vsel %vm1400, %v1579, %v1580
      %v1584 = vadd.f32 %v1545, %v1579
      %v1585 = vadd.f32 %v1572, %v1581
      %v1586 = vmax.f32 %v1584, 0.0
      %v1587 = vmax.f32 %v1585, 0.0
      %v1588 = vpack.c.bf16 %v1586, %v1586
      %v1589 = vpack.c.bf16 %v1587, %v1587
      %v1592 = vrot.slane %v1588, 7
      %v1593 = vrot.slane %v1592, 4
      %v1594 = vrot.slane %v1589, 7
      %v1595 = vsel %vm1493, %v1593, %v1594
      %s1597 = scalar_lea.vmem %s217, 28
      %1598 = vst.msk [vmem:[%s1597] sm:$0xf] %vm1408, %v1595
      %p1599 = scmp.lt.s32.totalorder %s15, 1
      %s1600 = scalar_select %p1599, %s15, 1
      %s1601 = smul.addr %s1600, 8
      %s1602 = smul.addr %s1601, 4
      %s1603 = scalar_lea.vmem %s4, %s1602
      // Predicated region
      $region37: #{residual_block_forward.5} parent=35 // pred_check
        %p1604 = pneg %p127
      $region38: #{residual_block_forward.5} parent=35 // pred_check_branch
        %1606 = sbr.rel (%p1604) target = $region40
      $region39: #{residual_block_forward.5} parent=35 // pred_region
        _
      $region40: #{residual_block_forward.5} parent=35 // pred_fallthru
        _
    $region36: #{residual_block_forward.5} parent=5 // pred_fallthru
      _
    %p1607 = scmp.le.s32.totalorder 2, %s10
    // Predicated region
    $region41: #{residual_block_forward.5} parent=5 // pred_check
      %p1608 = pneg %p1607
    $region42: #{residual_block_forward.5} parent=5 // pred_check_branch
      %1610 = sbr.rel (%p1608) target = $region44
    $region43: #{residual_block_forward.5} parent=5 // pred_region
      %s1611 = ssub.s32 %s10, 2
      // Predicated region
      $region45: #{residual_block_forward.5} parent=43 // pred_check
        %p1612 = pneg %p133
      $region46: #{residual_block_forward.5} parent=43 // pred_check_branch
        %1614 = sbr.rel (%p1612) target = $region48
      $region47: #{residual_block_forward.5} parent=43 // pred_region
        %p1615 = scmp.lt.s32.totalorder %s16, 1
        %s1616 = scalar_select %p1615, %s16, 1
        %s1617 = smul.addr %s1616, 8
        %s1618 = smul.addr %s1617, 4
        %s1619 = scalar_lea.vmem %s4, %s1618
      $region48: #{residual_block_forward.5} parent=43 // pred_fallthru
        _
    $region44: #{residual_block_forward.5} parent=5 // pred_fallthru
      _
  $region6: #{residual_block_forward.5} parent=0 // loop_footer
    %s14 = sadd.s32 1, %s10
  $region7: #{residual_block_forward.5} parent=0 // loop_footer_branch
    %9 = sbr.rel target = $region3
  $region8: #{residual_block_forward.5} parent=0 // loop_exit
    _

</llo_original>
